<compile_context>
chip_gen: v6e
topology: v6e:2x2x1
jax: 0.10.0
libtpu: 0.0.40
codegen_flags: <defaults>
</compile_context>

<pallas_src>
import math

import jax
import jax.numpy as jnp
from jax.experimental import pallas as pl
from jax.experimental.pallas import tpu as pltpu

# ---- problem sizes (small, consistent with the module) ----
B = 2        # batch
S = 8        # sequence length
D = 32       # model dim (size)
H = 4        # attention heads
DK = D // H  # per-head dim
DFF = 64     # feed-forward hidden dim
EPS = 1e-6


def _layer_norm(v, a, b):
    # Matches torch LayerNorm module: mean(-1), std(-1) unbiased,
    # a * (x - mean) / (std + eps) + b
    mean = jnp.mean(v, axis=-1, keepdims=True)
    var = jnp.sum((v - mean) ** 2, axis=-1, keepdims=True) / (v.shape[-1] - 1)
    std = jnp.sqrt(var)
    return a * (v - mean) / (std + EPS) + b


def encoder_layer_kernel(
    x_ref,      # (B*S, D)
    mask_ref,   # (B, S)
    vec_ref,    # (6, D): ln1_a, ln1_b, bo, ln2_a, ln2_b, b2
    wqkv_ref,   # (D, 3D)
    bqkv_ref,   # (1, 3D)
    wo_ref,     # (D, D)
    w1_ref,     # (D, DFF)
    b1_ref,     # (1, DFF)
    w2_ref,     # (DFF, D)
    o_ref,      # (B*S, D)
):
    x = x_ref[...].astype(jnp.float32)          # (B*S, D)

    ln1_a = vec_ref[0:1, :]
    ln1_b = vec_ref[1:2, :]
    bo    = vec_ref[2:3, :]
    ln2_a = vec_ref[3:4, :]
    ln2_b = vec_ref[4:5, :]
    b2    = vec_ref[5:6, :]

    # ---- sublayer 0: LN -> multi-head self-attention -> residual ----
    xn = _layer_norm(x, ln1_a, ln1_b)

    # fused Q/K/V projection: one MXU op instead of three narrow ones
    qkv = jnp.dot(xn, wqkv_ref[...], preferred_element_type=jnp.float32) + bqkv_ref[...]
    q = qkv[:, 0:D]
    k = qkv[:, D:2 * D]
    v = qkv[:, 2 * D:3 * D]

    # mask predicate hoisted out of the (unrolled) batch/head loops
    neg_all = mask_ref[...] == 0.0              # (B, S) bool

    scale = 1.0 / math.sqrt(DK)
    batch_rows = []
    for b in range(B):                           # static, unrolled
        r0 = b * S
        qb = q[r0:r0 + S, :]
        kb = k[r0:r0 + S, :]
        vb = v[r0:r0 + S, :]
        neg = neg_all[b:b + 1, :]                # (1, S), broadcasts over query rows
        heads = []
        for h in range(H):                       # static, unrolled
            lo, hi = h * DK, (h + 1) * DK
            qh, kh, vh = qb[:, lo:hi], kb[:, lo:hi], vb[:, lo:hi]        # (S, DK)
            scores = jnp.dot(qh, kh.T, preferred_element_type=jnp.float32) * scale
            scores = jnp.where(neg, -1e9, scores)
            m = jnp.max(scores, axis=-1, keepdims=True)
            e = jnp.exp(scores - m)
            p = e / jnp.sum(e, axis=-1, keepdims=True)
            heads.append(jnp.dot(p, vh, preferred_element_type=jnp.float32))  # (S, DK)
        batch_rows.append(jnp.concatenate(heads, axis=-1))                    # (S, D)
    attn = jnp.concatenate(batch_rows, axis=0)                                # (B*S, D)

    # single wide output projection instead of 4 K=8 folds
    attn_out = jnp.dot(attn, wo_ref[...], preferred_element_type=jnp.float32) + bo
    # TODO(synk): dropout omitted (eval mode / identity)
    x1 = x + attn_out

    # ---- sublayer 1: LN -> position-wise feed-forward -> residual ----
    xn2 = _layer_norm(x1, ln2_a, ln2_b)
    h1 = jnp.maximum(
        jnp.dot(xn2, w1_ref[...], preferred_element_type=jnp.float32) + b1_ref[...],
        0.0)
    ff = jnp.dot(h1, w2_ref[...], preferred_element_type=jnp.float32) + b2

    o_ref[...] = (x1 + ff).astype(o_ref.dtype)


def encoder_layer(x, mask, params):
    """x: [B, S, D] f32, mask: [B, 1, S] f32 (1 = attend, 0 = masked)."""
    (ln1_a, ln1_b, wq, bq, wk, bk, wv, bv, wo, bo,
     ln2_a, ln2_b, w1, b1, w2, b2) = params

    # operand fusion done once in the wrapper (would be done at init in practice)
    wqkv = jnp.concatenate([wq, wk, wv], axis=1)                    # (D, 3D)
    bqkv = jnp.concatenate([bq, bk, bv], axis=1)                    # (1, 3D)
    vecs = jnp.concatenate([ln1_a, ln1_b, bo, ln2_a, ln2_b, b2], axis=0)  # (6, D)

    x2d = x.reshape(B * S, D)
    mask2d = mask.reshape(B, S)

    full = lambda shape: pl.BlockSpec(shape, lambda i: (0,) * len(shape))
    out = pl.pallas_call(
        encoder_layer_kernel,
        out_shape=jax.ShapeDtypeStruct((B * S, D), x.dtype),
        grid_spec=pltpu.PrefetchScalarGridSpec(
            num_scalar_prefetch=0,
            grid=(1,),                            # single invocation (grid collapsed)
            in_specs=[
                full((B * S, D)),                 # x
                full((B, S)),                     # mask
                full((6, D)),                     # packed LN / bias vectors
                full((D, 3 * D)),                 # wqkv
                full((1, 3 * D)),                 # bqkv
                full((D, D)),                     # wo
                full((D, DFF)),                   # w1
                full((1, DFF)),                   # b1
                full((DFF, D)),                   # w2
            ],
            out_specs=full((B * S, D)),
        ),
        compiler_params=pltpu.CompilerParams(
            dimension_semantics=("arbitrary",)),
    )(x2d, mask2d, vecs, wqkv, bqkv, wo, w1, b1, w2)
    return out.reshape(B, S, D)


def reference(x, mask, params):
    (ln1_a, ln1_b, wq, bq, wk, bk, wv, bv, wo, bo,
     ln2_a, ln2_b, w1, b1, w2, b2) = params
    xn = _layer_norm(x, ln1_a, ln1_b)
    q = xn @ wq + bq
    k = xn @ wk + bk
    v = xn @ wv + bv
    qh = q.reshape(B, S, H, DK).transpose(0, 2, 1, 3)
    kh = k.reshape(B, S, H, DK).transpose(0, 2, 1, 3)
    vh = v.reshape(B, S, H, DK).transpose(0, 2, 1, 3)
    scores = jnp.einsum("bhqd,bhkd->bhqk", qh, kh) / math.sqrt(DK)
    scores = jnp.where(mask[:, None, :, :] == 0.0, -1e9, scores)
    p = jax.nn.softmax(scores, axis=-1)
    attn = jnp.einsum("bhqk,bhkd->bhqd", p, vh).transpose(0, 2, 1, 3).reshape(B, S, D)
    x1 = x + (attn @ wo + bo)
    xn2 = _layer_norm(x1, ln2_a, ln2_b)
    return x1 + (jnp.maximum(xn2 @ w1 + b1, 0.0) @ w2 + b2)


if __name__ == "__main__":
    key = jax.random.PRNGKey(0)
    keys = jax.random.split(key, 12)

    x = jax.random.normal(keys[0], (B, S, D), dtype=jnp.float32)
    mask = jnp.ones((B, 1, S), dtype=jnp.float32)
    mask = mask.at[1, 0, S - 2:].set(0.0)   # mask last two positions of batch 1

    def w(k, shape, scale=0.1):
        return scale * jax.random.normal(k, shape, dtype=jnp.float32)

    params = (
        jnp.ones((1, D), jnp.float32),   # ln1 a_2
        jnp.zeros((1, D), jnp.float32),  # ln1 b_2
        w(keys[1], (D, D)),  w(keys[2], (1, D)),    # wq, bq
        w(keys[3], (D, D)),  w(keys[4], (1, D)),    # wk, bk
        w(keys[5], (D, D)),  w(keys[6], (1, D)),    # wv, bv
        w(keys[7], (D, D)),  w(keys[8], (1, D)),    # wo, bo
        jnp.ones((1, D), jnp.float32),   # ln2 a_2
        jnp.zeros((1, D), jnp.float32),  # ln2 b_2
        w(keys[9], (D, DFF)),  w(keys[10], (1, DFF)),  # w1, b1
        w(keys[11], (DFF, D)), jnp.zeros((1, D), jnp.float32),  # w2, b2
    )

    out = jax.block_until_ready(encoder_layer(x, mask, params))
    ref = jax.block_until_ready(reference(x, mask, params))
    assert out.shape == (B, S, D)
    if not jnp.allclose(out, ref, atol=1e-4, rtol=1e-4):
        raise AssertionError("Pallas kernel does not match JAX reference")
    print("KERNEL_OK")
</pallas_src>

<mosaic_0001>
module attributes {stable_mosaic.version = 11 : i64} {
  func.func @encoder_layer_kernel(%arg0: i32, %arg1: memref<16x32xf32, #tpu.memory_space<vmem>>, %arg2: memref<2x8xf32, #tpu.memory_space<vmem>>, %arg3: memref<6x32xf32, #tpu.memory_space<vmem>>, %arg4: memref<32x96xf32, #tpu.memory_space<vmem>>, %arg5: memref<1x96xf32, #tpu.memory_space<vmem>>, %arg6: memref<32x32xf32, #tpu.memory_space<vmem>>, %arg7: memref<32x64xf32, #tpu.memory_space<vmem>>, %arg8: memref<1x64xf32, #tpu.memory_space<vmem>>, %arg9: memref<64x32xf32, #tpu.memory_space<vmem>>, %arg10: memref<16x32xf32, #tpu.memory_space<vmem>>) attributes {dimension_semantics = [#tpu.dimension_semantics<arbitrary>], iteration_bounds = array<i64: 1>, scalar_prefetch = 0 : i64, scratch_operands = 0 : i64, tpu.core_type = #tpu.core_type<tc>, window_params = [{pipeline_mode = #tpu.pipeline_mode<synchronous>, transform_indices = @transform_0, window_bounds = array<i64: 16, 32>}, {pipeline_mode = #tpu.pipeline_mode<synchronous>, transform_indices = @transform_1, window_bounds = array<i64: 2, 8>}, {pipeline_mode = #tpu.pipeline_mode<synchronous>, transform_indices = @transform_2, window_bounds = array<i64: 6, 32>}, {pipeline_mode = #tpu.pipeline_mode<synchronous>, transform_indices = @transform_3, window_bounds = array<i64: 32, 96>}, {pipeline_mode = #tpu.pipeline_mode<synchronous>, transform_indices = @transform_4, window_bounds = array<i64: 1, 96>}, {pipeline_mode = #tpu.pipeline_mode<synchronous>, transform_indices = @transform_5, window_bounds = array<i64: 32, 32>}, {pipeline_mode = #tpu.pipeline_mode<synchronous>, transform_indices = @transform_6, window_bounds = array<i64: 32, 64>}, {pipeline_mode = #tpu.pipeline_mode<synchronous>, transform_indices = @transform_7, window_bounds = array<i64: 1, 64>}, {pipeline_mode = #tpu.pipeline_mode<synchronous>, transform_indices = @transform_8, window_bounds = array<i64: 64, 32>}, {pipeline_mode = #tpu.pipeline_mode<synchronous>, transform_indices = @transform_9, window_bounds = array<i64: 16, 32>}]} {
    %c0 = arith.constant 0 : index
    %c0_0 = arith.constant 0 : index
    %0 = vector.load %arg1[%c0, %c0_0] : memref<16x32xf32, #tpu.memory_space<vmem>>, vector<16x32xf32>
    %c0_1 = arith.constant 0 : index
    %c0_2 = arith.constant 0 : index
    %1 = vector.load %arg3[%c0_1, %c0_2] : memref<6x32xf32, #tpu.memory_space<vmem>>, vector<1x32xf32>
    %c1 = arith.constant 1 : index
    %c0_3 = arith.constant 0 : index
    %2 = vector.load %arg3[%c1, %c0_3] : memref<6x32xf32, #tpu.memory_space<vmem>>, vector<1x32xf32>
    %c2 = arith.constant 2 : index
    %c0_4 = arith.constant 0 : index
    %3 = vector.load %arg3[%c2, %c0_4] : memref<6x32xf32, #tpu.memory_space<vmem>>, vector<1x32xf32>
    %c3 = arith.constant 3 : index
    %c0_5 = arith.constant 0 : index
    %4 = vector.load %arg3[%c3, %c0_5] : memref<6x32xf32, #tpu.memory_space<vmem>>, vector<1x32xf32>
    %c4 = arith.constant 4 : index
    %c0_6 = arith.constant 0 : index
    %5 = vector.load %arg3[%c4, %c0_6] : memref<6x32xf32, #tpu.memory_space<vmem>>, vector<1x32xf32>
    %c5 = arith.constant 5 : index
    %c0_7 = arith.constant 0 : index
    %6 = vector.load %arg3[%c5, %c0_7] : memref<6x32xf32, #tpu.memory_space<vmem>>, vector<1x32xf32>
    %cst = arith.constant dense<0.000000e+00> : vector<16xf32>
    %7 = vector.multi_reduction <add>, %0, %cst [1] : vector<16x32xf32> to vector<16xf32>
    %8 = vector.shape_cast %7 : vector<16xf32> to vector<16x1xf32>
    %cst_8 = arith.constant 3.200000e+01 : f32
    %9 = vector.broadcast %cst_8 : f32 to vector<16x1xf32>
    %10 = arith.divf %8, %9 : vector<16x1xf32>
    %11 = vector.broadcast %10 : vector<16x1xf32> to vector<16x32xf32>
    %12 = arith.subf %0, %11 : vector<16x32xf32>
    %13 = arith.mulf %12, %12 : vector<16x32xf32>
    %cst_9 = arith.constant dense<0.000000e+00> : vector<16xf32>
    %14 = vector.multi_reduction <add>, %13, %cst_9 [1] : vector<16x32xf32> to vector<16xf32>
    %15 = vector.shape_cast %14 : vector<16xf32> to vector<16x1xf32>
    %cst_10 = arith.constant 3.100000e+01 : f32
    %16 = vector.broadcast %cst_10 : f32 to vector<16x1xf32>
    %17 = arith.divf %15, %16 : vector<16x1xf32>
    %18 = math.sqrt %17 : vector<16x1xf32>
    %19 = vector.broadcast %10 : vector<16x1xf32> to vector<16x32xf32>
    %20 = arith.subf %0, %19 : vector<16x32xf32>
    %21 = vector.broadcast %1 : vector<1x32xf32> to vector<16x32xf32>
    %22 = arith.mulf %21, %20 : vector<16x32xf32>
    %cst_11 = arith.constant 9.99999997E-7 : f32
    %23 = vector.broadcast %cst_11 : f32 to vector<16x1xf32>
    %24 = arith.addf %18, %23 : vector<16x1xf32>
    %25 = vector.broadcast %24 : vector<16x1xf32> to vector<16x32xf32>
    %26 = arith.divf %22, %25 : vector<16x32xf32>
    %27 = vector.broadcast %2 : vector<1x32xf32> to vector<16x32xf32>
    %28 = arith.addf %26, %27 : vector<16x32xf32>
    %c0_12 = arith.constant 0 : index
    %c0_13 = arith.constant 0 : index
    %29 = vector.load %arg4[%c0_12, %c0_13] : memref<32x96xf32, #tpu.memory_space<vmem>>, vector<32x96xf32>
    %cst_14 = arith.constant dense<0.000000e+00> : vector<16x96xf32>
    %30 = tpu.matmul %28, %29, %cst_14 {dimension_numbers = #tpu.dot_dimension_numbers<[1], [0], [0], [1], [0, 0, 1, 1], [], []>} : vector<16x32xf32>, vector<32x96xf32>, vector<16x96xf32> -> vector<16x96xf32>
    %c0_15 = arith.constant 0 : index
    %c0_16 = arith.constant 0 : index
    %31 = vector.load %arg5[%c0_15, %c0_16] : memref<1x96xf32, #tpu.memory_space<vmem>>, vector<1x96xf32>
    %32 = vector.broadcast %31 : vector<1x96xf32> to vector<16x96xf32>
    %33 = arith.addf %30, %32 : vector<16x96xf32>
    %34 = vector.extract_strided_slice %33 {offsets = [0, 0], sizes = [16, 32], strides = [1, 1]} : vector<16x96xf32> to vector<16x32xf32>
    %35 = vector.extract_strided_slice %33 {offsets = [0, 32], sizes = [16, 32], strides = [1, 1]} : vector<16x96xf32> to vector<16x32xf32>
    %36 = vector.extract_strided_slice %33 {offsets = [0, 64], sizes = [16, 32], strides = [1, 1]} : vector<16x96xf32> to vector<16x32xf32>
    %c0_17 = arith.constant 0 : index
    %c0_18 = arith.constant 0 : index
    %37 = vector.load %arg2[%c0_17, %c0_18] : memref<2x8xf32, #tpu.memory_space<vmem>>, vector<2x8xf32>
    %cst_19 = arith.constant 0.000000e+00 : f32
    %38 = vector.broadcast %cst_19 : f32 to vector<2x8xf32>
    %39 = arith.cmpf oeq, %37, %38 : vector<2x8xf32>
    %40 = vector.extract_strided_slice %34 {offsets = [0, 0], sizes = [8, 32], strides = [1, 1]} : vector<16x32xf32> to vector<8x32xf32>
    %41 = vector.extract_strided_slice %35 {offsets = [0, 0], sizes = [8, 32], strides = [1, 1]} : vector<16x32xf32> to vector<8x32xf32>
    %42 = vector.extract_strided_slice %36 {offsets = [0, 0], sizes = [8, 32], strides = [1, 1]} : vector<16x32xf32> to vector<8x32xf32>
    %43 = vector.extract_strided_slice %39 {offsets = [0, 0], sizes = [1, 8], strides = [1, 1]} : vector<2x8xi1> to vector<1x8xi1>
    %44 = vector.extract_strided_slice %40 {offsets = [0, 0], sizes = [8, 8], strides = [1, 1]} : vector<8x32xf32> to vector<8x8xf32>
    %45 = vector.extract_strided_slice %41 {offsets = [0, 0], sizes = [8, 8], strides = [1, 1]} : vector<8x32xf32> to vector<8x8xf32>
    %46 = vector.extract_strided_slice %42 {offsets = [0, 0], sizes = [8, 8], strides = [1, 1]} : vector<8x32xf32> to vector<8x8xf32>
    %47 = tpu.transpose %45, [1, 0] : vector<8x8xf32> -> vector<8x8xf32>
    %cst_20 = arith.constant dense<0.000000e+00> : vector<8x8xf32>
    %48 = tpu.matmul %44, %47, %cst_20 {dimension_numbers = #tpu.dot_dimension_numbers<[1], [0], [0], [1], [0, 0, 1, 1], [], []>} : vector<8x8xf32>, vector<8x8xf32>, vector<8x8xf32> -> vector<8x8xf32>
    %cst_21 = arith.constant 0.353553385 : f32
    %49 = vector.broadcast %cst_21 : f32 to vector<8x8xf32>
    %50 = arith.mulf %48, %49 : vector<8x8xf32>
    %cst_22 = arith.constant -1.000000e+09 : f32
    %51 = vector.shape_cast %43 : vector<1x8xi1> to vector<1x8xi1>
    %52 = vector.broadcast %51 : vector<1x8xi1> to vector<8x8xi1>
    %53 = vector.broadcast %cst_22 : f32 to vector<8x8xf32>
    %54 = arith.select %52, %53, %50 : vector<8x8xi1>, vector<8x8xf32>
    %cst_23 = arith.constant dense<0xFF800000> : vector<8xf32>
    %55 = vector.multi_reduction <maximumf>, %54, %cst_23 [1] : vector<8x8xf32> to vector<8xf32>
    %56 = vector.shape_cast %55 : vector<8xf32> to vector<8x1xf32>
    %57 = vector.broadcast %56 : vector<8x1xf32> to vector<8x8xf32>
    %58 = arith.subf %54, %57 : vector<8x8xf32>
    %59 = math.exp %58 : vector<8x8xf32>
    %cst_24 = arith.constant dense<0.000000e+00> : vector<8xf32>
    %60 = vector.multi_reduction <add>, %59, %cst_24 [1] : vector<8x8xf32> to vector<8xf32>
    %61 = vector.shape_cast %60 : vector<8xf32> to vector<8x1xf32>
    %62 = vector.broadcast %61 : vector<8x1xf32> to vector<8x8xf32>
    %63 = arith.divf %59, %62 : vector<8x8xf32>
    %cst_25 = arith.constant dense<0.000000e+00> : vector<8x8xf32>
    %64 = tpu.matmul %63, %46, %cst_25 {dimension_numbers = #tpu.dot_dimension_numbers<[1], [0], [0], [1], [0, 0, 1, 1], [], []>} : vector<8x8xf32>, vector<8x8xf32>, vector<8x8xf32> -> vector<8x8xf32>
    %65 = vector.extract_strided_slice %40 {offsets = [0, 8], sizes = [8, 8], strides = [1, 1]} : vector<8x32xf32> to vector<8x8xf32>
    %66 = vector.extract_strided_slice %41 {offsets = [0, 8], sizes = [8, 8], strides = [1, 1]} : vector<8x32xf32> to vector<8x8xf32>
    %67 = vector.extract_strided_slice %42 {offsets = [0, 8], sizes = [8, 8], strides = [1, 1]} : vector<8x32xf32> to vector<8x8xf32>
    %68 = tpu.transpose %66, [1, 0] : vector<8x8xf32> -> vector<8x8xf32>
    %cst_26 = arith.constant dense<0.000000e+00> : vector<8x8xf32>
    %69 = tpu.matmul %65, %68, %cst_26 {dimension_numbers = #tpu.dot_dimension_numbers<[1], [0], [0], [1], [0, 0, 1, 1], [], []>} : vector<8x8xf32>, vector<8x8xf32>, vector<8x8xf32> -> vector<8x8xf32>
    %cst_27 = arith.constant 0.353553385 : f32
    %70 = vector.broadcast %cst_27 : f32 to vector<8x8xf32>
    %71 = arith.mulf %69, %70 : vector<8x8xf32>
    %cst_28 = arith.constant -1.000000e+09 : f32
    %72 = vector.shape_cast %43 : vector<1x8xi1> to vector<1x8xi1>
    %73 = vector.broadcast %72 : vector<1x8xi1> to vector<8x8xi1>
    %74 = vector.broadcast %cst_28 : f32 to vector<8x8xf32>
    %75 = arith.select %73, %74, %71 : vector<8x8xi1>, vector<8x8xf32>
    %cst_29 = arith.constant dense<0xFF800000> : vector<8xf32>
    %76 = vector.multi_reduction <maximumf>, %75, %cst_29 [1] : vector<8x8xf32> to vector<8xf32>
    %77 = vector.shape_cast %76 : vector<8xf32> to vector<8x1xf32>
    %78 = vector.broadcast %77 : vector<8x1xf32> to vector<8x8xf32>
    %79 = arith.subf %75, %78 : vector<8x8xf32>
    %80 = math.exp %79 : vector<8x8xf32>
    %cst_30 = arith.constant dense<0.000000e+00> : vector<8xf32>
    %81 = vector.multi_reduction <add>, %80, %cst_30 [1] : vector<8x8xf32> to vector<8xf32>
    %82 = vector.shape_cast %81 : vector<8xf32> to vector<8x1xf32>
    %83 = vector.broadcast %82 : vector<8x1xf32> to vector<8x8xf32>
    %84 = arith.divf %80, %83 : vector<8x8xf32>
    %cst_31 = arith.constant dense<0.000000e+00> : vector<8x8xf32>
    %85 = tpu.matmul %84, %67, %cst_31 {dimension_numbers = #tpu.dot_dimension_numbers<[1], [0], [0], [1], [0, 0, 1, 1], [], []>} : vector<8x8xf32>, vector<8x8xf32>, vector<8x8xf32> -> vector<8x8xf32>
    %86 = vector.extract_strided_slice %40 {offsets = [0, 16], sizes = [8, 8], strides = [1, 1]} : vector<8x32xf32> to vector<8x8xf32>
    %87 = vector.extract_strided_slice %41 {offsets = [0, 16], sizes = [8, 8], strides = [1, 1]} : vector<8x32xf32> to vector<8x8xf32>
    %88 = vector.extract_strided_slice %42 {offsets = [0, 16], sizes = [8, 8], strides = [1, 1]} : vector<8x32xf32> to vector<8x8xf32>
    %89 = tpu.transpose %87, [1, 0] : vector<8x8xf32> -> vector<8x8xf32>
    %cst_32 = arith.constant dense<0.000000e+00> : vector<8x8xf32>
    %90 = tpu.matmul %86, %89, %cst_32 {dimension_numbers = #tpu.dot_dimension_numbers<[1], [0], [0], [1], [0, 0, 1, 1], [], []>} : vector<8x8xf32>, vector<8x8xf32>, vector<8x8xf32> -> vector<8x8xf32>
    %cst_33 = arith.constant 0.353553385 : f32
    %91 = vector.broadcast %cst_33 : f32 to vector<8x8xf32>
    %92 = arith.mulf %90, %91 : vector<8x8xf32>
    %cst_34 = arith.constant -1.000000e+09 : f32
    %93 = vector.shape_cast %43 : vector<1x8xi1> to vector<1x8xi1>
    %94 = vector.broadcast %93 : vector<1x8xi1> to vector<8x8xi1>
    %95 = vector.broadcast %cst_34 : f32 to vector<8x8xf32>
    %96 = arith.select %94, %95, %92 : vector<8x8xi1>, vector<8x8xf32>
    %cst_35 = arith.constant dense<0xFF800000> : vector<8xf32>
    %97 = vector.multi_reduction <maximumf>, %96, %cst_35 [1] : vector<8x8xf32> to vector<8xf32>
    %98 = vector.shape_cast %97 : vector<8xf32> to vector<8x1xf32>
    %99 = vector.broadcast %98 : vector<8x1xf32> to vector<8x8xf32>
    %100 = arith.subf %96, %99 : vector<8x8xf32>
    %101 = math.exp %100 : vector<8x8xf32>
    %cst_36 = arith.constant dense<0.000000e+00> : vector<8xf32>
    %102 = vector.multi_reduction <add>, %101, %cst_36 [1] : vector<8x8xf32> to vector<8xf32>
    %103 = vector.shape_cast %102 : vector<8xf32> to vector<8x1xf32>
    %104 = vector.broadcast %103 : vector<8x1xf32> to vector<8x8xf32>
    %105 = arith.divf %101, %104 : vector<8x8xf32>
    %cst_37 = arith.constant dense<0.000000e+00> : vector<8x8xf32>
    %106 = tpu.matmul %105, %88, %cst_37 {dimension_numbers = #tpu.dot_dimension_numbers<[1], [0], [0], [1], [0, 0, 1, 1], [], []>} : vector<8x8xf32>, vector<8x8xf32>, vector<8x8xf32> -> vector<8x8xf32>
    %107 = vector.extract_strided_slice %40 {offsets = [0, 24], sizes = [8, 8], strides = [1, 1]} : vector<8x32xf32> to vector<8x8xf32>
    %108 = vector.extract_strided_slice %41 {offsets = [0, 24], sizes = [8, 8], strides = [1, 1]} : vector<8x32xf32> to vector<8x8xf32>
    %109 = vector.extract_strided_slice %42 {offsets = [0, 24], sizes = [8, 8], strides = [1, 1]} : vector<8x32xf32> to vector<8x8xf32>
    %110 = tpu.transpose %108, [1, 0] : vector<8x8xf32> -> vector<8x8xf32>
    %cst_38 = arith.constant dense<0.000000e+00> : vector<8x8xf32>
    %111 = tpu.matmul %107, %110, %cst_38 {dimension_numbers = #tpu.dot_dimension_numbers<[1], [0], [0], [1], [0, 0, 1, 1], [], []>} : vector<8x8xf32>, vector<8x8xf32>, vector<8x8xf32> -> vector<8x8xf32>
    %cst_39 = arith.constant 0.353553385 : f32
    %112 = vector.broadcast %cst_39 : f32 to vector<8x8xf32>
    %113 = arith.mulf %111, %112 : vector<8x8xf32>
    %cst_40 = arith.constant -1.000000e+09 : f32
    %114 = vector.shape_cast %43 : vector<1x8xi1> to vector<1x8xi1>
    %115 = vector.broadcast %114 : vector<1x8xi1> to vector<8x8xi1>
    %116 = vector.broadcast %cst_40 : f32 to vector<8x8xf32>
    %117 = arith.select %115, %116, %113 : vector<8x8xi1>, vector<8x8xf32>
    %cst_41 = arith.constant dense<0xFF800000> : vector<8xf32>
    %118 = vector.multi_reduction <maximumf>, %117, %cst_41 [1] : vector<8x8xf32> to vector<8xf32>
    %119 = vector.shape_cast %118 : vector<8xf32> to vector<8x1xf32>
    %120 = vector.broadcast %119 : vector<8x1xf32> to vector<8x8xf32>
    %121 = arith.subf %117, %120 : vector<8x8xf32>
    %122 = math.exp %121 : vector<8x8xf32>
    %cst_42 = arith.constant dense<0.000000e+00> : vector<8xf32>
    %123 = vector.multi_reduction <add>, %122, %cst_42 [1] : vector<8x8xf32> to vector<8xf32>
    %124 = vector.shape_cast %123 : vector<8xf32> to vector<8x1xf32>
    %125 = vector.broadcast %124 : vector<8x1xf32> to vector<8x8xf32>
    %126 = arith.divf %122, %125 : vector<8x8xf32>
    %cst_43 = arith.constant dense<0.000000e+00> : vector<8x8xf32>
    %127 = tpu.matmul %126, %109, %cst_43 {dimension_numbers = #tpu.dot_dimension_numbers<[1], [0], [0], [1], [0, 0, 1, 1], [], []>} : vector<8x8xf32>, vector<8x8xf32>, vector<8x8xf32> -> vector<8x8xf32>
    %128 = tpu.concatenate %64, %85, %106, %127 in 1 : vector<8x8xf32>, vector<8x8xf32>, vector<8x8xf32>, vector<8x8xf32> -> vector<8x32xf32>
    %129 = vector.extract_strided_slice %34 {offsets = [8, 0], sizes = [8, 32], strides = [1, 1]} : vector<16x32xf32> to vector<8x32xf32>
    %130 = vector.extract_strided_slice %35 {offsets = [8, 0], sizes = [8, 32], strides = [1, 1]} : vector<16x32xf32> to vector<8x32xf32>
    %131 = vector.extract_strided_slice %36 {offsets = [8, 0], sizes = [8, 32], strides = [1, 1]} : vector<16x32xf32> to vector<8x32xf32>
    %132 = vector.extract_strided_slice %39 {offsets = [1, 0], sizes = [1, 8], strides = [1, 1]} : vector<2x8xi1> to vector<1x8xi1>
    %133 = vector.extract_strided_slice %129 {offsets = [0, 0], sizes = [8, 8], strides = [1, 1]} : vector<8x32xf32> to vector<8x8xf32>
    %134 = vector.extract_strided_slice %130 {offsets = [0, 0], sizes = [8, 8], strides = [1, 1]} : vector<8x32xf32> to vector<8x8xf32>
    %135 = vector.extract_strided_slice %131 {offsets = [0, 0], sizes = [8, 8], strides = [1, 1]} : vector<8x32xf32> to vector<8x8xf32>
    %136 = tpu.transpose %134, [1, 0] : vector<8x8xf32> -> vector<8x8xf32>
    %cst_44 = arith.constant dense<0.000000e+00> : vector<8x8xf32>
    %137 = tpu.matmul %133, %136, %cst_44 {dimension_numbers = #tpu.dot_dimension_numbers<[1], [0], [0], [1], [0, 0, 1, 1], [], []>} : vector<8x8xf32>, vector<8x8xf32>, vector<8x8xf32> -> vector<8x8xf32>
    %cst_45 = arith.constant 0.353553385 : f32
    %138 = vector.broadcast %cst_45 : f32 to vector<8x8xf32>
    %139 = arith.mulf %137, %138 : vector<8x8xf32>
    %cst_46 = arith.constant -1.000000e+09 : f32
    %140 = vector.shape_cast %132 : vector<1x8xi1> to vector<1x8xi1>
    %141 = vector.broadcast %140 : vector<1x8xi1> to vector<8x8xi1>
    %142 = vector.broadcast %cst_46 : f32 to vector<8x8xf32>
    %143 = arith.select %141, %142, %139 : vector<8x8xi1>, vector<8x8xf32>
    %cst_47 = arith.constant dense<0xFF800000> : vector<8xf32>
    %144 = vector.multi_reduction <maximumf>, %143, %cst_47 [1] : vector<8x8xf32> to vector<8xf32>
    %145 = vector.shape_cast %144 : vector<8xf32> to vector<8x1xf32>
    %146 = vector.broadcast %145 : vector<8x1xf32> to vector<8x8xf32>
    %147 = arith.subf %143, %146 : vector<8x8xf32>
    %148 = math.exp %147 : vector<8x8xf32>
    %cst_48 = arith.constant dense<0.000000e+00> : vector<8xf32>
    %149 = vector.multi_reduction <add>, %148, %cst_48 [1] : vector<8x8xf32> to vector<8xf32>
    %150 = vector.shape_cast %149 : vector<8xf32> to vector<8x1xf32>
    %151 = vector.broadcast %150 : vector<8x1xf32> to vector<8x8xf32>
    %152 = arith.divf %148, %151 : vector<8x8xf32>
    %cst_49 = arith.constant dense<0.000000e+00> : vector<8x8xf32>
    %153 = tpu.matmul %152, %135, %cst_49 {dimension_numbers = #tpu.dot_dimension_numbers<[1], [0], [0], [1], [0, 0, 1, 1], [], []>} : vector<8x8xf32>, vector<8x8xf32>, vector<8x8xf32> -> vector<8x8xf32>
    %154 = vector.extract_strided_slice %129 {offsets = [0, 8], sizes = [8, 8], strides = [1, 1]} : vector<8x32xf32> to vector<8x8xf32>
    %155 = vector.extract_strided_slice %130 {offsets = [0, 8], sizes = [8, 8], strides = [1, 1]} : vector<8x32xf32> to vector<8x8xf32>
    %156 = vector.extract_strided_slice %131 {offsets = [0, 8], sizes = [8, 8], strides = [1, 1]} : vector<8x32xf32> to vector<8x8xf32>
    %157 = tpu.transpose %155, [1, 0] : vector<8x8xf32> -> vector<8x8xf32>
    %cst_50 = arith.constant dense<0.000000e+00> : vector<8x8xf32>
    %158 = tpu.matmul %154, %157, %cst_50 {dimension_numbers = #tpu.dot_dimension_numbers<[1], [0], [0], [1], [0, 0, 1, 1], [], []>} : vector<8x8xf32>, vector<8x8xf32>, vector<8x8xf32> -> vector<8x8xf32>
    %cst_51 = arith.constant 0.353553385 : f32
    %159 = vector.broadcast %cst_51 : f32 to vector<8x8xf32>
    %160 = arith.mulf %158, %159 : vector<8x8xf32>
    %cst_52 = arith.constant -1.000000e+09 : f32
    %161 = vector.shape_cast %132 : vector<1x8xi1> to vector<1x8xi1>
    %162 = vector.broadcast %161 : vector<1x8xi1> to vector<8x8xi1>
    %163 = vector.broadcast %cst_52 : f32 to vector<8x8xf32>
    %164 = arith.select %162, %163, %160 : vector<8x8xi1>, vector<8x8xf32>
    %cst_53 = arith.constant dense<0xFF800000> : vector<8xf32>
    %165 = vector.multi_reduction <maximumf>, %164, %cst_53 [1] : vector<8x8xf32> to vector<8xf32>
    %166 = vector.shape_cast %165 : vector<8xf32> to vector<8x1xf32>
    %167 = vector.broadcast %166 : vector<8x1xf32> to vector<8x8xf32>
    %168 = arith.subf %164, %167 : vector<8x8xf32>
    %169 = math.exp %168 : vector<8x8xf32>
    %cst_54 = arith.constant dense<0.000000e+00> : vector<8xf32>
    %170 = vector.multi_reduction <add>, %169, %cst_54 [1] : vector<8x8xf32> to vector<8xf32>
    %171 = vector.shape_cast %170 : vector<8xf32> to vector<8x1xf32>
    %172 = vector.broadcast %171 : vector<8x1xf32> to vector<8x8xf32>
    %173 = arith.divf %169, %172 : vector<8x8xf32>
    %cst_55 = arith.constant dense<0.000000e+00> : vector<8x8xf32>
    %174 = tpu.matmul %173, %156, %cst_55 {dimension_numbers = #tpu.dot_dimension_numbers<[1], [0], [0], [1], [0, 0, 1, 1], [], []>} : vector<8x8xf32>, vector<8x8xf32>, vector<8x8xf32> -> vector<8x8xf32>
    %175 = vector.extract_strided_slice %129 {offsets = [0, 16], sizes = [8, 8], strides = [1, 1]} : vector<8x32xf32> to vector<8x8xf32>
    %176 = vector.extract_strided_slice %130 {offsets = [0, 16], sizes = [8, 8], strides = [1, 1]} : vector<8x32xf32> to vector<8x8xf32>
    %177 = vector.extract_strided_slice %131 {offsets = [0, 16], sizes = [8, 8], strides = [1, 1]} : vector<8x32xf32> to vector<8x8xf32>
    %178 = tpu.transpose %176, [1, 0] : vector<8x8xf32> -> vector<8x8xf32>
    %cst_56 = arith.constant dense<0.000000e+00> : vector<8x8xf32>
    %179 = tpu.matmul %175, %178, %cst_56 {dimension_numbers = #tpu.dot_dimension_numbers<[1], [0], [0], [1], [0, 0, 1, 1], [], []>} : vector<8x8xf32>, vector<8x8xf32>, vector<8x8xf32> -> vector<8x8xf32>
    %cst_57 = arith.constant 0.353553385 : f32
    %180 = vector.broadcast %cst_57 : f32 to vector<8x8xf32>
    %181 = arith.mulf %179, %180 : vector<8x8xf32>
    %cst_58 = arith.constant -1.000000e+09 : f32
    %182 = vector.shape_cast %132 : vector<1x8xi1> to vector<1x8xi1>
    %183 = vector.broadcast %182 : vector<1x8xi1> to vector<8x8xi1>
    %184 = vector.broadcast %cst_58 : f32 to vector<8x8xf32>
    %185 = arith.select %183, %184, %181 : vector<8x8xi1>, vector<8x8xf32>
    %cst_59 = arith.constant dense<0xFF800000> : vector<8xf32>
    %186 = vector.multi_reduction <maximumf>, %185, %cst_59 [1] : vector<8x8xf32> to vector<8xf32>
    %187 = vector.shape_cast %186 : vector<8xf32> to vector<8x1xf32>
    %188 = vector.broadcast %187 : vector<8x1xf32> to vector<8x8xf32>
    %189 = arith.subf %185, %188 : vector<8x8xf32>
    %190 = math.exp %189 : vector<8x8xf32>
    %cst_60 = arith.constant dense<0.000000e+00> : vector<8xf32>
    %191 = vector.multi_reduction <add>, %190, %cst_60 [1] : vector<8x8xf32> to vector<8xf32>
    %192 = vector.shape_cast %191 : vector<8xf32> to vector<8x1xf32>
    %193 = vector.broadcast %192 : vector<8x1xf32> to vector<8x8xf32>
    %194 = arith.divf %190, %193 : vector<8x8xf32>
    %cst_61 = arith.constant dense<0.000000e+00> : vector<8x8xf32>
    %195 = tpu.matmul %194, %177, %cst_61 {dimension_numbers = #tpu.dot_dimension_numbers<[1], [0], [0], [1], [0, 0, 1, 1], [], []>} : vector<8x8xf32>, vector<8x8xf32>, vector<8x8xf32> -> vector<8x8xf32>
    %196 = vector.extract_strided_slice %129 {offsets = [0, 24], sizes = [8, 8], strides = [1, 1]} : vector<8x32xf32> to vector<8x8xf32>
    %197 = vector.extract_strided_slice %130 {offsets = [0, 24], sizes = [8, 8], strides = [1, 1]} : vector<8x32xf32> to vector<8x8xf32>
    %198 = vector.extract_strided_slice %131 {offsets = [0, 24], sizes = [8, 8], strides = [1, 1]} : vector<8x32xf32> to vector<8x8xf32>
    %199 = tpu.transpose %197, [1, 0] : vector<8x8xf32> -> vector<8x8xf32>
    %cst_62 = arith.constant dense<0.000000e+00> : vector<8x8xf32>
    %200 = tpu.matmul %196, %199, %cst_62 {dimension_numbers = #tpu.dot_dimension_numbers<[1], [0], [0], [1], [0, 0, 1, 1], [], []>} : vector<8x8xf32>, vector<8x8xf32>, vector<8x8xf32> -> vector<8x8xf32>
    %cst_63 = arith.constant 0.353553385 : f32
    %201 = vector.broadcast %cst_63 : f32 to vector<8x8xf32>
    %202 = arith.mulf %200, %201 : vector<8x8xf32>
    %cst_64 = arith.constant -1.000000e+09 : f32
    %203 = vector.shape_cast %132 : vector<1x8xi1> to vector<1x8xi1>
    %204 = vector.broadcast %203 : vector<1x8xi1> to vector<8x8xi1>
    %205 = vector.broadcast %cst_64 : f32 to vector<8x8xf32>
    %206 = arith.select %204, %205, %202 : vector<8x8xi1>, vector<8x8xf32>
    %cst_65 = arith.constant dense<0xFF800000> : vector<8xf32>
    %207 = vector.multi_reduction <maximumf>, %206, %cst_65 [1] : vector<8x8xf32> to vector<8xf32>
    %208 = vector.shape_cast %207 : vector<8xf32> to vector<8x1xf32>
    %209 = vector.broadcast %208 : vector<8x1xf32> to vector<8x8xf32>
    %210 = arith.subf %206, %209 : vector<8x8xf32>
    %211 = math.exp %210 : vector<8x8xf32>
    %cst_66 = arith.constant dense<0.000000e+00> : vector<8xf32>
    %212 = vector.multi_reduction <add>, %211, %cst_66 [1] : vector<8x8xf32> to vector<8xf32>
    %213 = vector.shape_cast %212 : vector<8xf32> to vector<8x1xf32>
    %214 = vector.broadcast %213 : vector<8x1xf32> to vector<8x8xf32>
    %215 = arith.divf %211, %214 : vector<8x8xf32>
    %cst_67 = arith.constant dense<0.000000e+00> : vector<8x8xf32>
    %216 = tpu.matmul %215, %198, %cst_67 {dimension_numbers = #tpu.dot_dimension_numbers<[1], [0], [0], [1], [0, 0, 1, 1], [], []>} : vector<8x8xf32>, vector<8x8xf32>, vector<8x8xf32> -> vector<8x8xf32>
    %217 = tpu.concatenate %153, %174, %195, %216 in 1 : vector<8x8xf32>, vector<8x8xf32>, vector<8x8xf32>, vector<8x8xf32> -> vector<8x32xf32>
    %218 = tpu.concatenate %128, %217 in 0 : vector<8x32xf32>, vector<8x32xf32> -> vector<16x32xf32>
    %c0_68 = arith.constant 0 : index
    %c0_69 = arith.constant 0 : index
    %219 = vector.load %arg6[%c0_68, %c0_69] : memref<32x32xf32, #tpu.memory_space<vmem>>, vector<32x32xf32>
    %cst_70 = arith.constant dense<0.000000e+00> : vector<16x32xf32>
    %220 = tpu.matmul %218, %219, %cst_70 {dimension_numbers = #tpu.dot_dimension_numbers<[1], [0], [0], [1], [0, 0, 1, 1], [], []>} : vector<16x32xf32>, vector<32x32xf32>, vector<16x32xf32> -> vector<16x32xf32>
    %221 = vector.broadcast %3 : vector<1x32xf32> to vector<16x32xf32>
    %222 = arith.addf %220, %221 : vector<16x32xf32>
    %223 = arith.addf %0, %222 : vector<16x32xf32>
    %cst_71 = arith.constant dense<0.000000e+00> : vector<16xf32>
    %224 = vector.multi_reduction <add>, %223, %cst_71 [1] : vector<16x32xf32> to vector<16xf32>
    %225 = vector.shape_cast %224 : vector<16xf32> to vector<16x1xf32>
    %cst_72 = arith.constant 3.200000e+01 : f32
    %226 = vector.broadcast %cst_72 : f32 to vector<16x1xf32>
    %227 = arith.divf %225, %226 : vector<16x1xf32>
    %228 = vector.broadcast %227 : vector<16x1xf32> to vector<16x32xf32>
    %229 = arith.subf %223, %228 : vector<16x32xf32>
    %230 = arith.mulf %229, %229 : vector<16x32xf32>
    %cst_73 = arith.constant dense<0.000000e+00> : vector<16xf32>
    %231 = vector.multi_reduction <add>, %230, %cst_73 [1] : vector<16x32xf32> to vector<16xf32>
    %232 = vector.shape_cast %231 : vector<16xf32> to vector<16x1xf32>
    %cst_74 = arith.constant 3.100000e+01 : f32
    %233 = vector.broadcast %cst_74 : f32 to vector<16x1xf32>
    %234 = arith.divf %232, %233 : vector<16x1xf32>
    %235 = math.sqrt %234 : vector<16x1xf32>
    %236 = vector.broadcast %227 : vector<16x1xf32> to vector<16x32xf32>
    %237 = arith.subf %223, %236 : vector<16x32xf32>
    %238 = vector.broadcast %4 : vector<1x32xf32> to vector<16x32xf32>
    %239 = arith.mulf %238, %237 : vector<16x32xf32>
    %cst_75 = arith.constant 9.99999997E-7 : f32
    %240 = vector.broadcast %cst_75 : f32 to vector<16x1xf32>
    %241 = arith.addf %235, %240 : vector<16x1xf32>
    %242 = vector.broadcast %241 : vector<16x1xf32> to vector<16x32xf32>
    %243 = arith.divf %239, %242 : vector<16x32xf32>
    %244 = vector.broadcast %5 : vector<1x32xf32> to vector<16x32xf32>
    %245 = arith.addf %243, %244 : vector<16x32xf32>
    %c0_76 = arith.constant 0 : index
    %c0_77 = arith.constant 0 : index
    %246 = vector.load %arg7[%c0_76, %c0_77] : memref<32x64xf32, #tpu.memory_space<vmem>>, vector<32x64xf32>
    %cst_78 = arith.constant dense<0.000000e+00> : vector<16x64xf32>
    %247 = tpu.matmul %245, %246, %cst_78 {dimension_numbers = #tpu.dot_dimension_numbers<[1], [0], [0], [1], [0, 0, 1, 1], [], []>} : vector<16x32xf32>, vector<32x64xf32>, vector<16x64xf32> -> vector<16x64xf32>
    %c0_79 = arith.constant 0 : index
    %c0_80 = arith.constant 0 : index
    %248 = vector.load %arg8[%c0_79, %c0_80] : memref<1x64xf32, #tpu.memory_space<vmem>>, vector<1x64xf32>
    %249 = vector.broadcast %248 : vector<1x64xf32> to vector<16x64xf32>
    %250 = arith.addf %247, %249 : vector<16x64xf32>
    %cst_81 = arith.constant 0.000000e+00 : f32
    %251 = vector.broadcast %cst_81 : f32 to vector<16x64xf32>
    %252 = arith.maximumf %250, %251 : vector<16x64xf32>
    %c0_82 = arith.constant 0 : index
    %c0_83 = arith.constant 0 : index
    %253 = vector.load %arg9[%c0_82, %c0_83] : memref<64x32xf32, #tpu.memory_space<vmem>>, vector<64x32xf32>
    %cst_84 = arith.constant dense<0.000000e+00> : vector<16x32xf32>
    %254 = tpu.matmul %252, %253, %cst_84 {dimension_numbers = #tpu.dot_dimension_numbers<[1], [0], [0], [1], [0, 0, 1, 1], [], []>} : vector<16x64xf32>, vector<64x32xf32>, vector<16x32xf32> -> vector<16x32xf32>
    %255 = vector.broadcast %6 : vector<1x32xf32> to vector<16x32xf32>
    %256 = arith.addf %254, %255 : vector<16x32xf32>
    %257 = arith.addf %223, %256 : vector<16x32xf32>
    %c0_85 = arith.constant 0 : index
    %c0_86 = arith.constant 0 : index
    %258 = vector.load %arg10[%c0_85, %c0_86] : memref<16x32xf32, #tpu.memory_space<vmem>>, vector<16x32xf32>
    tpu.vector_store %arg10[%c0_85, %c0_86], %257 {strides = array<i32>} : memref<16x32xf32, #tpu.memory_space<vmem>>, vector<16x32xf32>,
    return
  }
  func.func @transform_0(%arg0: i32) -> (i32, i32) {
    %c0_i32 = arith.constant 0 : i32
    %c0_i32_0 = arith.constant 0 : i32
    %c0_i32_1 = arith.constant 0 : i32
    return %c0_i32, %c0_i32_0 : i32, i32
  }
  func.func @transform_1(%arg0: i32) -> (i32, i32) {
    %c0_i32 = arith.constant 0 : i32
    %c0_i32_0 = arith.constant 0 : i32
    %c0_i32_1 = arith.constant 0 : i32
    return %c0_i32, %c0_i32_0 : i32, i32
  }
  func.func @transform_2(%arg0: i32) -> (i32, i32) {
    %c0_i32 = arith.constant 0 : i32
    %c0_i32_0 = arith.constant 0 : i32
    %c0_i32_1 = arith.constant 0 : i32
    return %c0_i32, %c0_i32_0 : i32, i32
  }
  func.func @transform_3(%arg0: i32) -> (i32, i32) {
    %c0_i32 = arith.constant 0 : i32
    %c0_i32_0 = arith.constant 0 : i32
    %c0_i32_1 = arith.constant 0 : i32
    return %c0_i32, %c0_i32_0 : i32, i32
  }
  func.func @transform_4(%arg0: i32) -> (i32, i32) {
    %c0_i32 = arith.constant 0 : i32
    %c0_i32_0 = arith.constant 0 : i32
    %c0_i32_1 = arith.constant 0 : i32
    return %c0_i32, %c0_i32_0 : i32, i32
  }
  func.func @transform_5(%arg0: i32) -> (i32, i32) {
    %c0_i32 = arith.constant 0 : i32
    %c0_i32_0 = arith.constant 0 : i32
    %c0_i32_1 = arith.constant 0 : i32
    return %c0_i32, %c0_i32_0 : i32, i32
  }
  func.func @transform_6(%arg0: i32) -> (i32, i32) {
    %c0_i32 = arith.constant 0 : i32
    %c0_i32_0 = arith.constant 0 : i32
    %c0_i32_1 = arith.constant 0 : i32
    return %c0_i32, %c0_i32_0 : i32, i32
  }
  func.func @transform_7(%arg0: i32) -> (i32, i32) {
    %c0_i32 = arith.constant 0 : i32
    %c0_i32_0 = arith.constant 0 : i32
    %c0_i32_1 = arith.constant 0 : i32
    return %c0_i32, %c0_i32_0 : i32, i32
  }
  func.func @transform_8(%arg0: i32) -> (i32, i32) {
    %c0_i32 = arith.constant 0 : i32
    %c0_i32_0 = arith.constant 0 : i32
    %c0_i32_1 = arith.constant 0 : i32
    return %c0_i32, %c0_i32_0 : i32, i32
  }
  func.func @transform_9(%arg0: i32) -> (i32, i32) {
    %c0_i32 = arith.constant 0 : i32
    %c0_i32_0 = arith.constant 0 : i32
    %c0_i32_1 = arith.constant 0 : i32
    return %c0_i32, %c0_i32_0 : i32, i32
  }
}

</mosaic_0001>

<llo_original>
// kernel: tpu_custom_call.1
$region0: #{tpu_custom_call.1}
  #allocation0 [shape = 'u32[]', space=smem, size = 0x4, offset = 0x4, fixed_abs, tag = 'smem constant byte address 0x4 - core index']
  #allocation1 [shape = 'u32[144,128]{1,0:T(1,128)}', space=vmem, size = 0x12000, scoped, tag = 'internal scratch']
  %s0 = inlined_call_operand.hbm [shape: f32[16,32], index: 0, kind: input, shape index: {}]
  %s1 = inlined_call_operand.hbm [shape: f32[2,8], index: 1, kind: input, shape index: {}]
  %s2 = inlined_call_operand.hbm [shape: f32[6,32], index: 2, kind: input, shape index: {}]
  %s3 = inlined_call_operand.vmem [shape: f32[32,96], index: 3, kind: input, shape index: {}]
  %s4 = inlined_call_operand.vmem [shape: f32[1,96], index: 4, kind: input, shape index: {}]
  %s5 = inlined_call_operand.vmem [shape: f32[32,32], index: 5, kind: input, shape index: {}]
  %s6 = inlined_call_operand.vmem [shape: f32[32,64], index: 6, kind: input, shape index: {}]
  %s7 = inlined_call_operand.vmem [shape: f32[1,64], index: 7, kind: input, shape index: {}]
  %s8 = inlined_call_operand.vmem [shape: f32[64,32], index: 8, kind: input, shape index: {}]
  %s9 = inlined_call_operand.hbm [shape: f32[16,32], index: 9, kind: output, shape index: {}]
  %s10 = sld [smem:[#allocation0]]
  $region58: #{tpu_custom_call.1} parent=0
    _
  %s12 = ssub.s32 1, %s10
  %s13 = scalar_select 0, %s12, %s10
  $region1: #{tpu_custom_call.1} parent=0
    #allocation2 [shape = 'u8[8192]{0}', space=vmem, size = 0x2000, scoped, tag = 'input window, operand 0, single buffered']
    #allocation3 [shape = 's32[1]{0}', space=sflag, size = 0x4, scoped, tag = 'scoped memory for tpu_custom_call.1']
    #allocation4 [shape = 's32[1]{0}', space=sflag, size = 0x4, scoped, tag = 'scoped memory for tpu_custom_call.1']
    #allocation5 [shape = 'u8[1024]{0}', space=vmem, size = 0x400, scoped, tag = 'input window, operand 1, single buffered']
    #allocation6 [shape = 's32[1]{0}', space=sflag, size = 0x4, scoped, tag = 'scoped memory for tpu_custom_call.1']
    #allocation7 [shape = 'u8[4096]{0}', space=vmem, size = 0x1000, scoped, tag = 'input window, operand 2, single buffered']
    #allocation8 [shape = 'u8[8192]{0}', space=vmem, size = 0x2000, scoped, tag = 'output window, operand 0, single buffered']
    %14 = vsyncpa [#allocation3], 0
    %15 = vsyncpa [#allocation6], 0
    %16 = vsyncpa [#allocation4], 0
    // Predicated region
    $region2: #{tpu_custom_call.1} parent=1 // pred_check
      _
    $region3: #{tpu_custom_call.1} parent=1 // pred_check_branch
      %18 = sbr.rel (0) target = $region5
    $region4: #{tpu_custom_call.1} parent=1 // pred_region
      %s20 = ssub.s32 256, 256
      %21 = vsyncadd [#allocation3], %s20
      %s22 = sshll.u32 [#allocation2], 4
      %s23 = int_to_ptr.vmem [resolvable:$true] %s22
      %28 = dma.hbm_to_vmem [thread:$0]  %s0, 256, %s23, [#allocation3], 128, 128, 8
    $region5: #{tpu_custom_call.1} parent=1 // pred_fallthru
      _
    // Predicated region
    $region6: #{tpu_custom_call.1} parent=1 // pred_check
      _
    $region7: #{tpu_custom_call.1} parent=1 // pred_check_branch
      %30 = sbr.rel (0) target = $region9
    $region8: #{tpu_custom_call.1} parent=1 // pred_region
      %s32 = ssub.s32 32, 32
      %33 = vsyncadd [#allocation6], %s32
      %s35 = sshll.u32 [#allocation5], 4
      %s36 = int_to_ptr.vmem [resolvable:$true] %s35
      %38 = dma.hbm_to_vmem [thread:$0]  %s1, 32, %s36, [#allocation6]
    $region9: #{tpu_custom_call.1} parent=1 // pred_fallthru
      _
    // Predicated region
    $region10: #{tpu_custom_call.1} parent=1 // pred_check
      _
    $region11: #{tpu_custom_call.1} parent=1 // pred_check_branch
      %40 = sbr.rel (0) target = $region13
    $region12: #{tpu_custom_call.1} parent=1 // pred_region
      %s42 = ssub.s32 128, 128
      %43 = vsyncadd [#allocation6], %s42
      %s45 = sshll.u32 [#allocation7], 4
      %s46 = int_to_ptr.vmem [resolvable:$true] %s45
      %48 = dma.hbm_to_vmem [thread:$0]  %s2, 128, %s46, [#allocation6]
    $region13: #{tpu_custom_call.1} parent=1 // pred_fallthru
      _
    // Predicated region
    $region14: #{tpu_custom_call.1} parent=1 // pred_check
      _
    $region15: #{tpu_custom_call.1} parent=1 // pred_check_branch
      %50 = sbr.rel (0) target = $region17
    $region16: #{tpu_custom_call.1} parent=1 // pred_region
      _
    $region17: #{tpu_custom_call.1} parent=1 // pred_fallthru
      _
    // Predicated region
    $region18: #{tpu_custom_call.1} parent=1 // pred_check
      _
    $region19: #{tpu_custom_call.1} parent=1 // pred_check_branch
      %52 = sbr.rel (0) target = $region21
    $region20: #{tpu_custom_call.1} parent=1 // pred_region
      _
    $region21: #{tpu_custom_call.1} parent=1 // pred_fallthru
      _
    // Predicated region
    $region22: #{tpu_custom_call.1} parent=1 // pred_check
      _
    $region23: #{tpu_custom_call.1} parent=1 // pred_check_branch
      %54 = sbr.rel (0) target = $region25
    $region24: #{tpu_custom_call.1} parent=1 // pred_region
      _
    $region25: #{tpu_custom_call.1} parent=1 // pred_fallthru
      _
    // Predicated region
    $region26: #{tpu_custom_call.1} parent=1 // pred_check
      _
    $region27: #{tpu_custom_call.1} parent=1 // pred_check_branch
      %56 = sbr.rel (0) target = $region29
    $region28: #{tpu_custom_call.1} parent=1 // pred_region
      _
    $region29: #{tpu_custom_call.1} parent=1 // pred_fallthru
      _
    // Predicated region
    $region30: #{tpu_custom_call.1} parent=1 // pred_check
      _
    $region31: #{tpu_custom_call.1} parent=1 // pred_check_branch
      %58 = sbr.rel (0) target = $region33
    $region32: #{tpu_custom_call.1} parent=1 // pred_region
      _
    $region33: #{tpu_custom_call.1} parent=1 // pred_fallthru
      _
    // Predicated region
    $region34: #{tpu_custom_call.1} parent=1 // pred_check
      _
    $region35: #{tpu_custom_call.1} parent=1 // pred_check_branch
      %60 = sbr.rel (0) target = $region37
    $region36: #{tpu_custom_call.1} parent=1 // pred_region
      _
    $region37: #{tpu_custom_call.1} parent=1 // pred_fallthru
      _
    // Predicated region
    $region38: #{tpu_custom_call.1} parent=1 // pred_check
      _
    $region39: #{tpu_custom_call.1} parent=1 // pred_check_branch
      %62 = sbr.rel (0) target = $region41
    $region40: #{tpu_custom_call.1} parent=1 // pred_region
      %63 = dma.done [#allocation3], 256
    $region41: #{tpu_custom_call.1} parent=1 // pred_fallthru
      _
    // Predicated region
    $region42: #{tpu_custom_call.1} parent=1 // pred_check
      _
    $region43: #{tpu_custom_call.1} parent=1 // pred_check_branch
      %65 = sbr.rel (0) target = $region45
    $region44: #{tpu_custom_call.1} parent=1 // pred_region
      %66 = dma.done [#allocation6], 32
    $region45: #{tpu_custom_call.1} parent=1 // pred_fallthru
      _
    // Predicated region
    $region46: #{tpu_custom_call.1} parent=1 // pred_check
      _
    $region47: #{tpu_custom_call.1} parent=1 // pred_check_branch
      %68 = sbr.rel (0) target = $region49
    $region48: #{tpu_custom_call.1} parent=1 // pred_region
      %69 = dma.done [#allocation6], 128
    $region49: #{tpu_custom_call.1} parent=1 // pred_fallthru
      _
    %v70 = vld [vmem:[#allocation2] sm:$0xff]
    %v71 = vld [vmem:[#allocation2 + $0x8] sm:$0xff]
    %v72 = vld [vmem:[#allocation7] sm:$0x1]
    %v73 = vld [vmem:[#allocation7 + $0x1] sm:$0x1]
    %v74 = vld [vmem:[#allocation7 + $0x2] sm:$0x1]
    %v75 = vld [vmem:[#allocation7 + $0x3] sm:$0x1]
    %v76 = vld [vmem:[#allocation7 + $0x4] sm:$0x1]
    %v77 = vld [vmem:[#allocation7 + $0x5] sm:$0x1]
    %vm78 = vcmask 261120
    %v79 = vsel %vm78, %v70, 0.0
    %80 = vadd.xlane.f32.xlu0 %v79
    %v81 = vpop.xlane.xlu0 %80
    %v82 = vsel %vm78, %v71, 0.0
    %83 = vadd.xlane.f32.xlu0 %v82
    %v84 = vpop.xlane.xlu0 %83
    %v85 = vrcp.pop 32.0
    %v86 = vmul.f32 %v81, %v85
    %v87 = vmul.f32 %v84, %v85
    %v88 = vsub.f32 %v70, %v86
    %v89 = vsub.f32 %v71, %v87
    %v90 = vmul.f32 %v88, %v88
    %v91 = vmul.f32 %v89, %v89
    %v92 = vsel %vm78, %v90, 0.0
    %93 = vadd.xlane.f32.xlu0 %v92
    %v94 = vpop.xlane.xlu0 %93
    %v95 = vsel %vm78, %v91, 0.0
    %96 = vadd.xlane.f32.xlu0 %v95
    %v97 = vpop.xlane.xlu0 %96
    %v98 = vrcp.pop 31.0
    %v99 = vmul.f32 %v94, %v98
    %v100 = vmul.f32 %v97, %v98
    %v101 = vrsqrt.pop %v99
    %v102 = vmul.f32 %v99, %v101
    %vm103 = vcmp.eq.f32.partialorder %v99, inf
    %v104 = vsel %vm103, %v99, %v102
    %vm105 = vcmp.eq.f32.partialorder %v99, 0.0
    %v106 = vand.u32 %v99, 2147483648
    %v107 = vsel %vm105, %v106, %v104
    %v108 = vrsqrt.pop %v100
    %v109 = vmul.f32 %v100, %v108
    %vm110 = vcmp.eq.f32.partialorder %v100, inf
    %v111 = vsel %vm110, %v100, %v109
    %vm112 = vcmp.eq.f32.partialorder %v100, 0.0
    %v113 = vand.u32 %v100, 2147483648
    %v114 = vsel %vm112, %v113, %v111
    %v115 = vlaneseq
    %v116 = vshrl.u32 %v115, 7
    %v117 = vsub.s32 0, %v116
    %v118 = vrot.slane %v72, %v117
    %v119 = vmul.f32 %v118, %v88
    %v120 = vmul.f32 %v118, %v89
    %v121 = vadd.f32 %v107, 1e-06
    %v122 = vadd.f32 %v114, 1e-06
    %v123 = vrcp.pop %v121
    %v124 = vmul.f32 %v119, %v123
    %v125 = vrcp.pop %v122
    %v126 = vmul.f32 %v120, %v125
    %v127 = vlaneseq
    %v128 = vshrl.u32 %v127, 7
    %v129 = vsub.s32 0, %v128
    %v130 = vrot.slane %v73, %v129
    %v131 = vadd.f32 %v124, %v130
    %v132 = vadd.f32 %v126, %v130
    %v133 = vld [vmem:[%s3] sm:$0xff]
    %v134 = vld [vmem:[%s3 + $0x8] sm:$0xff]
    %v135 = vld [vmem:[%s3 + $0x10] sm:$0xff]
    %v136 = vld [vmem:[%s3 + $0x18] sm:$0xff]
    %v137 = vld [vmem:[%s4] sm:$0x1]
    %v139 = vlaneseq
    %v140 = vshrl.u32 %v139, 7
    %v141 = vsub.s32 0, %v140
    %v142 = vrot.slane %v137, %v141
    %v145 = vsel %vm78, %v131, 0
    %v148 = vsel %vm78, %v132, 0
    %150 = vmatprep.subr.mxu0 0.0
    %151 = vmatpush1.msra.mxu0 0.0
    %152 = vmatprep.subr.mxu0 0.0
    %153 = vmatpush1.msra.mxu0 0.0
    %154 = vmatprep.subr.mxu0 0.0
    %155 = vmatpush1.msra.mxu0 0.0
    %156 = vmatprep.subr.mxu0 0.0
    %157 = vmatpush1.msra.mxu0 0.0
    %158 = vmatprep.subr.mxu0 0.0
    %159 = vmatpush1.msra.mxu0 0.0
    %160 = vmatprep.subr.mxu0 0.0
    %161 = vmatpush1.msra.mxu0 0.0
    %162 = vmatprep.subr.mxu0 0.0
    %163 = vmatpush1.msra.mxu0 0.0
    %164 = vmatprep.subr.mxu0 0.0
    %165 = vmatpush1.msra.mxu0 0.0
    %166 = vmatprep.subr.mxu0 0.0
    %167 = vmatpush1.msra.mxu0 0.0
    %168 = vmatprep.subr.mxu0 0.0
    %169 = vmatpush1.msra.mxu0 0.0
    %170 = vmatprep.subr.mxu0 0.0
    %171 = vmatpush1.msra.mxu0 0.0
    %172 = vmatprep.subr.mxu0 0.0
    %173 = vmatpush1.msra.mxu0 0.0
    %174 = vmatprep.subr.mxu0 0.0
    %175 = vmatpush1.msra.mxu0 %v136
    %176 = vmatprep.subr.mxu0 0.0
    %177 = vmatpush1.msra.mxu0 %v135
    %178 = vmatprep.subr.mxu0 0.0
    %179 = vmatpush1.msra.mxu0 %v134
    %180 = vmatprep.subr.mxu0 0.0
    %181 = vmatpush1.msra.mxu0 %v133
    %182 = vmatprep.subr.mxu0 0.0
    %183 = vmatpush2.msra.mxu0 0.0
    %184 = vmatprep.subr.mxu0 0.0
    %185 = vmatpush2.msra.mxu0 0.0
    %186 = vmatprep.subr.mxu0 0.0
    %187 = vmatpush2.msra.mxu0 0.0
    %188 = vmatprep.subr.mxu0 0.0
    %189 = vmatpush2.msra.mxu0 0.0
    %190 = vmatprep.subr.mxu0 0.0
    %191 = vmatpush2.msra.mxu0 0.0
    %192 = vmatprep.subr.mxu0 0.0
    %193 = vmatpush2.msra.mxu0 0.0
    %194 = vmatprep.subr.mxu0 0.0
    %195 = vmatpush2.msra.mxu0 0.0
    %196 = vmatprep.subr.mxu0 0.0
    %197 = vmatpush2.msra.mxu0 0.0
    %198 = vmatprep.subr.mxu0 0.0
    %199 = vmatpush2.msra.mxu0 0.0
    %200 = vmatprep.subr.mxu0 0.0
    %201 = vmatpush2.msra.mxu0 0.0
    %202 = vmatprep.subr.mxu0 0.0
    %203 = vmatpush2.msra.mxu0 0.0
    %204 = vmatprep.subr.mxu0 0.0
    %205 = vmatpush2.msra.mxu0 0.0
    %206 = vmatprep.subr.mxu0 0.0
    %207 = vmatpush2.msra.mxu0 0.0
    %208 = vmatprep.subr.mxu0 0.0
    %209 = vmatpush2.msra.mxu0 0.0
    %210 = vmatprep.subr.mxu0 0.0
    %211 = vmatpush2.msra.mxu0 0.0
    %212 = vmatprep.subr.mxu0 0.0
    %213 = vmatpush2.msra.mxu0 0.0
    %214 = vmatprep.mubr.f32.mxu0 0.0
    %215 = vmatmul.mubr.f32.gmra.mxu0 %v145
    %v216 = vpop.f32.mrf.mxu0
    %v217 = vadd.f32 %v142, %v216
    %v218 = vpop.f32.mrf.mxu0
    %219 = vmatprep.mubr.f32.mxu0 0.0
    %220 = vmatmul.mubr.f32.gmra.mxu0 %v148
    %v221 = vpop.f32.mrf.mxu0
    %v222 = vadd.f32 %v142, %v221
    %v223 = vpop.f32.mrf.mxu0
    %224 = vdwg.mxu0
    %v225 = vld [vmem:[#allocation5] sm:$0x3]
    %vm226 = vcmp.eq.f32.partialorder %v225, 0.0
    %228 = vrot.lane.b32.xlu0 %v217, 96
    %v229 = vpop.permute.xlu0 %228
    %vm230 = vcmask 64512
    %v231 = vsel %vm230, %v217, 0
    %v233 = vsel %vm230, %v229, 0
    %235 = vmatprep.subr.mxu0 0.0
    %236 = vmatpush1.xpose.msra.mxu0 0.0
    %237 = vmatprep.subr.mxu0 0.0
    %238 = vmatpush1.xpose.msra.mxu0 0.0
    %239 = vmatprep.subr.mxu0 0.0
    %240 = vmatpush1.xpose.msra.mxu0 0.0
    %241 = vmatprep.subr.mxu0 0.0
    %242 = vmatpush1.xpose.msra.mxu0 0.0
    %243 = vmatprep.subr.mxu0 0.0
    %244 = vmatpush1.xpose.msra.mxu0 0.0
    %245 = vmatprep.subr.mxu0 0.0
    %246 = vmatpush1.xpose.msra.mxu0 0.0
    %247 = vmatprep.subr.mxu0 0.0
    %248 = vmatpush1.xpose.msra.mxu0 0.0
    %249 = vmatprep.subr.mxu0 0.0
    %250 = vmatpush1.xpose.msra.mxu0 0.0
    %251 = vmatprep.subr.mxu0 0.0
    %252 = vmatpush1.xpose.msra.mxu0 0.0
    %253 = vmatprep.subr.mxu0 0.0
    %254 = vmatpush1.xpose.msra.mxu0 0.0
    %255 = vmatprep.subr.mxu0 0.0
    %256 = vmatpush1.xpose.msra.mxu0 0.0
    %257 = vmatprep.subr.mxu0 0.0
    %258 = vmatpush1.xpose.msra.mxu0 0.0
    %259 = vmatprep.subr.mxu0 0.0
    %260 = vmatpush1.xpose.msra.mxu0 0.0
    %261 = vmatprep.subr.mxu0 0.0
    %262 = vmatpush1.xpose.msra.mxu0 0.0
    %263 = vmatprep.subr.mxu0 0.0
    %264 = vmatpush1.xpose.msra.mxu0 0.0
    %265 = vmatprep.subr.mxu0 0.0
    %266 = vmatpush1.xpose.msra.mxu0 %v233
    %267 = vmatprep.subr.mxu0 0.0
    %268 = vmatpush2.xpose.msra.mxu0 0.0
    %269 = vmatprep.subr.mxu0 0.0
    %270 = vmatpush2.xpose.msra.mxu0 0.0
    %271 = vmatprep.subr.mxu0 0.0
    %272 = vmatpush2.xpose.msra.mxu0 0.0
    %273 = vmatprep.subr.mxu0 0.0
    %274 = vmatpush2.xpose.msra.mxu0 0.0
    %275 = vmatprep.subr.mxu0 0.0
    %276 = vmatpush2.xpose.msra.mxu0 0.0
    %277 = vmatprep.subr.mxu0 0.0
    %278 = vmatpush2.xpose.msra.mxu0 0.0
    %279 = vmatprep.subr.mxu0 0.0
    %280 = vmatpush2.xpose.msra.mxu0 0.0
    %281 = vmatprep.subr.mxu0 0.0
    %282 = vmatpush2.xpose.msra.mxu0 0.0
    %283 = vmatprep.subr.mxu0 0.0
    %284 = vmatpush2.xpose.msra.mxu0 0.0
    %285 = vmatprep.subr.mxu0 0.0
    %286 = vmatpush2.xpose.msra.mxu0 0.0
    %287 = vmatprep.subr.mxu0 0.0
    %288 = vmatpush2.xpose.msra.mxu0 0.0
    %289 = vmatprep.subr.mxu0 0.0
    %290 = vmatpush2.xpose.msra.mxu0 0.0
    %291 = vmatprep.subr.mxu0 0.0
    %292 = vmatpush2.xpose.msra.mxu0 0.0
    %293 = vmatprep.subr.mxu0 0.0
    %294 = vmatpush2.xpose.msra.mxu0 0.0
    %295 = vmatprep.subr.mxu0 0.0
    %296 = vmatpush2.xpose.msra.mxu0 0.0
    %297 = vmatprep.subr.mxu0 0.0
    %298 = vmatpush2.xpose.msra.mxu0 0.0
    %299 = vmatprep.mubr.f32.mxu0 0.0
    %300 = vmatmul.mubr.f32.gmra.mxu0 %v231
    %v301 = vpop.f32.mrf.mxu0
    %v302 = vadd.f32 0.0, %v301
    %v303 = vpop.f32.mrf.mxu0
    %304 = vdwg.mxu0
    %v305 = vmul.f32 %v302, 0.35355338
    %v306 = vsel %vm226, 1, 0
    %vm307 = vcmp.eq.s32.totalorder %v306, 1
    %v309 = vrot.slane %v305, 1
    %v310 = vrot.slane %v305, 2
    %v311 = vrot.slane %v305, 3
    %v312 = vrot.slane %v305, 4
    %v313 = vrot.slane %v305, 5
    %v314 = vrot.slane %v305, 6
    %v315 = vrot.slane %v305, 7
    %v324 = vsel %vm307, -1e+09, %v305
    %v325 = vsel %vm307, -1e+09, %v309
    %v326 = vsel %vm307, -1e+09, %v310
    %v327 = vsel %vm307, -1e+09, %v311
    %v328 = vsel %vm307, -1e+09, %v312
    %v329 = vsel %vm307, -1e+09, %v313
    %v330 = vsel %vm307, -1e+09, %v314
    %v331 = vsel %vm307, -1e+09, %v315
    %v340 = vrot.slane %v325, 7
    %vm341 = vcmask 1041409
    %v342 = vsel %vm341, %v340, %v324
    %v343 = vrot.slane %v326, 6
    %vm344 = vcmask 1042434
    %v345 = vsel %vm344, %v343, %v342
    %v346 = vrot.slane %v327, 5
    %vm347 = vcmask 1043459
    %v348 = vsel %vm347, %v346, %v345
    %v349 = vrot.slane %v328, 4
    %vm350 = vcmask 1044484
    %v351 = vsel %vm350, %v349, %v348
    %v352 = vrot.slane %v329, 3
    %vm353 = vcmask 1045509
    %v354 = vsel %vm353, %v352, %v351
    %v355 = vrot.slane %v330, 2
    %vm356 = vcmask 1046534
    %v357 = vsel %vm356, %v355, %v354
    %v358 = vrot.slane %v331, 1
    %vm359 = vcmask 1047559
    %v360 = vsel %vm359, %v358, %v357
    %v362 = vsel %vm230, %v360, -inf
    %363 = vmax.xlane.f32.xlu0 %v362
    %v364 = vpop.xlane.xlu0 %363
    %v366 = vrot.slane %v364, 1
    %v367 = vrot.slane %v364, 2
    %v368 = vrot.slane %v364, 3
    %v369 = vrot.slane %v364, 4
    %v370 = vrot.slane %v364, 5
    %v371 = vrot.slane %v364, 6
    %v372 = vrot.slane %v364, 7
    %v381 = vsub.f32 %v324, %v364
    %v382 = vsub.f32 %v325, %v366
    %v383 = vsub.f32 %v326, %v367
    %v384 = vsub.f32 %v327, %v368
    %v385 = vsub.f32 %v328, %v369
    %v386 = vsub.f32 %v329, %v370
    %v387 = vsub.f32 %v330, %v371
    %v388 = vsub.f32 %v331, %v372
    %v389 = vmul.f32 %v381, 1.442695
    %v390 = vpow.pop %v389
    %v391 = vmul.f32 %v382, 1.442695
    %v392 = vpow.pop %v391
    %v393 = vmul.f32 %v383, 1.442695
    %v394 = vpow.pop %v393
    %v395 = vmul.f32 %v384, 1.442695
    %v396 = vpow.pop %v395
    %v397 = vmul.f32 %v385, 1.442695
    %v398 = vpow.pop %v397
    %v399 = vmul.f32 %v386, 1.442695
    %v400 = vpow.pop %v399
    %v401 = vmul.f32 %v387, 1.442695
    %v402 = vpow.pop %v401
    %v403 = vmul.f32 %v388, 1.442695
    %v404 = vpow.pop %v403
    %v413 = vrot.slane %v392, 7
    %v414 = vsel %vm341, %v413, %v390
    %v415 = vrot.slane %v394, 6
    %v416 = vsel %vm344, %v415, %v414
    %v417 = vrot.slane %v396, 5
    %v418 = vsel %vm347, %v417, %v416
    %v419 = vrot.slane %v398, 4
    %v420 = vsel %vm350, %v419, %v418
    %v421 = vrot.slane %v400, 3
    %v422 = vsel %vm353, %v421, %v420
    %v423 = vrot.slane %v402, 2
    %v424 = vsel %vm356, %v423, %v422
    %v425 = vrot.slane %v404, 1
    %v426 = vsel %vm359, %v425, %v424
    %v428 = vsel %vm230, %v426, 0.0
    %429 = vadd.xlane.f32.xlu0 %v428
    %v430 = vpop.xlane.xlu0 %429
    %v432 = vrot.slane %v430, 1
    %v433 = vrot.slane %v430, 2
    %v434 = vrot.slane %v430, 3
    %v435 = vrot.slane %v430, 4
    %v436 = vrot.slane %v430, 5
    %v437 = vrot.slane %v430, 6
    %v438 = vrot.slane %v430, 7
    %v447 = vrcp.pop %v430
    %v448 = vmul.f32 %v390, %v447
    %v449 = vrcp.pop %v432
    %v450 = vmul.f32 %v392, %v449
    %v451 = vrcp.pop %v433
    %v452 = vmul.f32 %v394, %v451
    %v453 = vrcp.pop %v434
    %v454 = vmul.f32 %v396, %v453
    %v455 = vrcp.pop %v435
    %v456 = vmul.f32 %v398, %v455
    %v457 = vrcp.pop %v436
    %v458 = vmul.f32 %v400, %v457
    %v459 = vrcp.pop %v437
    %v460 = vmul.f32 %v402, %v459
    %v461 = vrcp.pop %v438
    %v462 = vmul.f32 %v404, %v461
    %v471 = vrot.slane %v450, 7
    %v472 = vsel %vm341, %v471, %v448
    %v473 = vrot.slane %v452, 6
    %v474 = vsel %vm344, %v473, %v472
    %v475 = vrot.slane %v454, 5
    %v476 = vsel %vm347, %v475, %v474
    %v477 = vrot.slane %v456, 4
    %v478 = vsel %vm350, %v477, %v476
    %v479 = vrot.slane %v458, 3
    %v480 = vsel %vm353, %v479, %v478
    %v481 = vrot.slane %v460, 2
    %v482 = vsel %vm356, %v481, %v480
    %v483 = vrot.slane %v462, 1
    %v484 = vsel %vm359, %v483, %v482
    %485 = vrot.lane.b32.xlu0 %v217, 64
    %v486 = vpop.permute.xlu0 %485
    %v488 = vsel %vm230, %v484, 0
    %490 = vmatprep.subr.mxu0 0.0
    %491 = vmatpush1.msra.mxu0 0.0
    %492 = vmatprep.subr.mxu0 0.0
    %493 = vmatpush1.msra.mxu0 0.0
    %494 = vmatprep.subr.mxu0 0.0
    %495 = vmatpush1.msra.mxu0 0.0
    %496 = vmatprep.subr.mxu0 0.0
    %497 = vmatpush1.msra.mxu0 0.0
    %498 = vmatprep.subr.mxu0 0.0
    %499 = vmatpush1.msra.mxu0 0.0
    %500 = vmatprep.subr.mxu0 0.0
    %501 = vmatpush1.msra.mxu0 0.0
    %502 = vmatprep.subr.mxu0 0.0
    %503 = vmatpush1.msra.mxu0 0.0
    %504 = vmatprep.subr.mxu0 0.0
    %505 = vmatpush1.msra.mxu0 0.0
    %506 = vmatprep.subr.mxu0 0.0
    %507 = vmatpush1.msra.mxu0 0.0
    %508 = vmatprep.subr.mxu0 0.0
    %509 = vmatpush1.msra.mxu0 0.0
    %510 = vmatprep.subr.mxu0 0.0
    %511 = vmatpush1.msra.mxu0 0.0
    %512 = vmatprep.subr.mxu0 0.0
    %513 = vmatpush1.msra.mxu0 0.0
    %514 = vmatprep.subr.mxu0 0.0
    %515 = vmatpush1.msra.mxu0 0.0
    %516 = vmatprep.subr.mxu0 0.0
    %517 = vmatpush1.msra.mxu0 0.0
    %518 = vmatprep.subr.mxu0 0.0
    %519 = vmatpush1.msra.mxu0 0.0
    %520 = vmatprep.subr.mxu0 0.0
    %521 = vmatpush1.msra.mxu0 %v486
    %522 = vmatprep.subr.mxu0 0.0
    %523 = vmatpush2.msra.mxu0 0.0
    %524 = vmatprep.subr.mxu0 0.0
    %525 = vmatpush2.msra.mxu0 0.0
    %526 = vmatprep.subr.mxu0 0.0
    %527 = vmatpush2.msra.mxu0 0.0
    %528 = vmatprep.subr.mxu0 0.0
    %529 = vmatpush2.msra.mxu0 0.0
    %530 = vmatprep.subr.mxu0 0.0
    %531 = vmatpush2.msra.mxu0 0.0
    %532 = vmatprep.subr.mxu0 0.0
    %533 = vmatpush2.msra.mxu0 0.0
    %534 = vmatprep.subr.mxu0 0.0
    %535 = vmatpush2.msra.mxu0 0.0
    %536 = vmatprep.subr.mxu0 0.0
    %537 = vmatpush2.msra.mxu0 0.0
    %538 = vmatprep.subr.mxu0 0.0
    %539 = vmatpush2.msra.mxu0 0.0
    %540 = vmatprep.subr.mxu0 0.0
    %541 = vmatpush2.msra.mxu0 0.0
    %542 = vmatprep.subr.mxu0 0.0
    %543 = vmatpush2.msra.mxu0 0.0
    %544 = vmatprep.subr.mxu0 0.0
    %545 = vmatpush2.msra.mxu0 0.0
    %546 = vmatprep.subr.mxu0 0.0
    %547 = vmatpush2.msra.mxu0 0.0
    %548 = vmatprep.subr.mxu0 0.0
    %549 = vmatpush2.msra.mxu0 0.0
    %550 = vmatprep.subr.mxu0 0.0
    %551 = vmatpush2.msra.mxu0 0.0
    %552 = vmatprep.subr.mxu0 0.0
    %553 = vmatpush2.msra.mxu0 0.0
    %554 = vmatprep.mubr.f32.mxu0 0.0
    %555 = vmatmul.mubr.f32.gmra.mxu0 %v488
    %v556 = vpop.f32.mrf.mxu0
    %v557 = vadd.f32 0.0, %v556
    %v558 = vpop.f32.mrf.mxu0
    %559 = vdwg.mxu0
    %560 = vrot.lane.b32.xlu0 %v217, 120
    %v561 = vpop.permute.xlu0 %560
    %562 = vrot.lane.b32.xlu0 %v217, 88
    %v563 = vpop.permute.xlu0 %562
    %v564 = vsel %vm230, %v561, 0
    %v566 = vsel %vm230, %v563, 0
    %568 = vmatprep.subr.mxu0 0.0
    %569 = vmatpush1.xpose.msra.mxu0 0.0
    %570 = vmatprep.subr.mxu0 0.0
    %571 = vmatpush1.xpose.msra.mxu0 0.0
    %572 = vmatprep.subr.mxu0 0.0
    %573 = vmatpush1.xpose.msra.mxu0 0.0
    %574 = vmatprep.subr.mxu0 0.0
    %575 = vmatpush1.xpose.msra.mxu0 0.0
    %576 = vmatprep.subr.mxu0 0.0
    %577 = vmatpush1.xpose.msra.mxu0 0.0
    %578 = vmatprep.subr.mxu0 0.0
    %579 = vmatpush1.xpose.msra.mxu0 0.0
    %580 = vmatprep.subr.mxu0 0.0
    %581 = vmatpush1.xpose.msra.mxu0 0.0
    %582 = vmatprep.subr.mxu0 0.0
    %583 = vmatpush1.xpose.msra.mxu0 0.0
    %584 = vmatprep.subr.mxu0 0.0
    %585 = vmatpush1.xpose.msra.mxu0 0.0
    %586 = vmatprep.subr.mxu0 0.0
    %587 = vmatpush1.xpose.msra.mxu0 0.0
    %588 = vmatprep.subr.mxu0 0.0
    %589 = vmatpush1.xpose.msra.mxu0 0.0
    %590 = vmatprep.subr.mxu0 0.0
    %591 = vmatpush1.xpose.msra.mxu0 0.0
    %592 = vmatprep.subr.mxu0 0.0
    %593 = vmatpush1.xpose.msra.mxu0 0.0
    %594 = vmatprep.subr.mxu0 0.0
    %595 = vmatpush1.xpose.msra.mxu0 0.0
    %596 = vmatprep.subr.mxu0 0.0
    %597 = vmatpush1.xpose.msra.mxu0 0.0
    %598 = vmatprep.subr.mxu0 0.0
    %599 = vmatpush1.xpose.msra.mxu0 %v566
    %600 = vmatprep.subr.mxu0 0.0
    %601 = vmatpush2.xpose.msra.mxu0 0.0
    %602 = vmatprep.subr.mxu0 0.0
    %603 = vmatpush2.xpose.msra.mxu0 0.0
    %604 = vmatprep.subr.mxu0 0.0
    %605 = vmatpush2.xpose.msra.mxu0 0.0
    %606 = vmatprep.subr.mxu0 0.0
    %607 = vmatpush2.xpose.msra.mxu0 0.0
    %608 = vmatprep.subr.mxu0 0.0
    %609 = vmatpush2.xpose.msra.mxu0 0.0
    %610 = vmatprep.subr.mxu0 0.0
    %611 = vmatpush2.xpose.msra.mxu0 0.0
    %612 = vmatprep.subr.mxu0 0.0
    %613 = vmatpush2.xpose.msra.mxu0 0.0
    %614 = vmatprep.subr.mxu0 0.0
    %615 = vmatpush2.xpose.msra.mxu0 0.0
    %616 = vmatprep.subr.mxu0 0.0
    %617 = vmatpush2.xpose.msra.mxu0 0.0
    %618 = vmatprep.subr.mxu0 0.0
    %619 = vmatpush2.xpose.msra.mxu0 0.0
    %620 = vmatprep.subr.mxu0 0.0
    %621 = vmatpush2.xpose.msra.mxu0 0.0
    %622 = vmatprep.subr.mxu0 0.0
    %623 = vmatpush2.xpose.msra.mxu0 0.0
    %624 = vmatprep.subr.mxu0 0.0
    %625 = vmatpush2.xpose.msra.mxu0 0.0
    %626 = vmatprep.subr.mxu0 0.0
    %627 = vmatpush2.xpose.msra.mxu0 0.0
    %628 = vmatprep.subr.mxu0 0.0
    %629 = vmatpush2.xpose.msra.mxu0 0.0
    %630 = vmatprep.subr.mxu0 0.0
    %631 = vmatpush2.xpose.msra.mxu0 0.0
    %632 = vmatprep.mubr.f32.mxu0 0.0
    %633 = vmatmul.mubr.f32.gmra.mxu0 %v564
    %v634 = vpop.f32.mrf.mxu0
    %v635 = vadd.f32 0.0, %v634
    %v636 = vpop.f32.mrf.mxu0
    %637 = vdwg.mxu0
    %v638 = vmul.f32 %v635, 0.35355338
    %v640 = vrot.slane %v638, 1
    %v641 = vrot.slane %v638, 2
    %v642 = vrot.slane %v638, 3
    %v643 = vrot.slane %v638, 4
    %v644 = vrot.slane %v638, 5
    %v645 = vrot.slane %v638, 6
    %v646 = vrot.slane %v638, 7
    %v655 = vsel %vm307, -1e+09, %v638
    %v656 = vsel %vm307, -1e+09, %v640
    %v657 = vsel %vm307, -1e+09, %v641
    %v658 = vsel %vm307, -1e+09, %v642
    %v659 = vsel %vm307, -1e+09, %v643
    %v660 = vsel %vm307, -1e+09, %v644
    %v661 = vsel %vm307, -1e+09, %v645
    %v662 = vsel %vm307, -1e+09, %v646
    %v671 = vrot.slane %v656, 7
    %v672 = vsel %vm341, %v671, %v655
    %v673 = vrot.slane %v657, 6
    %v674 = vsel %vm344, %v673, %v672
    %v675 = vrot.slane %v658, 5
    %v676 = vsel %vm347, %v675, %v674
    %v677 = vrot.slane %v659, 4
    %v678 = vsel %vm350, %v677, %v676
    %v679 = vrot.slane %v660, 3
    %v680 = vsel %vm353, %v679, %v678
    %v681 = vrot.slane %v661, 2
    %v682 = vsel %vm356, %v681, %v680
    %v683 = vrot.slane %v662, 1
    %v684 = vsel %vm359, %v683, %v682
    %v686 = vsel %vm230, %v684, -inf
    %687 = vmax.xlane.f32.xlu0 %v686
    %v688 = vpop.xlane.xlu0 %687
    %v690 = vrot.slane %v688, 1
    %v691 = vrot.slane %v688, 2
    %v692 = vrot.slane %v688, 3
    %v693 = vrot.slane %v688, 4
    %v694 = vrot.slane %v688, 5
    %v695 = vrot.slane %v688, 6
    %v696 = vrot.slane %v688, 7
    %v705 = vsub.f32 %v655, %v688
    %v706 = vsub.f32 %v656, %v690
    %v707 = vsub.f32 %v657, %v691
    %v708 = vsub.f32 %v658, %v692
    %v709 = vsub.f32 %v659, %v693
    %v710 = vsub.f32 %v660, %v694
    %v711 = vsub.f32 %v661, %v695
    %v712 = vsub.f32 %v662, %v696
    %v713 = vmul.f32 %v705, 1.442695
    %v714 = vpow.pop %v713
    %v715 = vmul.f32 %v706, 1.442695
    %v716 = vpow.pop %v715
    %v717 = vmul.f32 %v707, 1.442695
    %v718 = vpow.pop %v717
    %v719 = vmul.f32 %v708, 1.442695
    %v720 = vpow.pop %v719
    %v721 = vmul.f32 %v709, 1.442695
    %v722 = vpow.pop %v721
    %v723 = vmul.f32 %v710, 1.442695
    %v724 = vpow.pop %v723
    %v725 = vmul.f32 %v711, 1.442695
    %v726 = vpow.pop %v725
    %v727 = vmul.f32 %v712, 1.442695
    %v728 = vpow.pop %v727
    %v737 = vrot.slane %v716, 7
    %v738 = vsel %vm341, %v737, %v714
    %v739 = vrot.slane %v718, 6
    %v740 = vsel %vm344, %v739, %v738
    %v741 = vrot.slane %v720, 5
    %v742 = vsel %vm347, %v741, %v740
    %v743 = vrot.slane %v722, 4
    %v744 = vsel %vm350, %v743, %v742
    %v745 = vrot.slane %v724, 3
    %v746 = vsel %vm353, %v745, %v744
    %v747 = vrot.slane %v726, 2
    %v748 = vsel %vm356, %v747, %v746
    %v749 = vrot.slane %v728, 1
    %v750 = vsel %vm359, %v749, %v748
    %v752 = vsel %vm230, %v750, 0.0
    %753 = vadd.xlane.f32.xlu0 %v752
    %v754 = vpop.xlane.xlu0 %753
    %v756 = vrot.slane %v754, 1
    %v757 = vrot.slane %v754, 2
    %v758 = vrot.slane %v754, 3
    %v759 = vrot.slane %v754, 4
    %v760 = vrot.slane %v754, 5
    %v761 = vrot.slane %v754, 6
    %v762 = vrot.slane %v754, 7
    %v771 = vrcp.pop %v754
    %v772 = vmul.f32 %v714, %v771
    %v773 = vrcp.pop %v756
    %v774 = vmul.f32 %v716, %v773
    %v775 = vrcp.pop %v757
    %v776 = vmul.f32 %v718, %v775
    %v777 = vrcp.pop %v758
    %v778 = vmul.f32 %v720, %v777
    %v779 = vrcp.pop %v759
    %v780 = vmul.f32 %v722, %v779
    %v781 = vrcp.pop %v760
    %v782 = vmul.f32 %v724, %v781
    %v783 = vrcp.pop %v761
    %v784 = vmul.f32 %v726, %v783
    %v785 = vrcp.pop %v762
    %v786 = vmul.f32 %v728, %v785
    %v795 = vrot.slane %v774, 7
    %v796 = vsel %vm341, %v795, %v772
    %v797 = vrot.slane %v776, 6
    %v798 = vsel %vm344, %v797, %v796
    %v799 = vrot.slane %v778, 5
    %v800 = vsel %vm347, %v799, %v798
    %v801 = vrot.slane %v780, 4
    %v802 = vsel %vm350, %v801, %v800
    %v803 = vrot.slane %v782, 3
    %v804 = vsel %vm353, %v803, %v802
    %v805 = vrot.slane %v784, 2
    %v806 = vsel %vm356, %v805, %v804
    %v807 = vrot.slane %v786, 1
    %v808 = vsel %vm359, %v807, %v806
    %809 = vrot.lane.b32.xlu0 %v217, 56
    %v810 = vpop.permute.xlu0 %809
    %v812 = vsel %vm230, %v808, 0
    %814 = vmatprep.subr.mxu0 0.0
    %815 = vmatpush1.msra.mxu0 0.0
    %816 = vmatprep.subr.mxu0 0.0
    %817 = vmatpush1.msra.mxu0 0.0
    %818 = vmatprep.subr.mxu0 0.0
    %819 = vmatpush1.msra.mxu0 0.0
    %820 = vmatprep.subr.mxu0 0.0
    %821 = vmatpush1.msra.mxu0 0.0
    %822 = vmatprep.subr.mxu0 0.0
    %823 = vmatpush1.msra.mxu0 0.0
    %824 = vmatprep.subr.mxu0 0.0
    %825 = vmatpush1.msra.mxu0 0.0
    %826 = vmatprep.subr.mxu0 0.0
    %827 = vmatpush1.msra.mxu0 0.0
    %828 = vmatprep.subr.mxu0 0.0
    %829 = vmatpush1.msra.mxu0 0.0
    %830 = vmatprep.subr.mxu0 0.0
    %831 = vmatpush1.msra.mxu0 0.0
    %832 = vmatprep.subr.mxu0 0.0
    %833 = vmatpush1.msra.mxu0 0.0
    %834 = vmatprep.subr.mxu0 0.0
    %835 = vmatpush1.msra.mxu0 0.0
    %836 = vmatprep.subr.mxu0 0.0
    %837 = vmatpush1.msra.mxu0 0.0
    %838 = vmatprep.subr.mxu0 0.0
    %839 = vmatpush1.msra.mxu0 0.0
    %840 = vmatprep.subr.mxu0 0.0
    %841 = vmatpush1.msra.mxu0 0.0
    %842 = vmatprep.subr.mxu0 0.0
    %843 = vmatpush1.msra.mxu0 0.0
    %844 = vmatprep.subr.mxu0 0.0
    %845 = vmatpush1.msra.mxu0 %v810
    %846 = vmatprep.subr.mxu0 0.0
    %847 = vmatpush2.msra.mxu0 0.0
    %848 = vmatprep.subr.mxu0 0.0
    %849 = vmatpush2.msra.mxu0 0.0
    %850 = vmatprep.subr.mxu0 0.0
    %851 = vmatpush2.msra.mxu0 0.0
    %852 = vmatprep.subr.mxu0 0.0
    %853 = vmatpush2.msra.mxu0 0.0
    %854 = vmatprep.subr.mxu0 0.0
    %855 = vmatpush2.msra.mxu0 0.0
    %856 = vmatprep.subr.mxu0 0.0
    %857 = vmatpush2.msra.mxu0 0.0
    %858 = vmatprep.subr.mxu0 0.0
    %859 = vmatpush2.msra.mxu0 0.0
    %860 = vmatprep.subr.mxu0 0.0
    %861 = vmatpush2.msra.mxu0 0.0
    %862 = vmatprep.subr.mxu0 0.0
    %863 = vmatpush2.msra.mxu0 0.0
    %864 = vmatprep.subr.mxu0 0.0
    %865 = vmatpush2.msra.mxu0 0.0
    %866 = vmatprep.subr.mxu0 0.0
    %867 = vmatpush2.msra.mxu0 0.0
    %868 = vmatprep.subr.mxu0 0.0
    %869 = vmatpush2.msra.mxu0 0.0
    %870 = vmatprep.subr.mxu0 0.0
    %871 = vmatpush2.msra.mxu0 0.0
    %872 = vmatprep.subr.mxu0 0.0
    %873 = vmatpush2.msra.mxu0 0.0
    %874 = vmatprep.subr.mxu0 0.0
    %875 = vmatpush2.msra.mxu0 0.0
    %876 = vmatprep.subr.mxu0 0.0
    %877 = vmatpush2.msra.mxu0 0.0
    %878 = vmatprep.mubr.f32.mxu0 0.0
    %879 = vmatmul.mubr.f32.gmra.mxu0 %v812
    %v880 = vpop.f32.mrf.mxu0
    %v881 = vadd.f32 0.0, %v880
    %v882 = vpop.f32.mrf.mxu0
    %883 = vdwg.mxu0
    %884 = vrot.lane.b32.xlu0 %v217, 112
    %v885 = vpop.permute.xlu0 %884
    %886 = vrot.lane.b32.xlu0 %v217, 80
    %v887 = vpop.permute.xlu0 %886
    %v888 = vsel %vm230, %v885, 0
    %v890 = vsel %vm230, %v887, 0
    %892 = vmatprep.subr.mxu0 0.0
    %893 = vmatpush1.xpose.msra.mxu0 0.0
    %894 = vmatprep.subr.mxu0 0.0
    %895 = vmatpush1.xpose.msra.mxu0 0.0
    %896 = vmatprep.subr.mxu0 0.0
    %897 = vmatpush1.xpose.msra.mxu0 0.0
    %898 = vmatprep.subr.mxu0 0.0
    %899 = vmatpush1.xpose.msra.mxu0 0.0
    %900 = vmatprep.subr.mxu0 0.0
    %901 = vmatpush1.xpose.msra.mxu0 0.0
    %902 = vmatprep.subr.mxu0 0.0
    %903 = vmatpush1.xpose.msra.mxu0 0.0
    %904 = vmatprep.subr.mxu0 0.0
    %905 = vmatpush1.xpose.msra.mxu0 0.0
    %906 = vmatprep.subr.mxu0 0.0
    %907 = vmatpush1.xpose.msra.mxu0 0.0
    %908 = vmatprep.subr.mxu0 0.0
    %909 = vmatpush1.xpose.msra.mxu0 0.0
    %910 = vmatprep.subr.mxu0 0.0
    %911 = vmatpush1.xpose.msra.mxu0 0.0
    %912 = vmatprep.subr.mxu0 0.0
    %913 = vmatpush1.xpose.msra.mxu0 0.0
    %914 = vmatprep.subr.mxu0 0.0
    %915 = vmatpush1.xpose.msra.mxu0 0.0
    %916 = vmatprep.subr.mxu0 0.0
    %917 = vmatpush1.xpose.msra.mxu0 0.0
    %918 = vmatprep.subr.mxu0 0.0
    %919 = vmatpush1.xpose.msra.mxu0 0.0
    %920 = vmatprep.subr.mxu0 0.0
    %921 = vmatpush1.xpose.msra.mxu0 0.0
    %922 = vmatprep.subr.mxu0 0.0
    %923 = vmatpush1.xpose.msra.mxu0 %v890
    %924 = vmatprep.subr.mxu0 0.0
    %925 = vmatpush2.xpose.msra.mxu0 0.0
    %926 = vmatprep.subr.mxu0 0.0
    %927 = vmatpush2.xpose.msra.mxu0 0.0
    %928 = vmatprep.subr.mxu0 0.0
    %929 = vmatpush2.xpose.msra.mxu0 0.0
    %930 = vmatprep.subr.mxu0 0.0
    %931 = vmatpush2.xpose.msra.mxu0 0.0
    %932 = vmatprep.subr.mxu0 0.0
    %933 = vmatpush2.xpose.msra.mxu0 0.0
    %934 = vmatprep.subr.mxu0 0.0
    %935 = vmatpush2.xpose.msra.mxu0 0.0
    %936 = vmatprep.subr.mxu0 0.0
    %937 = vmatpush2.xpose.msra.mxu0 0.0
    %938 = vmatprep.subr.mxu0 0.0
    %939 = vmatpush2.xpose.msra.mxu0 0.0
    %940 = vmatprep.subr.mxu0 0.0
    %941 = vmatpush2.xpose.msra.mxu0 0.0
    %942 = vmatprep.subr.mxu0 0.0
    %943 = vmatpush2.xpose.msra.mxu0 0.0
    %944 = vmatprep.subr.mxu0 0.0
    %945 = vmatpush2.xpose.msra.mxu0 0.0
    %946 = vmatprep.subr.mxu0 0.0
    %947 = vmatpush2.xpose.msra.mxu0 0.0
    %948 = vmatprep.subr.mxu0 0.0
    %949 = vmatpush2.xpose.msra.mxu0 0.0
    %950 = vmatprep.subr.mxu0 0.0
    %951 = vmatpush2.xpose.msra.mxu0 0.0
    %952 = vmatprep.subr.mxu0 0.0
    %953 = vmatpush2.xpose.msra.mxu0 0.0
    %954 = vmatprep.subr.mxu0 0.0
    %955 = vmatpush2.xpose.msra.mxu0 0.0
    %956 = vmatprep.mubr.f32.mxu0 0.0
    %957 = vmatmul.mubr.f32.gmra.mxu0 %v888
    %v958 = vpop.f32.mrf.mxu0
    %v959 = vadd.f32 0.0, %v958
    %v960 = vpop.f32.mrf.mxu0
    %961 = vdwg.mxu0
    %v962 = vmul.f32 %v959, 0.35355338
    %v964 = vrot.slane %v962, 1
    %v965 = vrot.slane %v962, 2
    %v966 = vrot.slane %v962, 3
    %v967 = vrot.slane %v962, 4
    %v968 = vrot.slane %v962, 5
    %v969 = vrot.slane %v962, 6
    %v970 = vrot.slane %v962, 7
    %v979 = vsel %vm307, -1e+09, %v962
    %v980 = vsel %vm307, -1e+09, %v964
    %v981 = vsel %vm307, -1e+09, %v965
    %v982 = vsel %vm307, -1e+09, %v966
    %v983 = vsel %vm307, -1e+09, %v967
    %v984 = vsel %vm307, -1e+09, %v968
    %v985 = vsel %vm307, -1e+09, %v969
    %v986 = vsel %vm307, -1e+09, %v970
    %v995 = vrot.slane %v980, 7
    %v996 = vsel %vm341, %v995, %v979
    %v997 = vrot.slane %v981, 6
    %v998 = vsel %vm344, %v997, %v996
    %v999 = vrot.slane %v982, 5
    %v1000 = vsel %vm347, %v999, %v998
    %v1001 = vrot.slane %v983, 4
    %v1002 = vsel %vm350, %v1001, %v1000
    %v1003 = vrot.slane %v984, 3
    %v1004 = vsel %vm353, %v1003, %v1002
    %v1005 = vrot.slane %v985, 2
    %v1006 = vsel %vm356, %v1005, %v1004
    %v1007 = vrot.slane %v986, 1
    %v1008 = vsel %vm359, %v1007, %v1006
    %v1010 = vsel %vm230, %v1008, -inf
    %1011 = vmax.xlane.f32.xlu0 %v1010
    %v1012 = vpop.xlane.xlu0 %1011
    %v1014 = vrot.slane %v1012, 1
    %v1015 = vrot.slane %v1012, 2
    %v1016 = vrot.slane %v1012, 3
    %v1017 = vrot.slane %v1012, 4
    %v1018 = vrot.slane %v1012, 5
    %v1019 = vrot.slane %v1012, 6
    %v1020 = vrot.slane %v1012, 7
    %v1029 = vsub.f32 %v979, %v1012
    %v1030 = vsub.f32 %v980, %v1014
    %v1031 = vsub.f32 %v981, %v1015
    %v1032 = vsub.f32 %v982, %v1016
    %v1033 = vsub.f32 %v983, %v1017
    %v1034 = vsub.f32 %v984, %v1018
    %v1035 = vsub.f32 %v985, %v1019
    %v1036 = vsub.f32 %v986, %v1020
    %v1037 = vmul.f32 %v1029, 1.442695
    %v1038 = vpow.pop %v1037
    %v1039 = vmul.f32 %v1030, 1.442695
    %v1040 = vpow.pop %v1039
    %v1041 = vmul.f32 %v1031, 1.442695
    %v1042 = vpow.pop %v1041
    %v1043 = vmul.f32 %v1032, 1.442695
    %v1044 = vpow.pop %v1043
    %v1045 = vmul.f32 %v1033, 1.442695
    %v1046 = vpow.pop %v1045
    %v1047 = vmul.f32 %v1034, 1.442695
    %v1048 = vpow.pop %v1047
    %v1049 = vmul.f32 %v1035, 1.442695
    %v1050 = vpow.pop %v1049
    %v1051 = vmul.f32 %v1036, 1.442695
    %v1052 = vpow.pop %v1051
    %v1061 = vrot.slane %v1040, 7
    %v1062 = vsel %vm341, %v1061, %v1038
    %v1063 = vrot.slane %v1042, 6
    %v1064 = vsel %vm344, %v1063, %v1062
    %v1065 = vrot.slane %v1044, 5
    %v1066 = vsel %vm347, %v1065, %v1064
    %v1067 = vrot.slane %v1046, 4
    %v1068 = vsel %vm350, %v1067, %v1066
    %v1069 = vrot.slane %v1048, 3
    %v1070 = vsel %vm353, %v1069, %v1068
    %v1071 = vrot.slane %v1050, 2
    %v1072 = vsel %vm356, %v1071, %v1070
    %v1073 = vrot.slane %v1052, 1
    %v1074 = vsel %vm359, %v1073, %v1072
    %v1076 = vsel %vm230, %v1074, 0.0
    %1077 = vadd.xlane.f32.xlu0 %v1076
    %v1078 = vpop.xlane.xlu0 %1077
    %v1080 = vrot.slane %v1078, 1
    %v1081 = vrot.slane %v1078, 2
    %v1082 = vrot.slane %v1078, 3
    %v1083 = vrot.slane %v1078, 4
    %v1084 = vrot.slane %v1078, 5
    %v1085 = vrot.slane %v1078, 6
    %v1086 = vrot.slane %v1078, 7
    %v1095 = vrcp.pop %v1078
    %v1096 = vmul.f32 %v1038, %v1095
    %v1097 = vrcp.pop %v1080
    %v1098 = vmul.f32 %v1040, %v1097
    %v1099 = vrcp.pop %v1081
    %v1100 = vmul.f32 %v1042, %v1099
    %v1101 = vrcp.pop %v1082
    %v1102 = vmul.f32 %v1044, %v1101
    %v1103 = vrcp.pop %v1083
    %v1104 = vmul.f32 %v1046, %v1103
    %v1105 = vrcp.pop %v1084
    %v1106 = vmul.f32 %v1048, %v1105
    %v1107 = vrcp.pop %v1085
    %v1108 = vmul.f32 %v1050, %v1107
    %v1109 = vrcp.pop %v1086
    %v1110 = vmul.f32 %v1052, %v1109
    %v1119 = vrot.slane %v1098, 7
    %v1120 = vsel %vm341, %v1119, %v1096
    %v1121 = vrot.slane %v1100, 6
    %v1122 = vsel %vm344, %v1121, %v1120
    %v1123 = vrot.slane %v1102, 5
    %v1124 = vsel %vm347, %v1123, %v1122
    %v1125 = vrot.slane %v1104, 4
    %v1126 = vsel %vm350, %v1125, %v1124
    %v1127 = vrot.slane %v1106, 3
    %v1128 = vsel %vm353, %v1127, %v1126
    %v1129 = vrot.slane %v1108, 2
    %v1130 = vsel %vm356, %v1129, %v1128
    %v1131 = vrot.slane %v1110, 1
    %v1132 = vsel %vm359, %v1131, %v1130
    %1133 = vrot.lane.b32.xlu0 %v217, 48
    %v1134 = vpop.permute.xlu0 %1133
    %v1136 = vsel %vm230, %v1132, 0
    %1138 = vmatprep.subr.mxu0 0.0
    %1139 = vmatpush1.msra.mxu0 0.0
    %1140 = vmatprep.subr.mxu0 0.0
    %1141 = vmatpush1.msra.mxu0 0.0
    %1142 = vmatprep.subr.mxu0 0.0
    %1143 = vmatpush1.msra.mxu0 0.0
    %1144 = vmatprep.subr.mxu0 0.0
    %1145 = vmatpush1.msra.mxu0 0.0
    %1146 = vmatprep.subr.mxu0 0.0
    %1147 = vmatpush1.msra.mxu0 0.0
    %1148 = vmatprep.subr.mxu0 0.0
    %1149 = vmatpush1.msra.mxu0 0.0
    %1150 = vmatprep.subr.mxu0 0.0
    %1151 = vmatpush1.msra.mxu0 0.0
    %1152 = vmatprep.subr.mxu0 0.0
    %1153 = vmatpush1.msra.mxu0 0.0
    %1154 = vmatprep.subr.mxu0 0.0
    %1155 = vmatpush1.msra.mxu0 0.0
    %1156 = vmatprep.subr.mxu0 0.0
    %1157 = vmatpush1.msra.mxu0 0.0
    %1158 = vmatprep.subr.mxu0 0.0
    %1159 = vmatpush1.msra.mxu0 0.0
    %1160 = vmatprep.subr.mxu0 0.0
    %1161 = vmatpush1.msra.mxu0 0.0
    %1162 = vmatprep.subr.mxu0 0.0
    %1163 = vmatpush1.msra.mxu0 0.0
    %1164 = vmatprep.subr.mxu0 0.0
    %1165 = vmatpush1.msra.mxu0 0.0
    %1166 = vmatprep.subr.mxu0 0.0
    %1167 = vmatpush1.msra.mxu0 0.0
    %1168 = vmatprep.subr.mxu0 0.0
    %1169 = vmatpush1.msra.mxu0 %v1134
    %1170 = vmatprep.subr.mxu0 0.0
    %1171 = vmatpush2.msra.mxu0 0.0
    %1172 = vmatprep.subr.mxu0 0.0
    %1173 = vmatpush2.msra.mxu0 0.0
    %1174 = vmatprep.subr.mxu0 0.0
    %1175 = vmatpush2.msra.mxu0 0.0
    %1176 = vmatprep.subr.mxu0 0.0
    %1177 = vmatpush2.msra.mxu0 0.0
    %1178 = vmatprep.subr.mxu0 0.0
    %1179 = vmatpush2.msra.mxu0 0.0
    %1180 = vmatprep.subr.mxu0 0.0
    %1181 = vmatpush2.msra.mxu0 0.0
    %1182 = vmatprep.subr.mxu0 0.0
    %1183 = vmatpush2.msra.mxu0 0.0
    %1184 = vmatprep.subr.mxu0 0.0
    %1185 = vmatpush2.msra.mxu0 0.0
    %1186 = vmatprep.subr.mxu0 0.0
    %1187 = vmatpush2.msra.mxu0 0.0
    %1188 = vmatprep.subr.mxu0 0.0
    %1189 = vmatpush2.msra.mxu0 0.0
    %1190 = vmatprep.subr.mxu0 0.0
    %1191 = vmatpush2.msra.mxu0 0.0
    %1192 = vmatprep.subr.mxu0 0.0
    %1193 = vmatpush2.msra.mxu0 0.0
    %1194 = vmatprep.subr.mxu0 0.0
    %1195 = vmatpush2.msra.mxu0 0.0
    %1196 = vmatprep.subr.mxu0 0.0
    %1197 = vmatpush2.msra.mxu0 0.0
    %1198 = vmatprep.subr.mxu0 0.0
    %1199 = vmatpush2.msra.mxu0 0.0
    %1200 = vmatprep.subr.mxu0 0.0
    %1201 = vmatpush2.msra.mxu0 0.0
    %1202 = vmatprep.mubr.f32.mxu0 0.0
    %1203 = vmatmul.mubr.f32.gmra.mxu0 %v1136
    %v1204 = vpop.f32.mrf.mxu0
    %v1205 = vadd.f32 0.0, %v1204
    %v1206 = vpop.f32.mrf.mxu0
    %1207 = vdwg.mxu0
    %1208 = vrot.lane.b32.xlu0 %v217, 104
    %v1209 = vpop.permute.xlu0 %1208
    %1210 = vrot.lane.b32.xlu0 %v217, 72
    %v1211 = vpop.permute.xlu0 %1210
    %v1212 = vsel %vm230, %v1209, 0
    %v1214 = vsel %vm230, %v1211, 0
    %1216 = vmatprep.subr.mxu0 0.0
    %1217 = vmatpush1.xpose.msra.mxu0 0.0
    %1218 = vmatprep.subr.mxu0 0.0
    %1219 = vmatpush1.xpose.msra.mxu0 0.0
    %1220 = vmatprep.subr.mxu0 0.0
    %1221 = vmatpush1.xpose.msra.mxu0 0.0
    %1222 = vmatprep.subr.mxu0 0.0
    %1223 = vmatpush1.xpose.msra.mxu0 0.0
    %1224 = vmatprep.subr.mxu0 0.0
    %1225 = vmatpush1.xpose.msra.mxu0 0.0
    %1226 = vmatprep.subr.mxu0 0.0
    %1227 = vmatpush1.xpose.msra.mxu0 0.0
    %1228 = vmatprep.subr.mxu0 0.0
    %1229 = vmatpush1.xpose.msra.mxu0 0.0
    %1230 = vmatprep.subr.mxu0 0.0
    %1231 = vmatpush1.xpose.msra.mxu0 0.0
    %1232 = vmatprep.subr.mxu0 0.0
    %1233 = vmatpush1.xpose.msra.mxu0 0.0
    %1234 = vmatprep.subr.mxu0 0.0
    %1235 = vmatpush1.xpose.msra.mxu0 0.0
    %1236 = vmatprep.subr.mxu0 0.0
    %1237 = vmatpush1.xpose.msra.mxu0 0.0
    %1238 = vmatprep.subr.mxu0 0.0
    %1239 = vmatpush1.xpose.msra.mxu0 0.0
    %1240 = vmatprep.subr.mxu0 0.0
    %1241 = vmatpush1.xpose.msra.mxu0 0.0
    %1242 = vmatprep.subr.mxu0 0.0
    %1243 = vmatpush1.xpose.msra.mxu0 0.0
    %1244 = vmatprep.subr.mxu0 0.0
    %1245 = vmatpush1.xpose.msra.mxu0 0.0
    %1246 = vmatprep.subr.mxu0 0.0
    %1247 = vmatpush1.xpose.msra.mxu0 %v1214
    %1248 = vmatprep.subr.mxu0 0.0
    %1249 = vmatpush2.xpose.msra.mxu0 0.0
    %1250 = vmatprep.subr.mxu0 0.0
    %1251 = vmatpush2.xpose.msra.mxu0 0.0
    %1252 = vmatprep.subr.mxu0 0.0
    %1253 = vmatpush2.xpose.msra.mxu0 0.0
    %1254 = vmatprep.subr.mxu0 0.0
    %1255 = vmatpush2.xpose.msra.mxu0 0.0
    %1256 = vmatprep.subr.mxu0 0.0
    %1257 = vmatpush2.xpose.msra.mxu0 0.0
    %1258 = vmatprep.subr.mxu0 0.0
    %1259 = vmatpush2.xpose.msra.mxu0 0.0
    %1260 = vmatprep.subr.mxu0 0.0
    %1261 = vmatpush2.xpose.msra.mxu0 0.0
    %1262 = vmatprep.subr.mxu0 0.0
    %1263 = vmatpush2.xpose.msra.mxu0 0.0
    %1264 = vmatprep.subr.mxu0 0.0
    %1265 = vmatpush2.xpose.msra.mxu0 0.0
    %1266 = vmatprep.subr.mxu0 0.0
    %1267 = vmatpush2.xpose.msra.mxu0 0.0
    %1268 = vmatprep.subr.mxu0 0.0
    %1269 = vmatpush2.xpose.msra.mxu0 0.0
    %1270 = vmatprep.subr.mxu0 0.0
    %1271 = vmatpush2.xpose.msra.mxu0 0.0
    %1272 = vmatprep.subr.mxu0 0.0
    %1273 = vmatpush2.xpose.msra.mxu0 0.0
    %1274 = vmatprep.subr.mxu0 0.0
    %1275 = vmatpush2.xpose.msra.mxu0 0.0
    %1276 = vmatprep.subr.mxu0 0.0
    %1277 = vmatpush2.xpose.msra.mxu0 0.0
    %1278 = vmatprep.subr.mxu0 0.0
    %1279 = vmatpush2.xpose.msra.mxu0 0.0
    %1280 = vmatprep.mubr.f32.mxu0 0.0
    %1281 = vmatmul.mubr.f32.gmra.mxu0 %v1212
    %v1282 = vpop.f32.mrf.mxu0
    %v1283 = vadd.f32 0.0, %v1282
    %v1284 = vpop.f32.mrf.mxu0
    %1285 = vdwg.mxu0
    %v1286 = vmul.f32 %v1283, 0.35355338
    %v1288 = vrot.slane %v1286, 1
    %v1289 = vrot.slane %v1286, 2
    %v1290 = vrot.slane %v1286, 3
    %v1291 = vrot.slane %v1286, 4
    %v1292 = vrot.slane %v1286, 5
    %v1293 = vrot.slane %v1286, 6
    %v1294 = vrot.slane %v1286, 7
    %v1303 = vsel %vm307, -1e+09, %v1286
    %v1304 = vsel %vm307, -1e+09, %v1288
    %v1305 = vsel %vm307, -1e+09, %v1289
    %v1306 = vsel %vm307, -1e+09, %v1290
    %v1307 = vsel %vm307, -1e+09, %v1291
    %v1308 = vsel %vm307, -1e+09, %v1292
    %v1309 = vsel %vm307, -1e+09, %v1293
    %v1310 = vsel %vm307, -1e+09, %v1294
    %v1319 = vrot.slane %v1304, 7
    %v1320 = vsel %vm341, %v1319, %v1303
    %v1321 = vrot.slane %v1305, 6
    %v1322 = vsel %vm344, %v1321, %v1320
    %v1323 = vrot.slane %v1306, 5
    %v1324 = vsel %vm347, %v1323, %v1322
    %v1325 = vrot.slane %v1307, 4
    %v1326 = vsel %vm350, %v1325, %v1324
    %v1327 = vrot.slane %v1308, 3
    %v1328 = vsel %vm353, %v1327, %v1326
    %v1329 = vrot.slane %v1309, 2
    %v1330 = vsel %vm356, %v1329, %v1328
    %v1331 = vrot.slane %v1310, 1
    %v1332 = vsel %vm359, %v1331, %v1330
    %v1334 = vsel %vm230, %v1332, -inf
    %1335 = vmax.xlane.f32.xlu0 %v1334
    %v1336 = vpop.xlane.xlu0 %1335
    %v1338 = vrot.slane %v1336, 1
    %v1339 = vrot.slane %v1336, 2
    %v1340 = vrot.slane %v1336, 3
    %v1341 = vrot.slane %v1336, 4
    %v1342 = vrot.slane %v1336, 5
    %v1343 = vrot.slane %v1336, 6
    %v1344 = vrot.slane %v1336, 7
    %v1353 = vsub.f32 %v1303, %v1336
    %v1354 = vsub.f32 %v1304, %v1338
    %v1355 = vsub.f32 %v1305, %v1339
    %v1356 = vsub.f32 %v1306, %v1340
    %v1357 = vsub.f32 %v1307, %v1341
    %v1358 = vsub.f32 %v1308, %v1342
    %v1359 = vsub.f32 %v1309, %v1343
    %v1360 = vsub.f32 %v1310, %v1344
    %v1361 = vmul.f32 %v1353, 1.442695
    %v1362 = vpow.pop %v1361
    %v1363 = vmul.f32 %v1354, 1.442695
    %v1364 = vpow.pop %v1363
    %v1365 = vmul.f32 %v1355, 1.442695
    %v1366 = vpow.pop %v1365
    %v1367 = vmul.f32 %v1356, 1.442695
    %v1368 = vpow.pop %v1367
    %v1369 = vmul.f32 %v1357, 1.442695
    %v1370 = vpow.pop %v1369
    %v1371 = vmul.f32 %v1358, 1.442695
    %v1372 = vpow.pop %v1371
    %v1373 = vmul.f32 %v1359, 1.442695
    %v1374 = vpow.pop %v1373
    %v1375 = vmul.f32 %v1360, 1.442695
    %v1376 = vpow.pop %v1375
    %v1385 = vrot.slane %v1364, 7
    %v1386 = vsel %vm341, %v1385, %v1362
    %v1387 = vrot.slane %v1366, 6
    %v1388 = vsel %vm344, %v1387, %v1386
    %v1389 = vrot.slane %v1368, 5
    %v1390 = vsel %vm347, %v1389, %v1388
    %v1391 = vrot.slane %v1370, 4
    %v1392 = vsel %vm350, %v1391, %v1390
    %v1393 = vrot.slane %v1372, 3
    %v1394 = vsel %vm353, %v1393, %v1392
    %v1395 = vrot.slane %v1374, 2
    %v1396 = vsel %vm356, %v1395, %v1394
    %v1397 = vrot.slane %v1376, 1
    %v1398 = vsel %vm359, %v1397, %v1396
    %v1400 = vsel %vm230, %v1398, 0.0
    %1401 = vadd.xlane.f32.xlu0 %v1400
    %v1402 = vpop.xlane.xlu0 %1401
    %v1404 = vrot.slane %v1402, 1
    %v1405 = vrot.slane %v1402, 2
    %v1406 = vrot.slane %v1402, 3
    %v1407 = vrot.slane %v1402, 4
    %v1408 = vrot.slane %v1402, 5
    %v1409 = vrot.slane %v1402, 6
    %v1410 = vrot.slane %v1402, 7
    %v1419 = vrcp.pop %v1402
    %v1420 = vmul.f32 %v1362, %v1419
    %v1421 = vrcp.pop %v1404
    %v1422 = vmul.f32 %v1364, %v1421
    %v1423 = vrcp.pop %v1405
    %v1424 = vmul.f32 %v1366, %v1423
    %v1425 = vrcp.pop %v1406
    %v1426 = vmul.f32 %v1368, %v1425
    %v1427 = vrcp.pop %v1407
    %v1428 = vmul.f32 %v1370, %v1427
    %v1429 = vrcp.pop %v1408
    %v1430 = vmul.f32 %v1372, %v1429
    %v1431 = vrcp.pop %v1409
    %v1432 = vmul.f32 %v1374, %v1431
    %v1433 = vrcp.pop %v1410
    %v1434 = vmul.f32 %v1376, %v1433
    %v1443 = vrot.slane %v1422, 7
    %v1444 = vsel %vm341, %v1443, %v1420
    %v1445 = vrot.slane %v1424, 6
    %v1446 = vsel %vm344, %v1445, %v1444
    %v1447 = vrot.slane %v1426, 5
    %v1448 = vsel %vm347, %v1447, %v1446
    %v1449 = vrot.slane %v1428, 4
    %v1450 = vsel %vm350, %v1449, %v1448
    %v1451 = vrot.slane %v1430, 3
    %v1452 = vsel %vm353, %v1451, %v1450
    %v1453 = vrot.slane %v1432, 2
    %v1454 = vsel %vm356, %v1453, %v1452
    %v1455 = vrot.slane %v1434, 1
    %v1456 = vsel %vm359, %v1455, %v1454
    %1457 = vrot.lane.b32.xlu0 %v217, 40
    %v1458 = vpop.permute.xlu0 %1457
    %v1460 = vsel %vm230, %v1456, 0
    %1462 = vmatprep.subr.mxu0 0.0
    %1463 = vmatpush1.msra.mxu0 0.0
    %1464 = vmatprep.subr.mxu0 0.0
    %1465 = vmatpush1.msra.mxu0 0.0
    %1466 = vmatprep.subr.mxu0 0.0
    %1467 = vmatpush1.msra.mxu0 0.0
    %1468 = vmatprep.subr.mxu0 0.0
    %1469 = vmatpush1.msra.mxu0 0.0
    %1470 = vmatprep.subr.mxu0 0.0
    %1471 = vmatpush1.msra.mxu0 0.0
    %1472 = vmatprep.subr.mxu0 0.0
    %1473 = vmatpush1.msra.mxu0 0.0
    %1474 = vmatprep.subr.mxu0 0.0
    %1475 = vmatpush1.msra.mxu0 0.0
    %1476 = vmatprep.subr.mxu0 0.0
    %1477 = vmatpush1.msra.mxu0 0.0
    %1478 = vmatprep.subr.mxu0 0.0
    %1479 = vmatpush1.msra.mxu0 0.0
    %1480 = vmatprep.subr.mxu0 0.0
    %1481 = vmatpush1.msra.mxu0 0.0
    %1482 = vmatprep.subr.mxu0 0.0
    %1483 = vmatpush1.msra.mxu0 0.0
    %1484 = vmatprep.subr.mxu0 0.0
    %1485 = vmatpush1.msra.mxu0 0.0
    %1486 = vmatprep.subr.mxu0 0.0
    %1487 = vmatpush1.msra.mxu0 0.0
    %1488 = vmatprep.subr.mxu0 0.0
    %1489 = vmatpush1.msra.mxu0 0.0
    %1490 = vmatprep.subr.mxu0 0.0
    %1491 = vmatpush1.msra.mxu0 0.0
    %1492 = vmatprep.subr.mxu0 0.0
    %1493 = vmatpush1.msra.mxu0 %v1458
    %1494 = vmatprep.subr.mxu0 0.0
    %1495 = vmatpush2.msra.mxu0 0.0
    %1496 = vmatprep.subr.mxu0 0.0
    %1497 = vmatpush2.msra.mxu0 0.0
    %1498 = vmatprep.subr.mxu0 0.0
    %1499 = vmatpush2.msra.mxu0 0.0
    %1500 = vmatprep.subr.mxu0 0.0
    %1501 = vmatpush2.msra.mxu0 0.0
    %1502 = vmatprep.subr.mxu0 0.0
    %1503 = vmatpush2.msra.mxu0 0.0
    %1504 = vmatprep.subr.mxu0 0.0
    %1505 = vmatpush2.msra.mxu0 0.0
    %1506 = vmatprep.subr.mxu0 0.0
    %1507 = vmatpush2.msra.mxu0 0.0
    %1508 = vmatprep.subr.mxu0 0.0
    %1509 = vmatpush2.msra.mxu0 0.0
    %1510 = vmatprep.subr.mxu0 0.0
    %1511 = vmatpush2.msra.mxu0 0.0
    %1512 = vmatprep.subr.mxu0 0.0
    %1513 = vmatpush2.msra.mxu0 0.0
    %1514 = vmatprep.subr.mxu0 0.0
    %1515 = vmatpush2.msra.mxu0 0.0
    %1516 = vmatprep.subr.mxu0 0.0
    %1517 = vmatpush2.msra.mxu0 0.0
    %1518 = vmatprep.subr.mxu0 0.0
    %1519 = vmatpush2.msra.mxu0 0.0
    %1520 = vmatprep.subr.mxu0 0.0
    %1521 = vmatpush2.msra.mxu0 0.0
    %1522 = vmatprep.subr.mxu0 0.0
    %1523 = vmatpush2.msra.mxu0 0.0
    %1524 = vmatprep.subr.mxu0 0.0
    %1525 = vmatpush2.msra.mxu0 0.0
    %1526 = vmatprep.mubr.f32.mxu0 0.0
    %1527 = vmatmul.mubr.f32.gmra.mxu0 %v1460
    %v1528 = vpop.f32.mrf.mxu0
    %v1529 = vadd.f32 0.0, %v1528
    %v1530 = vpop.f32.mrf.mxu0
    %1531 = vdwg.mxu0
    %1533 = vrot.lane.b32.xlu0 %v881, 8
    %v1534 = vpop.permute.xlu0 %1533
    %1537 = vrot.lane.b32.xlu0 %v1205, 16
    %v1538 = vpop.permute.xlu0 %1537
    %1541 = vrot.lane.b32.xlu0 %v1529, 24
    %v1542 = vpop.permute.xlu0 %1541
    %v1544 = vsel %vm230, %v557, %v1534
    %vm1545 = vcmask 130048
    %v1546 = vsel %vm1545, %v1544, %v1538
    %vm1547 = vcmask 195584
    %v1548 = vsel %vm1547, %v1546, %v1542
    %1550 = vrot.lane.b32.xlu0 %v222, 96
    %v1551 = vpop.permute.xlu0 %1550
    %v1552 = vsel %vm230, %v222, 0
    %v1554 = vsel %vm230, %v1551, 0
    %1556 = vmatprep.subr.mxu0 0.0
    %1557 = vmatpush1.xpose.msra.mxu0 0.0
    %1558 = vmatprep.subr.mxu0 0.0
    %1559 = vmatpush1.xpose.msra.mxu0 0.0
    %1560 = vmatprep.subr.mxu0 0.0
    %1561 = vmatpush1.xpose.msra.mxu0 0.0
    %1562 = vmatprep.subr.mxu0 0.0
    %1563 = vmatpush1.xpose.msra.mxu0 0.0
    %1564 = vmatprep.subr.mxu0 0.0
    %1565 = vmatpush1.xpose.msra.mxu0 0.0
    %1566 = vmatprep.subr.mxu0 0.0
    %1567 = vmatpush1.xpose.msra.mxu0 0.0
    %1568 = vmatprep.subr.mxu0 0.0
    %1569 = vmatpush1.xpose.msra.mxu0 0.0
    %1570 = vmatprep.subr.mxu0 0.0
    %1571 = vmatpush1.xpose.msra.mxu0 0.0
    %1572 = vmatprep.subr.mxu0 0.0
    %1573 = vmatpush1.xpose.msra.mxu0 0.0
    %1574 = vmatprep.subr.mxu0 0.0
    %1575 = vmatpush1.xpose.msra.mxu0 0.0
    %1576 = vmatprep.subr.mxu0 0.0
    %1577 = vmatpush1.xpose.msra.mxu0 0.0
    %1578 = vmatprep.subr.mxu0 0.0
    %1579 = vmatpush1.xpose.msra.mxu0 0.0
    %1580 = vmatprep.subr.mxu0 0.0
    %1581 = vmatpush1.xpose.msra.mxu0 0.0
    %1582 = vmatprep.subr.mxu0 0.0
    %1583 = vmatpush1.xpose.msra.mxu0 0.0
    %1584 = vmatprep.subr.mxu0 0.0
    %1585 = vmatpush1.xpose.msra.mxu0 0.0
    %1586 = vmatprep.subr.mxu0 0.0
    %1587 = vmatpush1.xpose.msra.mxu0 %v1554
    %1588 = vmatprep.subr.mxu0 0.0
    %1589 = vmatpush2.xpose.msra.mxu0 0.0
    %1590 = vmatprep.subr.mxu0 0.0
    %1591 = vmatpush2.xpose.msra.mxu0 0.0
    %1592 = vmatprep.subr.mxu0 0.0
    %1593 = vmatpush2.xpose.msra.mxu0 0.0
    %1594 = vmatprep.subr.mxu0 0.0
    %1595 = vmatpush2.xpose.msra.mxu0 0.0
    %1596 = vmatprep.subr.mxu0 0.0
    %1597 = vmatpush2.xpose.msra.mxu0 0.0
    %1598 = vmatprep.subr.mxu0 0.0
    %1599 = vmatpush2.xpose.msra.mxu0 0.0
    %1600 = vmatprep.subr.mxu0 0.0
    %1601 = vmatpush2.xpose.msra.mxu0 0.0
    %1602 = vmatprep.subr.mxu0 0.0
    %1603 = vmatpush2.xpose.msra.mxu0 0.0
    %1604 = vmatprep.subr.mxu0 0.0
    %1605 = vmatpush2.xpose.msra.mxu0 0.0
    %1606 = vmatprep.subr.mxu0 0.0
    %1607 = vmatpush2.xpose.msra.mxu0 0.0
    %1608 = vmatprep.subr.mxu0 0.0
    %1609 = vmatpush2.xpose.msra.mxu0 0.0
    %1610 = vmatprep.subr.mxu0 0.0
    %1611 = vmatpush2.xpose.msra.mxu0 0.0
    %1612 = vmatprep.subr.mxu0 0.0
    %1613 = vmatpush2.xpose.msra.mxu0 0.0
    %1614 = vmatprep.subr.mxu0 0.0
    %1615 = vmatpush2.xpose.msra.mxu0 0.0
    %1616 = vmatprep.subr.mxu0 0.0
    %1617 = vmatpush2.xpose.msra.mxu0 0.0
    %1618 = vmatprep.subr.mxu0 0.0
    %1619 = vmatpush2.xpose.msra.mxu0 0.0
    %1620 = vmatprep.mubr.f32.mxu0 0.0
    %1621 = vmatmul.mubr.f32.gmra.mxu0 %v1552
    %v1622 = vpop.f32.mrf.mxu0
    %v1623 = vadd.f32 0.0, %v1622
    %v1624 = vpop.f32.mrf.mxu0
    %1625 = vdwg.mxu0
    %v1626 = vmul.f32 %v1623, 0.35355338
    %v1628 = vrot.slane %v1626, 7
    %v1629 = vrot.slane %v1626, 1
    %v1630 = vrot.slane %v1626, 2
    %v1631 = vrot.slane %v1626, 3
    %v1632 = vrot.slane %v1626, 4
    %v1633 = vrot.slane %v1626, 5
    %v1634 = vrot.slane %v1626, 6
    %v1643 = vsel %vm307, -1e+09, %v1628
    %v1644 = vsel %vm307, -1e+09, %v1626
    %v1645 = vsel %vm307, -1e+09, %v1629
    %v1646 = vsel %vm307, -1e+09, %v1630
    %v1647 = vsel %vm307, -1e+09, %v1631
    %v1648 = vsel %vm307, -1e+09, %v1632
    %v1649 = vsel %vm307, -1e+09, %v1633
    %v1650 = vsel %vm307, -1e+09, %v1634
    %v1659 = vrot.slane %v1644, 7
    %v1660 = vsel %vm344, %v1659, %v1643
    %v1661 = vrot.slane %v1645, 6
    %v1662 = vsel %vm347, %v1661, %v1660
    %v1663 = vrot.slane %v1646, 5
    %v1664 = vsel %vm350, %v1663, %v1662
    %v1665 = vrot.slane %v1647, 4
    %v1666 = vsel %vm353, %v1665, %v1664
    %v1667 = vrot.slane %v1648, 3
    %v1668 = vsel %vm356, %v1667, %v1666
    %v1669 = vrot.slane %v1649, 2
    %v1670 = vsel %vm359, %v1669, %v1668
    %v1671 = vrot.slane %v1650, 1
    %vm1674 = vcmask 64513
    %v1675 = vsel %vm1674, %v1670, -inf
    %1676 = vmax.xlane.f32.xlu0 %v1675
    %v1677 = vpop.xlane.xlu0 %1676
    %vm1678 = vcmask 57344
    %v1679 = vsel %vm1678, %v1671, -inf
    %1680 = vmax.xlane.f32.xlu0 %v1679
    %v1681 = vpop.xlane.xlu0 %1680
    %v1684 = vrot.slane %v1677, 1
    %v1685 = vrot.slane %v1677, 2
    %v1686 = vrot.slane %v1677, 3
    %v1687 = vrot.slane %v1677, 4
    %v1688 = vrot.slane %v1677, 5
    %v1689 = vrot.slane %v1677, 6
    %v1690 = vrot.slane %v1681, 7
    %v1699 = vsub.f32 %v1643, %v1677
    %v1700 = vsub.f32 %v1644, %v1684
    %v1701 = vsub.f32 %v1645, %v1685
    %v1702 = vsub.f32 %v1646, %v1686
    %v1703 = vsub.f32 %v1647, %v1687
    %v1704 = vsub.f32 %v1648, %v1688
    %v1705 = vsub.f32 %v1649, %v1689
    %v1706 = vsub.f32 %v1650, %v1690
    %v1707 = vmul.f32 %v1699, 1.442695
    %v1708 = vpow.pop %v1707
    %v1709 = vmul.f32 %v1700, 1.442695
    %v1710 = vpow.pop %v1709
    %v1711 = vmul.f32 %v1701, 1.442695
    %v1712 = vpow.pop %v1711
    %v1713 = vmul.f32 %v1702, 1.442695
    %v1714 = vpow.pop %v1713
    %v1715 = vmul.f32 %v1703, 1.442695
    %v1716 = vpow.pop %v1715
    %v1717 = vmul.f32 %v1704, 1.442695
    %v1718 = vpow.pop %v1717
    %v1719 = vmul.f32 %v1705, 1.442695
    %v1720 = vpow.pop %v1719
    %v1721 = vmul.f32 %v1706, 1.442695
    %v1722 = vpow.pop %v1721
    %v1731 = vrot.slane %v1710, 7
    %v1732 = vsel %vm344, %v1731, %v1708
    %v1733 = vrot.slane %v1712, 6
    %v1734 = vsel %vm347, %v1733, %v1732
    %v1735 = vrot.slane %v1714, 5
    %v1736 = vsel %vm350, %v1735, %v1734
    %v1737 = vrot.slane %v1716, 4
    %v1738 = vsel %vm353, %v1737, %v1736
    %v1739 = vrot.slane %v1718, 3
    %v1740 = vsel %vm356, %v1739, %v1738
    %v1741 = vrot.slane %v1720, 2
    %v1742 = vsel %vm359, %v1741, %v1740
    %v1743 = vrot.slane %v1722, 1
    %v1746 = vsel %vm1674, %v1742, 0.0
    %1747 = vadd.xlane.f32.xlu0 %v1746
    %v1748 = vpop.xlane.xlu0 %1747
    %v1749 = vsel %vm1678, %v1743, 0.0
    %1750 = vadd.xlane.f32.xlu0 %v1749
    %v1751 = vpop.xlane.xlu0 %1750
    %v1754 = vrot.slane %v1748, 1
    %v1755 = vrot.slane %v1748, 2
    %v1756 = vrot.slane %v1748, 3
    %v1757 = vrot.slane %v1748, 4
    %v1758 = vrot.slane %v1748, 5
    %v1759 = vrot.slane %v1748, 6
    %v1760 = vrot.slane %v1751, 7
    %v1769 = vrcp.pop %v1748
    %v1770 = vmul.f32 %v1708, %v1769
    %v1771 = vrcp.pop %v1754
    %v1772 = vmul.f32 %v1710, %v1771
    %v1773 = vrcp.pop %v1755
    %v1774 = vmul.f32 %v1712, %v1773
    %v1775 = vrcp.pop %v1756
    %v1776 = vmul.f32 %v1714, %v1775
    %v1777 = vrcp.pop %v1757
    %v1778 = vmul.f32 %v1716, %v1777
    %v1779 = vrcp.pop %v1758
    %v1780 = vmul.f32 %v1718, %v1779
    %v1781 = vrcp.pop %v1759
    %v1782 = vmul.f32 %v1720, %v1781
    %v1783 = vrcp.pop %v1760
    %v1784 = vmul.f32 %v1722, %v1783
    %v1793 = vrot.slane %v1770, 1
    %v1794 = vsel %vm341, %v1772, %v1793
    %v1795 = vrot.slane %v1774, 7
    %v1796 = vsel %vm344, %v1795, %v1794
    %v1797 = vrot.slane %v1776, 6
    %v1798 = vsel %vm347, %v1797, %v1796
    %v1799 = vrot.slane %v1778, 5
    %v1800 = vsel %vm350, %v1799, %v1798
    %v1801 = vrot.slane %v1780, 4
    %v1802 = vsel %vm353, %v1801, %v1800
    %v1803 = vrot.slane %v1782, 3
    %v1804 = vsel %vm356, %v1803, %v1802
    %v1805 = vrot.slane %v1784, 2
    %v1806 = vsel %vm359, %v1805, %v1804
    %1807 = vrot.lane.b32.xlu0 %v222, 64
    %v1808 = vpop.permute.xlu0 %1807
    %v1810 = vsel %vm230, %v1806, 0
    %1812 = vmatprep.subr.mxu0 0.0
    %1813 = vmatpush1.msra.mxu0 0.0
    %1814 = vmatprep.subr.mxu0 0.0
    %1815 = vmatpush1.msra.mxu0 0.0
    %1816 = vmatprep.subr.mxu0 0.0
    %1817 = vmatpush1.msra.mxu0 0.0
    %1818 = vmatprep.subr.mxu0 0.0
    %1819 = vmatpush1.msra.mxu0 0.0
    %1820 = vmatprep.subr.mxu0 0.0
    %1821 = vmatpush1.msra.mxu0 0.0
    %1822 = vmatprep.subr.mxu0 0.0
    %1823 = vmatpush1.msra.mxu0 0.0
    %1824 = vmatprep.subr.mxu0 0.0
    %1825 = vmatpush1.msra.mxu0 0.0
    %1826 = vmatprep.subr.mxu0 0.0
    %1827 = vmatpush1.msra.mxu0 0.0
    %1828 = vmatprep.subr.mxu0 0.0
    %1829 = vmatpush1.msra.mxu0 0.0
    %1830 = vmatprep.subr.mxu0 0.0
    %1831 = vmatpush1.msra.mxu0 0.0
    %1832 = vmatprep.subr.mxu0 0.0
    %1833 = vmatpush1.msra.mxu0 0.0
    %1834 = vmatprep.subr.mxu0 0.0
    %1835 = vmatpush1.msra.mxu0 0.0
    %1836 = vmatprep.subr.mxu0 0.0
    %1837 = vmatpush1.msra.mxu0 0.0
    %1838 = vmatprep.subr.mxu0 0.0
    %1839 = vmatpush1.msra.mxu0 0.0
    %1840 = vmatprep.subr.mxu0 0.0
    %1841 = vmatpush1.msra.mxu0 0.0
    %1842 = vmatprep.subr.mxu0 0.0
    %1843 = vmatpush1.msra.mxu0 %v1808
    %1844 = vmatprep.subr.mxu0 0.0
    %1845 = vmatpush2.msra.mxu0 0.0
    %1846 = vmatprep.subr.mxu0 0.0
    %1847 = vmatpush2.msra.mxu0 0.0
    %1848 = vmatprep.subr.mxu0 0.0
    %1849 = vmatpush2.msra.mxu0 0.0
    %1850 = vmatprep.subr.mxu0 0.0
    %1851 = vmatpush2.msra.mxu0 0.0
    %1852 = vmatprep.subr.mxu0 0.0
    %1853 = vmatpush2.msra.mxu0 0.0
    %1854 = vmatprep.subr.mxu0 0.0
    %1855 = vmatpush2.msra.mxu0 0.0
    %1856 = vmatprep.subr.mxu0 0.0
    %1857 = vmatpush2.msra.mxu0 0.0
    %1858 = vmatprep.subr.mxu0 0.0
    %1859 = vmatpush2.msra.mxu0 0.0
    %1860 = vmatprep.subr.mxu0 0.0
    %1861 = vmatpush2.msra.mxu0 0.0
    %1862 = vmatprep.subr.mxu0 0.0
    %1863 = vmatpush2.msra.mxu0 0.0
    %1864 = vmatprep.subr.mxu0 0.0
    %1865 = vmatpush2.msra.mxu0 0.0
    %1866 = vmatprep.subr.mxu0 0.0
    %1867 = vmatpush2.msra.mxu0 0.0
    %1868 = vmatprep.subr.mxu0 0.0
    %1869 = vmatpush2.msra.mxu0 0.0
    %1870 = vmatprep.subr.mxu0 0.0
    %1871 = vmatpush2.msra.mxu0 0.0
    %1872 = vmatprep.subr.mxu0 0.0
    %1873 = vmatpush2.msra.mxu0 0.0
    %1874 = vmatprep.subr.mxu0 0.0
    %1875 = vmatpush2.msra.mxu0 0.0
    %1876 = vmatprep.mubr.f32.mxu0 0.0
    %1877 = vmatmul.mubr.f32.gmra.mxu0 %v1810
    %v1878 = vpop.f32.mrf.mxu0
    %v1879 = vadd.f32 0.0, %v1878
    %v1880 = vpop.f32.mrf.mxu0
    %1881 = vdwg.mxu0
    %1882 = vrot.lane.b32.xlu0 %v222, 120
    %v1883 = vpop.permute.xlu0 %1882
    %1884 = vrot.lane.b32.xlu0 %v222, 88
    %v1885 = vpop.permute.xlu0 %1884
    %v1886 = vsel %vm230, %v1883, 0
    %v1888 = vsel %vm230, %v1885, 0
    %1890 = vmatprep.subr.mxu0 0.0
    %1891 = vmatpush1.xpose.msra.mxu0 0.0
    %1892 = vmatprep.subr.mxu0 0.0
    %1893 = vmatpush1.xpose.msra.mxu0 0.0
    %1894 = vmatprep.subr.mxu0 0.0
    %1895 = vmatpush1.xpose.msra.mxu0 0.0
    %1896 = vmatprep.subr.mxu0 0.0
    %1897 = vmatpush1.xpose.msra.mxu0 0.0
    %1898 = vmatprep.subr.mxu0 0.0
    %1899 = vmatpush1.xpose.msra.mxu0 0.0
    %1900 = vmatprep.subr.mxu0 0.0
    %1901 = vmatpush1.xpose.msra.mxu0 0.0
    %1902 = vmatprep.subr.mxu0 0.0
    %1903 = vmatpush1.xpose.msra.mxu0 0.0
    %1904 = vmatprep.subr.mxu0 0.0
    %1905 = vmatpush1.xpose.msra.mxu0 0.0
    %1906 = vmatprep.subr.mxu0 0.0
    %1907 = vmatpush1.xpose.msra.mxu0 0.0
    %1908 = vmatprep.subr.mxu0 0.0
    %1909 = vmatpush1.xpose.msra.mxu0 0.0
    %1910 = vmatprep.subr.mxu0 0.0
    %1911 = vmatpush1.xpose.msra.mxu0 0.0
    %1912 = vmatprep.subr.mxu0 0.0
    %1913 = vmatpush1.xpose.msra.mxu0 0.0
    %1914 = vmatprep.subr.mxu0 0.0
    %1915 = vmatpush1.xpose.msra.mxu0 0.0
    %1916 = vmatprep.subr.mxu0 0.0
    %1917 = vmatpush1.xpose.msra.mxu0 0.0
    %1918 = vmatprep.subr.mxu0 0.0
    %1919 = vmatpush1.xpose.msra.mxu0 0.0
    %1920 = vmatprep.subr.mxu0 0.0
    %1921 = vmatpush1.xpose.msra.mxu0 %v1888
    %1922 = vmatprep.subr.mxu0 0.0
    %1923 = vmatpush2.xpose.msra.mxu0 0.0
    %1924 = vmatprep.subr.mxu0 0.0
    %1925 = vmatpush2.xpose.msra.mxu0 0.0
    %1926 = vmatprep.subr.mxu0 0.0
    %1927 = vmatpush2.xpose.msra.mxu0 0.0
    %1928 = vmatprep.subr.mxu0 0.0
    %1929 = vmatpush2.xpose.msra.mxu0 0.0
    %1930 = vmatprep.subr.mxu0 0.0
    %1931 = vmatpush2.xpose.msra.mxu0 0.0
    %1932 = vmatprep.subr.mxu0 0.0
    %1933 = vmatpush2.xpose.msra.mxu0 0.0
    %1934 = vmatprep.subr.mxu0 0.0
    %1935 = vmatpush2.xpose.msra.mxu0 0.0
    %1936 = vmatprep.subr.mxu0 0.0
    %1937 = vmatpush2.xpose.msra.mxu0 0.0
    %1938 = vmatprep.subr.mxu0 0.0
    %1939 = vmatpush2.xpose.msra.mxu0 0.0
    %1940 = vmatprep.subr.mxu0 0.0
    %1941 = vmatpush2.xpose.msra.mxu0 0.0
    %1942 = vmatprep.subr.mxu0 0.0
    %1943 = vmatpush2.xpose.msra.mxu0 0.0
    %1944 = vmatprep.subr.mxu0 0.0
    %1945 = vmatpush2.xpose.msra.mxu0 0.0
    %1946 = vmatprep.subr.mxu0 0.0
    %1947 = vmatpush2.xpose.msra.mxu0 0.0
    %1948 = vmatprep.subr.mxu0 0.0
    %1949 = vmatpush2.xpose.msra.mxu0 0.0
    %1950 = vmatprep.subr.mxu0 0.0
    %1951 = vmatpush2.xpose.msra.mxu0 0.0
    %1952 = vmatprep.subr.mxu0 0.0
    %1953 = vmatpush2.xpose.msra.mxu0 0.0
    %1954 = vmatprep.mubr.f32.mxu0 0.0
    %1955 = vmatmul.mubr.f32.gmra.mxu0 %v1886
    %v1956 = vpop.f32.mrf.mxu0
    %v1957 = vadd.f32 0.0, %v1956
    %v1958 = vpop.f32.mrf.mxu0
    %1959 = vdwg.mxu0
    %v1960 = vmul.f32 %v1957, 0.35355338
    %v1962 = vrot.slane %v1960, 7
    %v1963 = vrot.slane %v1960, 1
    %v1964 = vrot.slane %v1960, 2
    %v1965 = vrot.slane %v1960, 3
    %v1966 = vrot.slane %v1960, 4
    %v1967 = vrot.slane %v1960, 5
    %v1968 = vrot.slane %v1960, 6
    %v1977 = vsel %vm307, -1e+09, %v1962
    %v1978 = vsel %vm307, -1e+09, %v1960
    %v1979 = vsel %vm307, -1e+09, %v1963
    %v1980 = vsel %vm307, -1e+09, %v1964
    %v1981 = vsel %vm307, -1e+09, %v1965
    %v1982 = vsel %vm307, -1e+09, %v1966
    %v1983 = vsel %vm307, -1e+09, %v1967
    %v1984 = vsel %vm307, -1e+09, %v1968
    %v1993 = vrot.slane %v1978, 7
    %v1994 = vsel %vm344, %v1993, %v1977
    %v1995 = vrot.slane %v1979, 6
    %v1996 = vsel %vm347, %v1995, %v1994
    %v1997 = vrot.slane %v1980, 5
    %v1998 = vsel %vm350, %v1997, %v1996
    %v1999 = vrot.slane %v1981, 4
    %v2000 = vsel %vm353, %v1999, %v1998
    %v2001 = vrot.slane %v1982, 3
    %v2002 = vsel %vm356, %v2001, %v2000
    %v2003 = vrot.slane %v1983, 2
    %v2004 = vsel %vm359, %v2003, %v2002
    %v2005 = vrot.slane %v1984, 1
    %v2008 = vsel %vm1674, %v2004, -inf
    %2009 = vmax.xlane.f32.xlu0 %v2008
    %v2010 = vpop.xlane.xlu0 %2009
    %v2011 = vsel %vm1678, %v2005, -inf
    %2012 = vmax.xlane.f32.xlu0 %v2011
    %v2013 = vpop.xlane.xlu0 %2012
    %v2016 = vrot.slane %v2010, 1
    %v2017 = vrot.slane %v2010, 2
    %v2018 = vrot.slane %v2010, 3
    %v2019 = vrot.slane %v2010, 4
    %v2020 = vrot.slane %v2010, 5
    %v2021 = vrot.slane %v2010, 6
    %v2022 = vrot.slane %v2013, 7
    %v2031 = vsub.f32 %v1977, %v2010
    %v2032 = vsub.f32 %v1978, %v2016
    %v2033 = vsub.f32 %v1979, %v2017
    %v2034 = vsub.f32 %v1980, %v2018
    %v2035 = vsub.f32 %v1981, %v2019
    %v2036 = vsub.f32 %v1982, %v2020
    %v2037 = vsub.f32 %v1983, %v2021
    %v2038 = vsub.f32 %v1984, %v2022
    %v2039 = vmul.f32 %v2031, 1.442695
    %v2040 = vpow.pop %v2039
    %v2041 = vmul.f32 %v2032, 1.442695
    %v2042 = vpow.pop %v2041
    %v2043 = vmul.f32 %v2033, 1.442695
    %v2044 = vpow.pop %v2043
    %v2045 = vmul.f32 %v2034, 1.442695
    %v2046 = vpow.pop %v2045
    %v2047 = vmul.f32 %v2035, 1.442695
    %v2048 = vpow.pop %v2047
    %v2049 = vmul.f32 %v2036, 1.442695
    %v2050 = vpow.pop %v2049
    %v2051 = vmul.f32 %v2037, 1.442695
    %v2052 = vpow.pop %v2051
    %v2053 = vmul.f32 %v2038, 1.442695
    %v2054 = vpow.pop %v2053
    %v2063 = vrot.slane %v2042, 7
    %v2064 = vsel %vm344, %v2063, %v2040
    %v2065 = vrot.slane %v2044, 6
    %v2066 = vsel %vm347, %v2065, %v2064
    %v2067 = vrot.slane %v2046, 5
    %v2068 = vsel %vm350, %v2067, %v2066
    %v2069 = vrot.slane %v2048, 4
    %v2070 = vsel %vm353, %v2069, %v2068
    %v2071 = vrot.slane %v2050, 3
    %v2072 = vsel %vm356, %v2071, %v2070
    %v2073 = vrot.slane %v2052, 2
    %v2074 = vsel %vm359, %v2073, %v2072
    %v2075 = vrot.slane %v2054, 1
    %v2078 = vsel %vm1674, %v2074, 0.0
    %2079 = vadd.xlane.f32.xlu0 %v2078
    %v2080 = vpop.xlane.xlu0 %2079
    %v2081 = vsel %vm1678, %v2075, 0.0
    %2082 = vadd.xlane.f32.xlu0 %v2081
    %v2083 = vpop.xlane.xlu0 %2082
    %v2086 = vrot.slane %v2080, 1
    %v2087 = vrot.slane %v2080, 2
    %v2088 = vrot.slane %v2080, 3
    %v2089 = vrot.slane %v2080, 4
    %v2090 = vrot.slane %v2080, 5
    %v2091 = vrot.slane %v2080, 6
    %v2092 = vrot.slane %v2083, 7
    %v2101 = vrcp.pop %v2080
    %v2102 = vmul.f32 %v2040, %v2101
    %v2103 = vrcp.pop %v2086
    %v2104 = vmul.f32 %v2042, %v2103
    %v2105 = vrcp.pop %v2087
    %v2106 = vmul.f32 %v2044, %v2105
    %v2107 = vrcp.pop %v2088
    %v2108 = vmul.f32 %v2046, %v2107
    %v2109 = vrcp.pop %v2089
    %v2110 = vmul.f32 %v2048, %v2109
    %v2111 = vrcp.pop %v2090
    %v2112 = vmul.f32 %v2050, %v2111
    %v2113 = vrcp.pop %v2091
    %v2114 = vmul.f32 %v2052, %v2113
    %v2115 = vrcp.pop %v2092
    %v2116 = vmul.f32 %v2054, %v2115
    %v2125 = vrot.slane %v2102, 1
    %v2126 = vsel %vm341, %v2104, %v2125
    %v2127 = vrot.slane %v2106, 7
    %v2128 = vsel %vm344, %v2127, %v2126
    %v2129 = vrot.slane %v2108, 6
    %v2130 = vsel %vm347, %v2129, %v2128
    %v2131 = vrot.slane %v2110, 5
    %v2132 = vsel %vm350, %v2131, %v2130
    %v2133 = vrot.slane %v2112, 4
    %v2134 = vsel %vm353, %v2133, %v2132
    %v2135 = vrot.slane %v2114, 3
    %v2136 = vsel %vm356, %v2135, %v2134
    %v2137 = vrot.slane %v2116, 2
    %v2138 = vsel %vm359, %v2137, %v2136
    %2139 = vrot.lane.b32.xlu0 %v222, 56
    %v2140 = vpop.permute.xlu0 %2139
    %v2142 = vsel %vm230, %v2138, 0
    %2144 = vmatprep.subr.mxu0 0.0
    %2145 = vmatpush1.msra.mxu0 0.0
    %2146 = vmatprep.subr.mxu0 0.0
    %2147 = vmatpush1.msra.mxu0 0.0
    %2148 = vmatprep.subr.mxu0 0.0
    %2149 = vmatpush1.msra.mxu0 0.0
    %2150 = vmatprep.subr.mxu0 0.0
    %2151 = vmatpush1.msra.mxu0 0.0
    %2152 = vmatprep.subr.mxu0 0.0
    %2153 = vmatpush1.msra.mxu0 0.0
    %2154 = vmatprep.subr.mxu0 0.0
    %2155 = vmatpush1.msra.mxu0 0.0
    %2156 = vmatprep.subr.mxu0 0.0
    %2157 = vmatpush1.msra.mxu0 0.0
    %2158 = vmatprep.subr.mxu0 0.0
    %2159 = vmatpush1.msra.mxu0 0.0
    %2160 = vmatprep.subr.mxu0 0.0
    %2161 = vmatpush1.msra.mxu0 0.0
    %2162 = vmatprep.subr.mxu0 0.0
    %2163 = vmatpush1.msra.mxu0 0.0
    %2164 = vmatprep.subr.mxu0 0.0
    %2165 = vmatpush1.msra.mxu0 0.0
    %2166 = vmatprep.subr.mxu0 0.0
    %2167 = vmatpush1.msra.mxu0 0.0
    %2168 = vmatprep.subr.mxu0 0.0
    %2169 = vmatpush1.msra.mxu0 0.0
    %2170 = vmatprep.subr.mxu0 0.0
    %2171 = vmatpush1.msra.mxu0 0.0
    %2172 = vmatprep.subr.mxu0 0.0
    %2173 = vmatpush1.msra.mxu0 0.0
    %2174 = vmatprep.subr.mxu0 0.0
    %2175 = vmatpush1.msra.mxu0 %v2140
    %2176 = vmatprep.subr.mxu0 0.0
    %2177 = vmatpush2.msra.mxu0 0.0
    %2178 = vmatprep.subr.mxu0 0.0
    %2179 = vmatpush2.msra.mxu0 0.0
    %2180 = vmatprep.subr.mxu0 0.0
    %2181 = vmatpush2.msra.mxu0 0.0
    %2182 = vmatprep.subr.mxu0 0.0
    %2183 = vmatpush2.msra.mxu0 0.0
    %2184 = vmatprep.subr.mxu0 0.0
    %2185 = vmatpush2.msra.mxu0 0.0
    %2186 = vmatprep.subr.mxu0 0.0
    %2187 = vmatpush2.msra.mxu0 0.0
    %2188 = vmatprep.subr.mxu0 0.0
    %2189 = vmatpush2.msra.mxu0 0.0
    %2190 = vmatprep.subr.mxu0 0.0
    %2191 = vmatpush2.msra.mxu0 0.0
    %2192 = vmatprep.subr.mxu0 0.0
    %2193 = vmatpush2.msra.mxu0 0.0
    %2194 = vmatprep.subr.mxu0 0.0
    %2195 = vmatpush2.msra.mxu0 0.0
    %2196 = vmatprep.subr.mxu0 0.0
    %2197 = vmatpush2.msra.mxu0 0.0
    %2198 = vmatprep.subr.mxu0 0.0
    %2199 = vmatpush2.msra.mxu0 0.0
    %2200 = vmatprep.subr.mxu0 0.0
    %2201 = vmatpush2.msra.mxu0 0.0
    %2202 = vmatprep.subr.mxu0 0.0
    %2203 = vmatpush2.msra.mxu0 0.0
    %2204 = vmatprep.subr.mxu0 0.0
    %2205 = vmatpush2.msra.mxu0 0.0
    %2206 = vmatprep.subr.mxu0 0.0
    %2207 = vmatpush2.msra.mxu0 0.0
    %2208 = vmatprep.mubr.f32.mxu0 0.0
    %2209 = vmatmul.mubr.f32.gmra.mxu0 %v2142
    %v2210 = vpop.f32.mrf.mxu0
    %v2211 = vadd.f32 0.0, %v2210
    %v2212 = vpop.f32.mrf.mxu0
    %2213 = vdwg.mxu0
    %2214 = vrot.lane.b32.xlu0 %v222, 112
    %v2215 = vpop.permute.xlu0 %2214
    %2216 = vrot.lane.b32.xlu0 %v222, 80
    %v2217 = vpop.permute.xlu0 %2216
    %v2218 = vsel %vm230, %v2215, 0
    %v2220 = vsel %vm230, %v2217, 0
    %2222 = vmatprep.subr.mxu0 0.0
    %2223 = vmatpush1.xpose.msra.mxu0 0.0
    %2224 = vmatprep.subr.mxu0 0.0
    %2225 = vmatpush1.xpose.msra.mxu0 0.0
    %2226 = vmatprep.subr.mxu0 0.0
    %2227 = vmatpush1.xpose.msra.mxu0 0.0
    %2228 = vmatprep.subr.mxu0 0.0
    %2229 = vmatpush1.xpose.msra.mxu0 0.0
    %2230 = vmatprep.subr.mxu0 0.0
    %2231 = vmatpush1.xpose.msra.mxu0 0.0
    %2232 = vmatprep.subr.mxu0 0.0
    %2233 = vmatpush1.xpose.msra.mxu0 0.0
    %2234 = vmatprep.subr.mxu0 0.0
    %2235 = vmatpush1.xpose.msra.mxu0 0.0
    %2236 = vmatprep.subr.mxu0 0.0
    %2237 = vmatpush1.xpose.msra.mxu0 0.0
    %2238 = vmatprep.subr.mxu0 0.0
    %2239 = vmatpush1.xpose.msra.mxu0 0.0
    %2240 = vmatprep.subr.mxu0 0.0
    %2241 = vmatpush1.xpose.msra.mxu0 0.0
    %2242 = vmatprep.subr.mxu0 0.0
    %2243 = vmatpush1.xpose.msra.mxu0 0.0
    %2244 = vmatprep.subr.mxu0 0.0
    %2245 = vmatpush1.xpose.msra.mxu0 0.0
    %2246 = vmatprep.subr.mxu0 0.0
    %2247 = vmatpush1.xpose.msra.mxu0 0.0
    %2248 = vmatprep.subr.mxu0 0.0
    %2249 = vmatpush1.xpose.msra.mxu0 0.0
    %2250 = vmatprep.subr.mxu0 0.0
    %2251 = vmatpush1.xpose.msra.mxu0 0.0
    %2252 = vmatprep.subr.mxu0 0.0
    %2253 = vmatpush1.xpose.msra.mxu0 %v2220
    %2254 = vmatprep.subr.mxu0 0.0
    %2255 = vmatpush2.xpose.msra.mxu0 0.0
    %2256 = vmatprep.subr.mxu0 0.0
    %2257 = vmatpush2.xpose.msra.mxu0 0.0
    %2258 = vmatprep.subr.mxu0 0.0
    %2259 = vmatpush2.xpose.msra.mxu0 0.0
    %2260 = vmatprep.subr.mxu0 0.0
    %2261 = vmatpush2.xpose.msra.mxu0 0.0
    %2262 = vmatprep.subr.mxu0 0.0
    %2263 = vmatpush2.xpose.msra.mxu0 0.0
    %2264 = vmatprep.subr.mxu0 0.0
    %2265 = vmatpush2.xpose.msra.mxu0 0.0
    %2266 = vmatprep.subr.mxu0 0.0
    %2267 = vmatpush2.xpose.msra.mxu0 0.0
    %2268 = vmatprep.subr.mxu0 0.0
    %2269 = vmatpush2.xpose.msra.mxu0 0.0
    %2270 = vmatprep.subr.mxu0 0.0
    %2271 = vmatpush2.xpose.msra.mxu0 0.0
    %2272 = vmatprep.subr.mxu0 0.0
    %2273 = vmatpush2.xpose.msra.mxu0 0.0
    %2274 = vmatprep.subr.mxu0 0.0
    %2275 = vmatpush2.xpose.msra.mxu0 0.0
    %2276 = vmatprep.subr.mxu0 0.0
    %2277 = vmatpush2.xpose.msra.mxu0 0.0
    %2278 = vmatprep.subr.mxu0 0.0
    %2279 = vmatpush2.xpose.msra.mxu0 0.0
    %2280 = vmatprep.subr.mxu0 0.0
    %2281 = vmatpush2.xpose.msra.mxu0 0.0
    %2282 = vmatprep.subr.mxu0 0.0
    %2283 = vmatpush2.xpose.msra.mxu0 0.0
    %2284 = vmatprep.subr.mxu0 0.0
    %2285 = vmatpush2.xpose.msra.mxu0 0.0
    %2286 = vmatprep.mubr.f32.mxu0 0.0
    %2287 = vmatmul.mubr.f32.gmra.mxu0 %v2218
    %v2288 = vpop.f32.mrf.mxu0
    %v2289 = vadd.f32 0.0, %v2288
    %v2290 = vpop.f32.mrf.mxu0
    %2291 = vdwg.mxu0
    %v2292 = vmul.f32 %v2289, 0.35355338
    %v2294 = vrot.slane %v2292, 7
    %v2295 = vrot.slane %v2292, 1
    %v2296 = vrot.slane %v2292, 2
    %v2297 = vrot.slane %v2292, 3
    %v2298 = vrot.slane %v2292, 4
    %v2299 = vrot.slane %v2292, 5
    %v2300 = vrot.slane %v2292, 6
    %v2309 = vsel %vm307, -1e+09, %v2294
    %v2310 = vsel %vm307, -1e+09, %v2292
    %v2311 = vsel %vm307, -1e+09, %v2295
    %v2312 = vsel %vm307, -1e+09, %v2296
    %v2313 = vsel %vm307, -1e+09, %v2297
    %v2314 = vsel %vm307, -1e+09, %v2298
    %v2315 = vsel %vm307, -1e+09, %v2299
    %v2316 = vsel %vm307, -1e+09, %v2300
    %v2325 = vrot.slane %v2310, 7
    %v2326 = vsel %vm344, %v2325, %v2309
    %v2327 = vrot.slane %v2311, 6
    %v2328 = vsel %vm347, %v2327, %v2326
    %v2329 = vrot.slane %v2312, 5
    %v2330 = vsel %vm350, %v2329, %v2328
    %v2331 = vrot.slane %v2313, 4
    %v2332 = vsel %vm353, %v2331, %v2330
    %v2333 = vrot.slane %v2314, 3
    %v2334 = vsel %vm356, %v2333, %v2332
    %v2335 = vrot.slane %v2315, 2
    %v2336 = vsel %vm359, %v2335, %v2334
    %v2337 = vrot.slane %v2316, 1
    %v2340 = vsel %vm1674, %v2336, -inf
    %2341 = vmax.xlane.f32.xlu0 %v2340
    %v2342 = vpop.xlane.xlu0 %2341
    %v2343 = vsel %vm1678, %v2337, -inf
    %2344 = vmax.xlane.f32.xlu0 %v2343
    %v2345 = vpop.xlane.xlu0 %2344
    %v2348 = vrot.slane %v2342, 1
    %v2349 = vrot.slane %v2342, 2
    %v2350 = vrot.slane %v2342, 3
    %v2351 = vrot.slane %v2342, 4
    %v2352 = vrot.slane %v2342, 5
    %v2353 = vrot.slane %v2342, 6
    %v2354 = vrot.slane %v2345, 7
    %v2363 = vsub.f32 %v2309, %v2342
    %v2364 = vsub.f32 %v2310, %v2348
    %v2365 = vsub.f32 %v2311, %v2349
    %v2366 = vsub.f32 %v2312, %v2350
    %v2367 = vsub.f32 %v2313, %v2351
    %v2368 = vsub.f32 %v2314, %v2352
    %v2369 = vsub.f32 %v2315, %v2353
    %v2370 = vsub.f32 %v2316, %v2354
    %v2371 = vmul.f32 %v2363, 1.442695
    %v2372 = vpow.pop %v2371
    %v2373 = vmul.f32 %v2364, 1.442695
    %v2374 = vpow.pop %v2373
    %v2375 = vmul.f32 %v2365, 1.442695
    %v2376 = vpow.pop %v2375
    %v2377 = vmul.f32 %v2366, 1.442695
    %v2378 = vpow.pop %v2377
    %v2379 = vmul.f32 %v2367, 1.442695
    %v2380 = vpow.pop %v2379
    %v2381 = vmul.f32 %v2368, 1.442695
    %v2382 = vpow.pop %v2381
    %v2383 = vmul.f32 %v2369, 1.442695
    %v2384 = vpow.pop %v2383
    %v2385 = vmul.f32 %v2370, 1.442695
    %v2386 = vpow.pop %v2385
    %v2395 = vrot.slane %v2374, 7
    %v2396 = vsel %vm344, %v2395, %v2372
    %v2397 = vrot.slane %v2376, 6
    %v2398 = vsel %vm347, %v2397, %v2396
    %v2399 = vrot.slane %v2378, 5
    %v2400 = vsel %vm350, %v2399, %v2398
    %v2401 = vrot.slane %v2380, 4
    %v2402 = vsel %vm353, %v2401, %v2400
    %v2403 = vrot.slane %v2382, 3
    %v2404 = vsel %vm356, %v2403, %v2402
    %v2405 = vrot.slane %v2384, 2
    %v2406 = vsel %vm359, %v2405, %v2404
    %v2407 = vrot.slane %v2386, 1
    %v2410 = vsel %vm1674, %v2406, 0.0
    %2411 = vadd.xlane.f32.xlu0 %v2410
    %v2412 = vpop.xlane.xlu0 %2411
    %v2413 = vsel %vm1678, %v2407, 0.0
    %2414 = vadd.xlane.f32.xlu0 %v2413
    %v2415 = vpop.xlane.xlu0 %2414
    %v2418 = vrot.slane %v2412, 1
    %v2419 = vrot.slane %v2412, 2
    %v2420 = vrot.slane %v2412, 3
    %v2421 = vrot.slane %v2412, 4
    %v2422 = vrot.slane %v2412, 5
    %v2423 = vrot.slane %v2412, 6
    %v2424 = vrot.slane %v2415, 7
    %v2433 = vrcp.pop %v2412
    %v2434 = vmul.f32 %v2372, %v2433
    %v2435 = vrcp.pop %v2418
    %v2436 = vmul.f32 %v2374, %v2435
    %v2437 = vrcp.pop %v2419
    %v2438 = vmul.f32 %v2376, %v2437
    %v2439 = vrcp.pop %v2420
    %v2440 = vmul.f32 %v2378, %v2439
    %v2441 = vrcp.pop %v2421
    %v2442 = vmul.f32 %v2380, %v2441
    %v2443 = vrcp.pop %v2422
    %v2444 = vmul.f32 %v2382, %v2443
    %v2445 = vrcp.pop %v2423
    %v2446 = vmul.f32 %v2384, %v2445
    %v2447 = vrcp.pop %v2424
    %v2448 = vmul.f32 %v2386, %v2447
    %v2457 = vrot.slane %v2434, 1
    %v2458 = vsel %vm341, %v2436, %v2457
    %v2459 = vrot.slane %v2438, 7
    %v2460 = vsel %vm344, %v2459, %v2458
    %v2461 = vrot.slane %v2440, 6
    %v2462 = vsel %vm347, %v2461, %v2460
    %v2463 = vrot.slane %v2442, 5
    %v2464 = vsel %vm350, %v2463, %v2462
    %v2465 = vrot.slane %v2444, 4
    %v2466 = vsel %vm353, %v2465, %v2464
    %v2467 = vrot.slane %v2446, 3
    %v2468 = vsel %vm356, %v2467, %v2466
    %v2469 = vrot.slane %v2448, 2
    %v2470 = vsel %vm359, %v2469, %v2468
    %2471 = vrot.lane.b32.xlu0 %v222, 48
    %v2472 = vpop.permute.xlu0 %2471
    %v2474 = vsel %vm230, %v2470, 0
    %2476 = vmatprep.subr.mxu0 0.0
    %2477 = vmatpush1.msra.mxu0 0.0
    %2478 = vmatprep.subr.mxu0 0.0
    %2479 = vmatpush1.msra.mxu0 0.0
    %2480 = vmatprep.subr.mxu0 0.0
    %2481 = vmatpush1.msra.mxu0 0.0
    %2482 = vmatprep.subr.mxu0 0.0
    %2483 = vmatpush1.msra.mxu0 0.0
    %2484 = vmatprep.subr.mxu0 0.0
    %2485 = vmatpush1.msra.mxu0 0.0
    %2486 = vmatprep.subr.mxu0 0.0
    %2487 = vmatpush1.msra.mxu0 0.0
    %2488 = vmatprep.subr.mxu0 0.0
    %2489 = vmatpush1.msra.mxu0 0.0
    %2490 = vmatprep.subr.mxu0 0.0
    %2491 = vmatpush1.msra.mxu0 0.0
    %2492 = vmatprep.subr.mxu0 0.0
    %2493 = vmatpush1.msra.mxu0 0.0
    %2494 = vmatprep.subr.mxu0 0.0
    %2495 = vmatpush1.msra.mxu0 0.0
    %2496 = vmatprep.subr.mxu0 0.0
    %2497 = vmatpush1.msra.mxu0 0.0
    %2498 = vmatprep.subr.mxu0 0.0
    %2499 = vmatpush1.msra.mxu0 0.0
    %2500 = vmatprep.subr.mxu0 0.0
    %2501 = vmatpush1.msra.mxu0 0.0
    %2502 = vmatprep.subr.mxu0 0.0
    %2503 = vmatpush1.msra.mxu0 0.0
    %2504 = vmatprep.subr.mxu0 0.0
    %2505 = vmatpush1.msra.mxu0 0.0
    %2506 = vmatprep.subr.mxu0 0.0
    %2507 = vmatpush1.msra.mxu0 %v2472
    %2508 = vmatprep.subr.mxu0 0.0
    %2509 = vmatpush2.msra.mxu0 0.0
    %2510 = vmatprep.subr.mxu0 0.0
    %2511 = vmatpush2.msra.mxu0 0.0
    %2512 = vmatprep.subr.mxu0 0.0
    %2513 = vmatpush2.msra.mxu0 0.0
    %2514 = vmatprep.subr.mxu0 0.0
    %2515 = vmatpush2.msra.mxu0 0.0
    %2516 = vmatprep.subr.mxu0 0.0
    %2517 = vmatpush2.msra.mxu0 0.0
    %2518 = vmatprep.subr.mxu0 0.0
    %2519 = vmatpush2.msra.mxu0 0.0
    %2520 = vmatprep.subr.mxu0 0.0
    %2521 = vmatpush2.msra.mxu0 0.0
    %2522 = vmatprep.subr.mxu0 0.0
    %2523 = vmatpush2.msra.mxu0 0.0
    %2524 = vmatprep.subr.mxu0 0.0
    %2525 = vmatpush2.msra.mxu0 0.0
    %2526 = vmatprep.subr.mxu0 0.0
    %2527 = vmatpush2.msra.mxu0 0.0
    %2528 = vmatprep.subr.mxu0 0.0
    %2529 = vmatpush2.msra.mxu0 0.0
    %2530 = vmatprep.subr.mxu0 0.0
    %2531 = vmatpush2.msra.mxu0 0.0
    %2532 = vmatprep.subr.mxu0 0.0
    %2533 = vmatpush2.msra.mxu0 0.0
    %2534 = vmatprep.subr.mxu0 0.0
    %2535 = vmatpush2.msra.mxu0 0.0
    %2536 = vmatprep.subr.mxu0 0.0
    %2537 = vmatpush2.msra.mxu0 0.0
    %2538 = vmatprep.subr.mxu0 0.0
    %2539 = vmatpush2.msra.mxu0 0.0
    %2540 = vmatprep.mubr.f32.mxu0 0.0
    %2541 = vmatmul.mubr.f32.gmra.mxu0 %v2474
    %v2542 = vpop.f32.mrf.mxu0
    %v2543 = vadd.f32 0.0, %v2542
    %v2544 = vpop.f32.mrf.mxu0
    %2545 = vdwg.mxu0
    %2546 = vrot.lane.b32.xlu0 %v222, 104
    %v2547 = vpop.permute.xlu0 %2546
    %2548 = vrot.lane.b32.xlu0 %v222, 72
    %v2549 = vpop.permute.xlu0 %2548
    %v2550 = vsel %vm230, %v2547, 0
    %v2552 = vsel %vm230, %v2549, 0
    %2554 = vmatprep.subr.mxu0 0.0
    %2555 = vmatpush1.xpose.msra.mxu0 0.0
    %2556 = vmatprep.subr.mxu0 0.0
    %2557 = vmatpush1.xpose.msra.mxu0 0.0
    %2558 = vmatprep.subr.mxu0 0.0
    %2559 = vmatpush1.xpose.msra.mxu0 0.0
    %2560 = vmatprep.subr.mxu0 0.0
    %2561 = vmatpush1.xpose.msra.mxu0 0.0
    %2562 = vmatprep.subr.mxu0 0.0
    %2563 = vmatpush1.xpose.msra.mxu0 0.0
    %2564 = vmatprep.subr.mxu0 0.0
    %2565 = vmatpush1.xpose.msra.mxu0 0.0
    %2566 = vmatprep.subr.mxu0 0.0
    %2567 = vmatpush1.xpose.msra.mxu0 0.0
    %2568 = vmatprep.subr.mxu0 0.0
    %2569 = vmatpush1.xpose.msra.mxu0 0.0
    %2570 = vmatprep.subr.mxu0 0.0
    %2571 = vmatpush1.xpose.msra.mxu0 0.0
    %2572 = vmatprep.subr.mxu0 0.0
    %2573 = vmatpush1.xpose.msra.mxu0 0.0
    %2574 = vmatprep.subr.mxu0 0.0
    %2575 = vmatpush1.xpose.msra.mxu0 0.0
    %2576 = vmatprep.subr.mxu0 0.0
    %2577 = vmatpush1.xpose.msra.mxu0 0.0
    %2578 = vmatprep.subr.mxu0 0.0
    %2579 = vmatpush1.xpose.msra.mxu0 0.0
    %2580 = vmatprep.subr.mxu0 0.0
    %2581 = vmatpush1.xpose.msra.mxu0 0.0
    %2582 = vmatprep.subr.mxu0 0.0
    %2583 = vmatpush1.xpose.msra.mxu0 0.0
    %2584 = vmatprep.subr.mxu0 0.0
    %2585 = vmatpush1.xpose.msra.mxu0 %v2552
    %2586 = vmatprep.subr.mxu0 0.0
    %2587 = vmatpush2.xpose.msra.mxu0 0.0
    %2588 = vmatprep.subr.mxu0 0.0
    %2589 = vmatpush2.xpose.msra.mxu0 0.0
    %2590 = vmatprep.subr.mxu0 0.0
    %2591 = vmatpush2.xpose.msra.mxu0 0.0
    %2592 = vmatprep.subr.mxu0 0.0
    %2593 = vmatpush2.xpose.msra.mxu0 0.0
    %2594 = vmatprep.subr.mxu0 0.0
    %2595 = vmatpush2.xpose.msra.mxu0 0.0
    %2596 = vmatprep.subr.mxu0 0.0
    %2597 = vmatpush2.xpose.msra.mxu0 0.0
    %2598 = vmatprep.subr.mxu0 0.0
    %2599 = vmatpush2.xpose.msra.mxu0 0.0
    %2600 = vmatprep.subr.mxu0 0.0
    %2601 = vmatpush2.xpose.msra.mxu0 0.0
    %2602 = vmatprep.subr.mxu0 0.0
    %2603 = vmatpush2.xpose.msra.mxu0 0.0
    %2604 = vmatprep.subr.mxu0 0.0
    %2605 = vmatpush2.xpose.msra.mxu0 0.0
    %2606 = vmatprep.subr.mxu0 0.0
    %2607 = vmatpush2.xpose.msra.mxu0 0.0
    %2608 = vmatprep.subr.mxu0 0.0
    %2609 = vmatpush2.xpose.msra.mxu0 0.0
    %2610 = vmatprep.subr.mxu0 0.0
    %2611 = vmatpush2.xpose.msra.mxu0 0.0
    %2612 = vmatprep.subr.mxu0 0.0
    %2613 = vmatpush2.xpose.msra.mxu0 0.0
    %2614 = vmatprep.subr.mxu0 0.0
    %2615 = vmatpush2.xpose.msra.mxu0 0.0
    %2616 = vmatprep.subr.mxu0 0.0
    %2617 = vmatpush2.xpose.msra.mxu0 0.0
    %2618 = vmatprep.mubr.f32.mxu0 0.0
    %2619 = vmatmul.mubr.f32.gmra.mxu0 %v2550
    %v2620 = vpop.f32.mrf.mxu0
    %v2621 = vadd.f32 0.0, %v2620
    %v2622 = vpop.f32.mrf.mxu0
    %2623 = vdwg.mxu0
    %v2624 = vmul.f32 %v2621, 0.35355338
    %v2626 = vrot.slane %v2624, 7
    %v2627 = vrot.slane %v2624, 1
    %v2628 = vrot.slane %v2624, 2
    %v2629 = vrot.slane %v2624, 3
    %v2630 = vrot.slane %v2624, 4
    %v2631 = vrot.slane %v2624, 5
    %v2632 = vrot.slane %v2624, 6
    %v2641 = vsel %vm307, -1e+09, %v2626
    %v2642 = vsel %vm307, -1e+09, %v2624
    %v2643 = vsel %vm307, -1e+09, %v2627
    %v2644 = vsel %vm307, -1e+09, %v2628
    %v2645 = vsel %vm307, -1e+09, %v2629
    %v2646 = vsel %vm307, -1e+09, %v2630
    %v2647 = vsel %vm307, -1e+09, %v2631
    %v2648 = vsel %vm307, -1e+09, %v2632
    %v2657 = vrot.slane %v2642, 7
    %v2658 = vsel %vm344, %v2657, %v2641
    %v2659 = vrot.slane %v2643, 6
    %v2660 = vsel %vm347, %v2659, %v2658
    %v2661 = vrot.slane %v2644, 5
    %v2662 = vsel %vm350, %v2661, %v2660
    %v2663 = vrot.slane %v2645, 4
    %v2664 = vsel %vm353, %v2663, %v2662
    %v2665 = vrot.slane %v2646, 3
    %v2666 = vsel %vm356, %v2665, %v2664
    %v2667 = vrot.slane %v2647, 2
    %v2668 = vsel %vm359, %v2667, %v2666
    %v2669 = vrot.slane %v2648, 1
    %v2672 = vsel %vm1674, %v2668, -inf
    %2673 = vmax.xlane.f32.xlu0 %v2672
    %v2674 = vpop.xlane.xlu0 %2673
    %v2675 = vsel %vm1678, %v2669, -inf
    %2676 = vmax.xlane.f32.xlu0 %v2675
    %v2677 = vpop.xlane.xlu0 %2676
    %v2680 = vrot.slane %v2674, 1
    %v2681 = vrot.slane %v2674, 2
    %v2682 = vrot.slane %v2674, 3
    %v2683 = vrot.slane %v2674, 4
    %v2684 = vrot.slane %v2674, 5
    %v2685 = vrot.slane %v2674, 6
    %v2686 = vrot.slane %v2677, 7
    %v2695 = vsub.f32 %v2641, %v2674
    %v2696 = vsub.f32 %v2642, %v2680
    %v2697 = vsub.f32 %v2643, %v2681
    %v2698 = vsub.f32 %v2644, %v2682
    %v2699 = vsub.f32 %v2645, %v2683
    %v2700 = vsub.f32 %v2646, %v2684
    %v2701 = vsub.f32 %v2647, %v2685
    %v2702 = vsub.f32 %v2648, %v2686
    %v2703 = vmul.f32 %v2695, 1.442695
    %v2704 = vpow.pop %v2703
    %v2705 = vmul.f32 %v2696, 1.442695
    %v2706 = vpow.pop %v2705
    %v2707 = vmul.f32 %v2697, 1.442695
    %v2708 = vpow.pop %v2707
    %v2709 = vmul.f32 %v2698, 1.442695
    %v2710 = vpow.pop %v2709
    %v2711 = vmul.f32 %v2699, 1.442695
    %v2712 = vpow.pop %v2711
    %v2713 = vmul.f32 %v2700, 1.442695
    %v2714 = vpow.pop %v2713
    %v2715 = vmul.f32 %v2701, 1.442695
    %v2716 = vpow.pop %v2715
    %v2717 = vmul.f32 %v2702, 1.442695
    %v2718 = vpow.pop %v2717
    %v2727 = vrot.slane %v2706, 7
    %v2728 = vsel %vm344, %v2727, %v2704
    %v2729 = vrot.slane %v2708, 6
    %v2730 = vsel %vm347, %v2729, %v2728
    %v2731 = vrot.slane %v2710, 5
    %v2732 = vsel %vm350, %v2731, %v2730
    %v2733 = vrot.slane %v2712, 4
    %v2734 = vsel %vm353, %v2733, %v2732
    %v2735 = vrot.slane %v2714, 3
    %v2736 = vsel %vm356, %v2735, %v2734
    %v2737 = vrot.slane %v2716, 2
    %v2738 = vsel %vm359, %v2737, %v2736
    %v2739 = vrot.slane %v2718, 1
    %v2742 = vsel %vm1674, %v2738, 0.0
    %2743 = vadd.xlane.f32.xlu0 %v2742
    %v2744 = vpop.xlane.xlu0 %2743
    %v2745 = vsel %vm1678, %v2739, 0.0
    %2746 = vadd.xlane.f32.xlu0 %v2745
    %v2747 = vpop.xlane.xlu0 %2746
    %v2750 = vrot.slane %v2744, 1
    %v2751 = vrot.slane %v2744, 2
    %v2752 = vrot.slane %v2744, 3
    %v2753 = vrot.slane %v2744, 4
    %v2754 = vrot.slane %v2744, 5
    %v2755 = vrot.slane %v2744, 6
    %v2756 = vrot.slane %v2747, 7
    %v2765 = vrcp.pop %v2744
    %v2766 = vmul.f32 %v2704, %v2765
    %v2767 = vrcp.pop %v2750
    %v2768 = vmul.f32 %v2706, %v2767
    %v2769 = vrcp.pop %v2751
    %v2770 = vmul.f32 %v2708, %v2769
    %v2771 = vrcp.pop %v2752
    %v2772 = vmul.f32 %v2710, %v2771
    %v2773 = vrcp.pop %v2753
    %v2774 = vmul.f32 %v2712, %v2773
    %v2775 = vrcp.pop %v2754
    %v2776 = vmul.f32 %v2714, %v2775
    %v2777 = vrcp.pop %v2755
    %v2778 = vmul.f32 %v2716, %v2777
    %v2779 = vrcp.pop %v2756
    %v2780 = vmul.f32 %v2718, %v2779
    %v2789 = vrot.slane %v2766, 1
    %v2790 = vsel %vm341, %v2768, %v2789
    %v2791 = vrot.slane %v2770, 7
    %v2792 = vsel %vm344, %v2791, %v2790
    %v2793 = vrot.slane %v2772, 6
    %v2794 = vsel %vm347, %v2793, %v2792
    %v2795 = vrot.slane %v2774, 5
    %v2796 = vsel %vm350, %v2795, %v2794
    %v2797 = vrot.slane %v2776, 4
    %v2798 = vsel %vm353, %v2797, %v2796
    %v2799 = vrot.slane %v2778, 3
    %v2800 = vsel %vm356, %v2799, %v2798
    %v2801 = vrot.slane %v2780, 2
    %v2802 = vsel %vm359, %v2801, %v2800
    %2803 = vrot.lane.b32.xlu0 %v222, 40
    %v2804 = vpop.permute.xlu0 %2803
    %v2806 = vsel %vm230, %v2802, 0
    %2808 = vmatprep.subr.mxu0 0.0
    %2809 = vmatpush1.msra.mxu0 0.0
    %2810 = vmatprep.subr.mxu0 0.0
    %2811 = vmatpush1.msra.mxu0 0.0
    %2812 = vmatprep.subr.mxu0 0.0
    %2813 = vmatpush1.msra.mxu0 0.0
    %2814 = vmatprep.subr.mxu0 0.0
    %2815 = vmatpush1.msra.mxu0 0.0
    %2816 = vmatprep.subr.mxu0 0.0
    %2817 = vmatpush1.msra.mxu0 0.0
    %2818 = vmatprep.subr.mxu0 0.0
    %2819 = vmatpush1.msra.mxu0 0.0
    %2820 = vmatprep.subr.mxu0 0.0
    %2821 = vmatpush1.msra.mxu0 0.0
    %2822 = vmatprep.subr.mxu0 0.0
    %2823 = vmatpush1.msra.mxu0 0.0
    %2824 = vmatprep.subr.mxu0 0.0
    %2825 = vmatpush1.msra.mxu0 0.0
    %2826 = vmatprep.subr.mxu0 0.0
    %2827 = vmatpush1.msra.mxu0 0.0
    %2828 = vmatprep.subr.mxu0 0.0
    %2829 = vmatpush1.msra.mxu0 0.0
    %2830 = vmatprep.subr.mxu0 0.0
    %2831 = vmatpush1.msra.mxu0 0.0
    %2832 = vmatprep.subr.mxu0 0.0
    %2833 = vmatpush1.msra.mxu0 0.0
    %2834 = vmatprep.subr.mxu0 0.0
    %2835 = vmatpush1.msra.mxu0 0.0
    %2836 = vmatprep.subr.mxu0 0.0
    %2837 = vmatpush1.msra.mxu0 0.0
    %2838 = vmatprep.subr.mxu0 0.0
    %2839 = vmatpush1.msra.mxu0 %v2804
    %2840 = vmatprep.subr.mxu0 0.0
    %2841 = vmatpush2.msra.mxu0 0.0
    %2842 = vmatprep.subr.mxu0 0.0
    %2843 = vmatpush2.msra.mxu0 0.0
    %2844 = vmatprep.subr.mxu0 0.0
    %2845 = vmatpush2.msra.mxu0 0.0
    %2846 = vmatprep.subr.mxu0 0.0
    %2847 = vmatpush2.msra.mxu0 0.0
    %2848 = vmatprep.subr.mxu0 0.0
    %2849 = vmatpush2.msra.mxu0 0.0
    %2850 = vmatprep.subr.mxu0 0.0
    %2851 = vmatpush2.msra.mxu0 0.0
    %2852 = vmatprep.subr.mxu0 0.0
    %2853 = vmatpush2.msra.mxu0 0.0
    %2854 = vmatprep.subr.mxu0 0.0
    %2855 = vmatpush2.msra.mxu0 0.0
    %2856 = vmatprep.subr.mxu0 0.0
    %2857 = vmatpush2.msra.mxu0 0.0
    %2858 = vmatprep.subr.mxu0 0.0
    %2859 = vmatpush2.msra.mxu0 0.0
    %2860 = vmatprep.subr.mxu0 0.0
    %2861 = vmatpush2.msra.mxu0 0.0
    %2862 = vmatprep.subr.mxu0 0.0
    %2863 = vmatpush2.msra.mxu0 0.0
    %2864 = vmatprep.subr.mxu0 0.0
    %2865 = vmatpush2.msra.mxu0 0.0
    %2866 = vmatprep.subr.mxu0 0.0
    %2867 = vmatpush2.msra.mxu0 0.0
    %2868 = vmatprep.subr.mxu0 0.0
    %2869 = vmatpush2.msra.mxu0 0.0
    %2870 = vmatprep.subr.mxu0 0.0
    %2871 = vmatpush2.msra.mxu0 0.0
    %2872 = vmatprep.mubr.f32.mxu0 0.0
    %2873 = vmatmul.mubr.f32.gmra.mxu0 %v2806
    %v2874 = vpop.f32.mrf.mxu0
    %v2875 = vadd.f32 0.0, %v2874
    %v2876 = vpop.f32.mrf.mxu0
    %2877 = vdwg.mxu0
    %2879 = vrot.lane.b32.xlu0 %v2211, 8
    %v2880 = vpop.permute.xlu0 %2879
    %2883 = vrot.lane.b32.xlu0 %v2543, 16
    %v2884 = vpop.permute.xlu0 %2883
    %2887 = vrot.lane.b32.xlu0 %v2875, 24
    %v2888 = vpop.permute.xlu0 %2887
    %v2890 = vsel %vm230, %v1879, %v2880
    %v2891 = vsel %vm1545, %v2890, %v2884
    %v2892 = vsel %vm1547, %v2891, %v2888
    %v2893 = vld [vmem:[%s5] sm:$0xff]
    %v2894 = vld [vmem:[%s5 + $0x8] sm:$0xff]
    %v2895 = vld [vmem:[%s5 + $0x10] sm:$0xff]
    %v2896 = vld [vmem:[%s5 + $0x18] sm:$0xff]
    %v2897 = vlaneseq
    %v2898 = vshrl.u32 %v2897, 7
    %v2899 = vsub.s32 0, %v2898
    %v2900 = vrot.slane %v74, %v2899
    %v2902 = vsel %vm78, %v1548, 0
    %v2905 = vsel %vm78, %v2892, 0
    %2907 = vmatprep.subr.mxu0 0.0
    %2908 = vmatpush1.msra.mxu0 0.0
    %2909 = vmatprep.subr.mxu0 0.0
    %2910 = vmatpush1.msra.mxu0 0.0
    %2911 = vmatprep.subr.mxu0 0.0
    %2912 = vmatpush1.msra.mxu0 0.0
    %2913 = vmatprep.subr.mxu0 0.0
    %2914 = vmatpush1.msra.mxu0 0.0
    %2915 = vmatprep.subr.mxu0 0.0
    %2916 = vmatpush1.msra.mxu0 0.0
    %2917 = vmatprep.subr.mxu0 0.0
    %2918 = vmatpush1.msra.mxu0 0.0
    %2919 = vmatprep.subr.mxu0 0.0
    %2920 = vmatpush1.msra.mxu0 0.0
    %2921 = vmatprep.subr.mxu0 0.0
    %2922 = vmatpush1.msra.mxu0 0.0
    %2923 = vmatprep.subr.mxu0 0.0
    %2924 = vmatpush1.msra.mxu0 0.0
    %2925 = vmatprep.subr.mxu0 0.0
    %2926 = vmatpush1.msra.mxu0 0.0
    %2927 = vmatprep.subr.mxu0 0.0
    %2928 = vmatpush1.msra.mxu0 0.0
    %2929 = vmatprep.subr.mxu0 0.0
    %2930 = vmatpush1.msra.mxu0 0.0
    %2931 = vmatprep.subr.mxu0 0.0
    %2932 = vmatpush1.msra.mxu0 %v2896
    %2933 = vmatprep.subr.mxu0 0.0
    %2934 = vmatpush1.msra.mxu0 %v2895
    %2935 = vmatprep.subr.mxu0 0.0
    %2936 = vmatpush1.msra.mxu0 %v2894
    %2937 = vmatprep.subr.mxu0 0.0
    %2938 = vmatpush1.msra.mxu0 %v2893
    %2939 = vmatprep.subr.mxu0 0.0
    %2940 = vmatpush2.msra.mxu0 0.0
    %2941 = vmatprep.subr.mxu0 0.0
    %2942 = vmatpush2.msra.mxu0 0.0
    %2943 = vmatprep.subr.mxu0 0.0
    %2944 = vmatpush2.msra.mxu0 0.0
    %2945 = vmatprep.subr.mxu0 0.0
    %2946 = vmatpush2.msra.mxu0 0.0
    %2947 = vmatprep.subr.mxu0 0.0
    %2948 = vmatpush2.msra.mxu0 0.0
    %2949 = vmatprep.subr.mxu0 0.0
    %2950 = vmatpush2.msra.mxu0 0.0
    %2951 = vmatprep.subr.mxu0 0.0
    %2952 = vmatpush2.msra.mxu0 0.0
    %2953 = vmatprep.subr.mxu0 0.0
    %2954 = vmatpush2.msra.mxu0 0.0
    %2955 = vmatprep.subr.mxu0 0.0
    %2956 = vmatpush2.msra.mxu0 0.0
    %2957 = vmatprep.subr.mxu0 0.0
    %2958 = vmatpush2.msra.mxu0 0.0
    %2959 = vmatprep.subr.mxu0 0.0
    %2960 = vmatpush2.msra.mxu0 0.0
    %2961 = vmatprep.subr.mxu0 0.0
    %2962 = vmatpush2.msra.mxu0 0.0
    %2963 = vmatprep.subr.mxu0 0.0
    %2964 = vmatpush2.msra.mxu0 0.0
    %2965 = vmatprep.subr.mxu0 0.0
    %2966 = vmatpush2.msra.mxu0 0.0
    %2967 = vmatprep.subr.mxu0 0.0
    %2968 = vmatpush2.msra.mxu0 0.0
    %2969 = vmatprep.subr.mxu0 0.0
    %2970 = vmatpush2.msra.mxu0 0.0
    %2971 = vmatprep.mubr.f32.mxu0 0.0
    %2972 = vmatmul.mubr.f32.gmra.mxu0 %v2902
    %v2973 = vpop.f32.mrf.mxu0
    %v2974 = vadd.f32 %v2900, %v2973
    %v2975 = vpop.f32.mrf.mxu0
    %2976 = vmatprep.mubr.f32.mxu0 0.0
    %2977 = vmatmul.mubr.f32.gmra.mxu0 %v2905
    %v2978 = vpop.f32.mrf.mxu0
    %v2979 = vadd.f32 %v2900, %v2978
    %v2980 = vpop.f32.mrf.mxu0
    %2981 = vdwg.mxu0
    %v2982 = vadd.f32 %v70, %v2974
    %v2983 = vadd.f32 %v71, %v2979
    %v2984 = vsel %vm78, %v2982, 0.0
    %2985 = vadd.xlane.f32.xlu0 %v2984
    %v2986 = vpop.xlane.xlu0 %2985
    %v2987 = vsel %vm78, %v2983, 0.0
    %2988 = vadd.xlane.f32.xlu0 %v2987
    %v2989 = vpop.xlane.xlu0 %2988
    %v2990 = vmul.f32 %v2986, %v85
    %v2991 = vmul.f32 %v2989, %v85
    %v2992 = vsub.f32 %v2982, %v2990
    %v2993 = vsub.f32 %v2983, %v2991
    %v2994 = vmul.f32 %v2992, %v2992
    %v2995 = vmul.f32 %v2993, %v2993
    %v2996 = vsel %vm78, %v2994, 0.0
    %2997 = vadd.xlane.f32.xlu0 %v2996
    %v2998 = vpop.xlane.xlu0 %2997
    %v2999 = vsel %vm78, %v2995, 0.0
    %3000 = vadd.xlane.f32.xlu0 %v2999
    %v3001 = vpop.xlane.xlu0 %3000
    %v3002 = vmul.f32 %v2998, %v98
    %v3003 = vmul.f32 %v3001, %v98
    %v3004 = vrsqrt.pop %v3002
    %v3005 = vmul.f32 %v3002, %v3004
    %vm3006 = vcmp.eq.f32.partialorder %v3002, inf
    %v3007 = vsel %vm3006, %v3002, %v3005
    %vm3008 = vcmp.eq.f32.partialorder %v3002, 0.0
    %v3009 = vand.u32 %v3002, 2147483648
    %v3010 = vsel %vm3008, %v3009, %v3007
    %v3011 = vrsqrt.pop %v3003
    %v3012 = vmul.f32 %v3003, %v3011
    %vm3013 = vcmp.eq.f32.partialorder %v3003, inf
    %v3014 = vsel %vm3013, %v3003, %v3012
    %vm3015 = vcmp.eq.f32.partialorder %v3003, 0.0
    %v3016 = vand.u32 %v3003, 2147483648
    %v3017 = vsel %vm3015, %v3016, %v3014
    %v3018 = vlaneseq
    %v3019 = vshrl.u32 %v3018, 7
    %v3020 = vsub.s32 0, %v3019
    %v3021 = vrot.slane %v75, %v3020
    %v3022 = vmul.f32 %v3021, %v2992
    %v3023 = vmul.f32 %v3021, %v2993
    %v3024 = vadd.f32 %v3010, 1e-06
    %v3025 = vadd.f32 %v3017, 1e-06
    %v3026 = vrcp.pop %v3024
    %v3027 = vmul.f32 %v3022, %v3026
    %v3028 = vrcp.pop %v3025
    %v3029 = vmul.f32 %v3023, %v3028
    %v3030 = vlaneseq
    %v3031 = vshrl.u32 %v3030, 7
    %v3032 = vsub.s32 0, %v3031
    %v3033 = vrot.slane %v76, %v3032
    %v3034 = vadd.f32 %v3027, %v3033
    %v3035 = vadd.f32 %v3029, %v3033
    %v3036 = vld [vmem:[%s6] sm:$0xff]
    %v3037 = vld [vmem:[%s6 + $0x8] sm:$0xff]
    %v3038 = vld [vmem:[%s6 + $0x10] sm:$0xff]
    %v3039 = vld [vmem:[%s6 + $0x18] sm:$0xff]
    %v3040 = vld [vmem:[%s7] sm:$0x1]
    %v3042 = vlaneseq
    %v3043 = vshrl.u32 %v3042, 7
    %v3044 = vsub.s32 0, %v3043
    %v3045 = vrot.slane %v3040, %v3044
    %v3048 = vsel %vm78, %v3034, 0
    %v3051 = vsel %vm78, %v3035, 0
    %3053 = vmatprep.subr.mxu0 0.0
    %3054 = vmatpush1.msra.mxu0 0.0
    %3055 = vmatprep.subr.mxu0 0.0
    %3056 = vmatpush1.msra.mxu0 0.0
    %3057 = vmatprep.subr.mxu0 0.0
    %3058 = vmatpush1.msra.mxu0 0.0
    %3059 = vmatprep.subr.mxu0 0.0
    %3060 = vmatpush1.msra.mxu0 0.0
    %3061 = vmatprep.subr.mxu0 0.0
    %3062 = vmatpush1.msra.mxu0 0.0
    %3063 = vmatprep.subr.mxu0 0.0
    %3064 = vmatpush1.msra.mxu0 0.0
    %3065 = vmatprep.subr.mxu0 0.0
    %3066 = vmatpush1.msra.mxu0 0.0
    %3067 = vmatprep.subr.mxu0 0.0
    %3068 = vmatpush1.msra.mxu0 0.0
    %3069 = vmatprep.subr.mxu0 0.0
    %3070 = vmatpush1.msra.mxu0 0.0
    %3071 = vmatprep.subr.mxu0 0.0
    %3072 = vmatpush1.msra.mxu0 0.0
    %3073 = vmatprep.subr.mxu0 0.0
    %3074 = vmatpush1.msra.mxu0 0.0
    %3075 = vmatprep.subr.mxu0 0.0
    %3076 = vmatpush1.msra.mxu0 0.0
    %3077 = vmatprep.subr.mxu0 0.0
    %3078 = vmatpush1.msra.mxu0 %v3039
    %3079 = vmatprep.subr.mxu0 0.0
    %3080 = vmatpush1.msra.mxu0 %v3038
    %3081 = vmatprep.subr.mxu0 0.0
    %3082 = vmatpush1.msra.mxu0 %v3037
    %3083 = vmatprep.subr.mxu0 0.0
    %3084 = vmatpush1.msra.mxu0 %v3036
    %3085 = vmatprep.subr.mxu0 0.0
    %3086 = vmatpush2.msra.mxu0 0.0
    %3087 = vmatprep.subr.mxu0 0.0
    %3088 = vmatpush2.msra.mxu0 0.0
    %3089 = vmatprep.subr.mxu0 0.0
    %3090 = vmatpush2.msra.mxu0 0.0
    %3091 = vmatprep.subr.mxu0 0.0
    %3092 = vmatpush2.msra.mxu0 0.0
    %3093 = vmatprep.subr.mxu0 0.0
    %3094 = vmatpush2.msra.mxu0 0.0
    %3095 = vmatprep.subr.mxu0 0.0
    %3096 = vmatpush2.msra.mxu0 0.0
    %3097 = vmatprep.subr.mxu0 0.0
    %3098 = vmatpush2.msra.mxu0 0.0
    %3099 = vmatprep.subr.mxu0 0.0
    %3100 = vmatpush2.msra.mxu0 0.0
    %3101 = vmatprep.subr.mxu0 0.0
    %3102 = vmatpush2.msra.mxu0 0.0
    %3103 = vmatprep.subr.mxu0 0.0
    %3104 = vmatpush2.msra.mxu0 0.0
    %3105 = vmatprep.subr.mxu0 0.0
    %3106 = vmatpush2.msra.mxu0 0.0
    %3107 = vmatprep.subr.mxu0 0.0
    %3108 = vmatpush2.msra.mxu0 0.0
    %3109 = vmatprep.subr.mxu0 0.0
    %3110 = vmatpush2.msra.mxu0 0.0
    %3111 = vmatprep.subr.mxu0 0.0
    %3112 = vmatpush2.msra.mxu0 0.0
    %3113 = vmatprep.subr.mxu0 0.0
    %3114 = vmatpush2.msra.mxu0 0.0
    %3115 = vmatprep.subr.mxu0 0.0
    %3116 = vmatpush2.msra.mxu0 0.0
    %3117 = vmatprep.mubr.f32.mxu0 0.0
    %3118 = vmatmul.mubr.f32.gmra.mxu0 %v3048
    %v3119 = vpop.f32.mrf.mxu0
    %v3120 = vadd.f32 %v3045, %v3119
    %v3121 = vpop.f32.mrf.mxu0
    %3122 = vmatprep.mubr.f32.mxu0 0.0
    %3123 = vmatmul.mubr.f32.gmra.mxu0 %v3051
    %v3124 = vpop.f32.mrf.mxu0
    %v3125 = vadd.f32 %v3045, %v3124
    %v3126 = vpop.f32.mrf.mxu0
    %3127 = vdwg.mxu0
    %v3128 = vmax.f32 %v3120, 0.0
    %v3129 = vmax.f32 %v3125, 0.0
    %v3130 = vld [vmem:[%s8] sm:$0xff]
    %v3131 = vld [vmem:[%s8 + $0x8] sm:$0xff]
    %v3132 = vld [vmem:[%s8 + $0x10] sm:$0xff]
    %v3133 = vld [vmem:[%s8 + $0x18] sm:$0xff]
    %v3134 = vld [vmem:[%s8 + $0x20] sm:$0xff]
    %v3135 = vld [vmem:[%s8 + $0x28] sm:$0xff]
    %v3136 = vld [vmem:[%s8 + $0x30] sm:$0xff]
    %v3137 = vld [vmem:[%s8 + $0x38] sm:$0xff]
    %v3138 = vlaneseq
    %v3139 = vshrl.u32 %v3138, 7
    %v3140 = vsub.s32 0, %v3139
    %v3141 = vrot.slane %v77, %v3140
    %vm3142 = vcmask 523264
    %v3144 = vsel %vm3142, %v3128, 0
    %v3147 = vsel %vm3142, %v3129, 0
    %3149 = vmatprep.subr.mxu0 0.0
    %3150 = vmatpush1.msra.mxu0 0.0
    %3151 = vmatprep.subr.mxu0 0.0
    %3152 = vmatpush1.msra.mxu0 0.0
    %3153 = vmatprep.subr.mxu0 0.0
    %3154 = vmatpush1.msra.mxu0 0.0
    %3155 = vmatprep.subr.mxu0 0.0
    %3156 = vmatpush1.msra.mxu0 0.0
    %3157 = vmatprep.subr.mxu0 0.0
    %3158 = vmatpush1.msra.mxu0 0.0
    %3159 = vmatprep.subr.mxu0 0.0
    %3160 = vmatpush1.msra.mxu0 0.0
    %3161 = vmatprep.subr.mxu0 0.0
    %3162 = vmatpush1.msra.mxu0 0.0
    %3163 = vmatprep.subr.mxu0 0.0
    %3164 = vmatpush1.msra.mxu0 0.0
    %3165 = vmatprep.subr.mxu0 0.0
    %3166 = vmatpush1.msra.mxu0 %v3137
    %3167 = vmatprep.subr.mxu0 0.0
    %3168 = vmatpush1.msra.mxu0 %v3136
    %3169 = vmatprep.subr.mxu0 0.0
    %3170 = vmatpush1.msra.mxu0 %v3135
    %3171 = vmatprep.subr.mxu0 0.0
    %3172 = vmatpush1.msra.mxu0 %v3134
    %3173 = vmatprep.subr.mxu0 0.0
    %3174 = vmatpush1.msra.mxu0 %v3133
    %3175 = vmatprep.subr.mxu0 0.0
    %3176 = vmatpush1.msra.mxu0 %v3132
    %3177 = vmatprep.subr.mxu0 0.0
    %3178 = vmatpush1.msra.mxu0 %v3131
    %3179 = vmatprep.subr.mxu0 0.0
    %3180 = vmatpush1.msra.mxu0 %v3130
    %3181 = vmatprep.subr.mxu0 0.0
    %3182 = vmatpush2.msra.mxu0 0.0
    %3183 = vmatprep.subr.mxu0 0.0
    %3184 = vmatpush2.msra.mxu0 0.0
    %3185 = vmatprep.subr.mxu0 0.0
    %3186 = vmatpush2.msra.mxu0 0.0
    %3187 = vmatprep.subr.mxu0 0.0
    %3188 = vmatpush2.msra.mxu0 0.0
    %3189 = vmatprep.subr.mxu0 0.0
    %3190 = vmatpush2.msra.mxu0 0.0
    %3191 = vmatprep.subr.mxu0 0.0
    %3192 = vmatpush2.msra.mxu0 0.0
    %3193 = vmatprep.subr.mxu0 0.0
    %3194 = vmatpush2.msra.mxu0 0.0
    %3195 = vmatprep.subr.mxu0 0.0
    %3196 = vmatpush2.msra.mxu0 0.0
    %3197 = vmatprep.subr.mxu0 0.0
    %3198 = vmatpush2.msra.mxu0 0.0
    %3199 = vmatprep.subr.mxu0 0.0
    %3200 = vmatpush2.msra.mxu0 0.0
    %3201 = vmatprep.subr.mxu0 0.0
    %3202 = vmatpush2.msra.mxu0 0.0
    %3203 = vmatprep.subr.mxu0 0.0
    %3204 = vmatpush2.msra.mxu0 0.0
    %3205 = vmatprep.subr.mxu0 0.0
    %3206 = vmatpush2.msra.mxu0 0.0
    %3207 = vmatprep.subr.mxu0 0.0
    %3208 = vmatpush2.msra.mxu0 0.0
    %3209 = vmatprep.subr.mxu0 0.0
    %3210 = vmatpush2.msra.mxu0 0.0
    %3211 = vmatprep.subr.mxu0 0.0
    %3212 = vmatpush2.msra.mxu0 0.0
    %3213 = vmatprep.mubr.f32.mxu0 0.0
    %3214 = vmatmul.mubr.f32.gmra.mxu0 %v3144
    %v3215 = vpop.f32.mrf.mxu0
    %v3216 = vadd.f32 %v3141, %v3215
    %v3217 = vpop.f32.mrf.mxu0
    %3218 = vmatprep.mubr.f32.mxu0 0.0
    %3219 = vmatmul.mubr.f32.gmra.mxu0 %v3147
    %v3220 = vpop.f32.mrf.mxu0
    %v3221 = vadd.f32 %v3141, %v3220
    %v3222 = vpop.f32.mrf.mxu0
    %3223 = vdwg.mxu0
    %v3224 = vadd.f32 %v2982, %v3216
    %v3225 = vadd.f32 %v2983, %v3221
    %3226 = vst.msk [vmem:[#allocation8] sm:$0xff] %vm78, %v3224
    %3227 = vst.msk [vmem:[#allocation8 + $0x8] sm:$0xff] %vm78, %v3225
    // Predicated region
    $region50: #{tpu_custom_call.1} parent=1 // pred_check
      _
    $region51: #{tpu_custom_call.1} parent=1 // pred_check_branch
      %3229 = sbr.rel (0) target = $region53
    $region52: #{tpu_custom_call.1} parent=1 // pred_region
      %s3231 = ssub.s32 256, 256
      %3232 = vsyncadd [#allocation4], %s3231
      %s3233 = sshll.u32 [#allocation8], 4
      %s3234 = int_to_ptr.vmem [resolvable:$true] %s3233
      %3239 = dma.vmem_to_hbm [thread:$0]  %s3234, 256, %s9, [#allocation4], 128, 128, 8
    $region53: #{tpu_custom_call.1} parent=1 // pred_fallthru
      _
    // Predicated region
    $region54: #{tpu_custom_call.1} parent=1 // pred_check
      _
    $region55: #{tpu_custom_call.1} parent=1 // pred_check_branch
      %3241 = sbr.rel (0) target = $region57
    $region56: #{tpu_custom_call.1} parent=1 // pred_region
      %3242 = dma.done [#allocation4], 256
    $region57: #{tpu_custom_call.1} parent=1 // pred_fallthru
      _
    %3243 = vsyncpa [#allocation3], 1
    %3244 = vsyncpa [#allocation6], 1
    %3245 = vsyncpa [#allocation4], 1

</llo_original>
